<compile_context>
chip_gen: v7x
topology: tpu7x:2x2x1
jax: 0.10.0
libtpu: 0.0.40
codegen_flags: <defaults>
</compile_context>

<pallas_src>
import functools

import jax
import jax.numpy as jnp
from jax.experimental import pallas as pl
from jax.experimental.pallas import tpu as pltpu

LRELU_SLOPE = 0.01   # PyTorch LeakyReLU default negative_slope
BN_EPS = 1e-5        # PyTorch BatchNorm2d default eps


# ----------------------------- Pallas kernel --------------------------------

def _dense_filter_kernel(x_ref, bn1_ref, w1_ref, w2_ref, b2_ref, o_ref, pad_ref,
                         *, cin, growth, h, w, taps):
    """One batch element, fully VMEM-resident.

    x_ref   : (1, Cin, H*W)        input (lane-dense spatial axis)
    bn1_ref : (Cin, 2)             folded BN1 [scale | shift]
    w1_ref  : (Cb, Cin + 1)        1x1 conv weight with BN2 folded in, last col = bias
    w2_ref  : (taps, G, Cb)        (filter_len, 1) conv weight, per tap
    b2_ref  : (G, 1)               conv2 bias
    o_ref   : (1, Cin + G, H*W)    cat([x, net(x)]) output
    pad_ref : (Cb, (H + 2*(taps//2)) * W)  VMEM scratch, zero-padded along H
    """
    hw = h * w
    half = taps // 2

    x = x_ref[0]                                    # (Cin, H*W), f32

    # torch.cat((x, net(x)), dim=1): passthrough of x into the first Cin channels.
    o_ref[0, :cin, :] = x.astype(o_ref.dtype)

    # --- BN1 (eval affine) + LeakyReLU ---
    s1 = bn1_ref[:, 0:1]                            # (Cin, 1) broadcast over lanes
    t1 = bn1_ref[:, 1:2]
    h1 = x * s1 + t1
    h1 = jnp.where(h1 >= 0.0, h1, LRELU_SLOPE * h1)

    # --- Conv2d 1x1 (+bias) with BN2 folded, then LeakyReLU ---
    w1 = w1_ref[:, :cin]                            # (Cb, Cin), BN2 scale pre-folded
    b1 = w1_ref[:, cin:cin + 1]                     # (Cb, 1), bias*scale + BN2 shift
    h2 = jnp.dot(w1, h1, preferred_element_type=jnp.float32) + b1
    h2 = jnp.where(h2 >= 0.0, h2, LRELU_SLOPE * h2)

    # --- Conv2d (filter_len, 1), padding=(filter_len//2, 0) ---
    # Zero-pad along H inside VMEM scratch (pad layout: (Cb, (H + 2*half)*W)), then
    # accumulate one small MXU matmul per tap on a lane-shifted view. No HBM im2col.
    pad_ref[...] = jnp.zeros_like(pad_ref)
    pad_ref[:, half * w: half * w + hw] = h2
    acc = jnp.zeros((growth, hw), jnp.float32)
    for t in range(taps):                           # static unroll (taps = 5)
        acc = acc + jnp.dot(w2_ref[t], pad_ref[:, t * w: t * w + hw],
                            preferred_element_type=jnp.float32)
    acc = acc + b2_ref[...]                         # (G, 1) broadcast

    # Dropout2d: identity in eval mode.
    o_ref[0, cin:cin + growth, :] = acc.astype(o_ref.dtype)


# ------------------------------ wrapper --------------------------------------

def dense_filter(x_nchw, p):
    """DenseFilter forward (eval mode). x_nchw: (N, Cin, H, W) float32."""
    N, Cin, H, W = x_nchw.shape
    G, Cb, taps, kw = p['w2'].shape
    assert kw == 1, "dim=-2 => kernel (filter_len, 1)"
    half = taps // 2
    HW = H * W

    # Fold eval-mode BatchNorm2d into per-channel affines.
    s1 = p['g1'] / jnp.sqrt(p['v1'] + BN_EPS)
    t1 = p['b1'] - p['m1'] * s1
    s2 = p['g2'] / jnp.sqrt(p['v2'] + BN_EPS)
    t2 = p['b2bn'] - p['m2'] * s2

    bn1p = jnp.stack([s1, t1], axis=1).astype(jnp.float32)               # (Cin, 2)
    w1 = p['w1'][:, :, 0, 0]                                             # (Cb, Cin)
    w1eff = w1 * s2[:, None]                                             # fold BN2 scale
    b1eff = s2 * p['bc1'] + t2                                           # fold BN2 shift
    w1p = jnp.concatenate([w1eff, b1eff[:, None]], axis=1).astype(jnp.float32)  # (Cb, Cin+1)
    w2p = jnp.transpose(p['w2'][:, :, :, 0], (2, 0, 1)).astype(jnp.float32)      # (taps, G, Cb)
    b2 = p['bc2'][:, None].astype(jnp.float32)                           # (G, 1)

    x3 = x_nchw.reshape(N, Cin, HW).astype(jnp.float32)                  # lane-dense spatial

    kernel = functools.partial(_dense_filter_kernel, cin=Cin, growth=G,
                               h=H, w=W, taps=taps)

    out3 = pl.pallas_call(
        kernel,
        out_shape=jax.ShapeDtypeStruct((N, Cin + G, HW), jnp.float32),
        grid=(N,),
        in_specs=[
            pl.BlockSpec((1, Cin, HW), lambda n: (n, 0, 0)),
            pl.BlockSpec((Cin, 2), lambda n: (0, 0)),
            pl.BlockSpec((Cb, Cin + 1), lambda n: (0, 0)),
            pl.BlockSpec((taps, G, Cb), lambda n: (0, 0, 0)),
            pl.BlockSpec((G, 1), lambda n: (0, 0)),
        ],
        out_specs=pl.BlockSpec((1, Cin + G, HW), lambda n: (n, 0, 0)),
        scratch_shapes=[pltpu.VMEM((Cb, (H + 2 * half) * W), jnp.float32)],
        compiler_params=pltpu.CompilerParams(dimension_semantics=("parallel",)),
    )(x3, bn1p, w1p, w2p, b2)

    return out3.reshape(N, Cin + G, H, W)


# --------------------------- pure-JAX reference -------------------------------

def dense_filter_reference(x, p):
    s1 = p['g1'] / jnp.sqrt(p['v1'] + BN_EPS)
    t1 = p['b1'] - p['m1'] * s1
    h = x * s1[None, :, None, None] + t1[None, :, None, None]
    h = jnp.where(h >= 0, h, LRELU_SLOPE * h)

    w1 = p['w1'][:, :, 0, 0]
    h = jnp.einsum('oc,nchw->nohw', w1, h, precision='highest') \
        + p['bc1'][None, :, None, None]
    s2 = p['g2'] / jnp.sqrt(p['v2'] + BN_EPS)
    t2 = p['b2bn'] - p['m2'] * s2
    h = h * s2[None, :, None, None] + t2[None, :, None, None]
    h = jnp.where(h >= 0, h, LRELU_SLOPE * h)

    G, Cb, taps, _ = p['w2'].shape
    half = taps // 2
    H = x.shape[2]
    hp = jnp.pad(h, ((0, 0), (0, 0), (half, half), (0, 0)))
    acc = 0.0
    for t in range(taps):
        acc = acc + jnp.einsum('oc,nchw->nohw', p['w2'][:, :, t, 0],
                               hp[:, :, t:t + H, :], precision='highest')
    out = acc + p['bc2'][None, :, None, None]
    return jnp.concatenate([x, out], axis=1)


# --------------------------- parameter setup ----------------------------------

def make_params(key, cin, growth, bottleneck, filter_len):
    cb = bottleneck * growth
    ks = jax.random.split(key, 12)

    def rnd(k, shape, scale=0.1):
        return (scale * jax.random.normal(k, shape)).astype(jnp.float32)

    return dict(
        # BatchNorm2d(in_features): gamma, beta, running_mean, running_var
        g1=(1.0 + rnd(ks[0], (cin,))),
        b1=rnd(ks[1], (cin,)),
        m1=rnd(ks[2], (cin,)),
        v1=(0.5 + jnp.abs(jax.random.normal(ks[3], (cin,)))).astype(jnp.float32),
        # Conv2d(in_features, bottleneck*growth, 1)
        w1=rnd(ks[4], (cb, cin, 1, 1)),
        bc1=rnd(ks[5], (cb,)),
        # BatchNorm2d(bottleneck*growth)
        g2=(1.0 + rnd(ks[6], (cb,))),
        b2bn=rnd(ks[7], (cb,)),
        m2=rnd(ks[8], (cb,)),
        v2=(0.5 + jnp.abs(jax.random.normal(ks[9], (cb,)))).astype(jnp.float32),
        # Conv2d(bottleneck*growth, growth, (filter_len, 1), padding=(filter_len//2, 0))
        w2=rnd(ks[10], (growth, cb, filter_len, 1)),
        bc2=rnd(ks[11], (growth,)),
    )


# ------------------------------- main ------------------------------------------

if __name__ == "__main__":
    # DenseFilter(in_features=8, growth_rate=4, filter_len=5, bottleneck=2, dim=-2)
    N, Cin, H, W = 2, 8, 16, 128        # W chosen lane-dense (multiple of 128)
    growth, bottleneck, filter_len = 4, 2, 5

    key = jax.random.PRNGKey(0)
    kp, kx = jax.random.split(key)
    params = make_params(kp, Cin, growth, bottleneck, filter_len)
    x = jax.random.normal(kx, (N, Cin, H, W), jnp.float32)

    fwd = jax.jit(dense_filter)         # params pytree holds only arrays -> no traced ints
    out = jax.block_until_ready(fwd(x, params))

    assert out.shape == (N, Cin + growth, H, W), out.shape
    assert bool(jnp.all(jnp.isfinite(out)))

    ref = dense_filter_reference(x, params)
    err = float(jnp.max(jnp.abs(out - ref)))
    assert err < 1e-3, f"max abs error vs reference: {err}"

    print("KERNEL_OK")
</pallas_src>

<mosaic_0001>
module attributes {stable_mosaic.version = 11 : i64} {
  func.func @_dense_filter_kernel(%arg0: i32, %arg1: memref<1x8x2048xf32, #tpu.memory_space<vmem>>, %arg2: memref<8x2xf32, #tpu.memory_space<vmem>>, %arg3: memref<8x9xf32, #tpu.memory_space<vmem>>, %arg4: memref<5x4x8xf32, #tpu.memory_space<vmem>>, %arg5: memref<4x1xf32, #tpu.memory_space<vmem>>, %arg6: memref<1x12x2048xf32, #tpu.memory_space<vmem>>, %arg7: memref<8x2560xf32, #tpu.memory_space<vmem>>) attributes {dimension_semantics = [#tpu.dimension_semantics<parallel>], iteration_bounds = array<i64: 2>, scalar_prefetch = 0 : i64, scratch_operands = 1 : i64, tpu.core_type = #tpu.core_type<tc>, window_params = [{transform_indices = @transform_0, window_bounds = array<i64: 1, 8, 2048>}, {pipeline_mode = #tpu.pipeline_mode<synchronous>, transform_indices = @transform_1, window_bounds = array<i64: 8, 2>}, {pipeline_mode = #tpu.pipeline_mode<synchronous>, transform_indices = @transform_2, window_bounds = array<i64: 8, 9>}, {pipeline_mode = #tpu.pipeline_mode<synchronous>, transform_indices = @transform_3, window_bounds = array<i64: 5, 4, 8>}, {pipeline_mode = #tpu.pipeline_mode<synchronous>, transform_indices = @transform_4, window_bounds = array<i64: 4, 1>}, {transform_indices = @transform_5, window_bounds = array<i64: 1, 12, 2048>}]} {
    %c0 = arith.constant 0 : index
    %c0_0 = arith.constant 0 : index
    %c0_1 = arith.constant 0 : index
    %0 = vector.load %arg1[%c0, %c0_0, %c0_1] : memref<1x8x2048xf32, #tpu.memory_space<vmem>>, vector<1x8x2048xf32>
    %1 = vector.shape_cast %0 : vector<1x8x2048xf32> to vector<8x2048xf32>
    %c0_2 = arith.constant 0 : index
    %c0_3 = arith.constant 0 : index
    %c0_4 = arith.constant 0 : index
    %2 = vector.load %arg6[%c0_2, %c0_3, %c0_4] : memref<1x12x2048xf32, #tpu.memory_space<vmem>>, vector<1x8x2048xf32>
    %3 = vector.shape_cast %2 : vector<1x8x2048xf32> to vector<8x2048xf32>
    %4 = vector.shape_cast %1 : vector<8x2048xf32> to vector<1x8x2048xf32>
    tpu.vector_store %arg6[%c0_2, %c0_3, %c0_4], %4 {strides = array<i32>} : memref<1x12x2048xf32, #tpu.memory_space<vmem>>, vector<1x8x2048xf32>,
    %c0_5 = arith.constant 0 : index
    %c0_6 = arith.constant 0 : index
    %5 = vector.load %arg2[%c0_5, %c0_6] : memref<8x2xf32, #tpu.memory_space<vmem>>, vector<8x1xf32>
    %c0_7 = arith.constant 0 : index
    %c1 = arith.constant 1 : index
    %6 = vector.load %arg2[%c0_7, %c1] : memref<8x2xf32, #tpu.memory_space<vmem>>, vector<8x1xf32>
    %7 = vector.broadcast %5 : vector<8x1xf32> to vector<8x2048xf32>
    %8 = arith.mulf %1, %7 : vector<8x2048xf32>
    %9 = vector.broadcast %6 : vector<8x1xf32> to vector<8x2048xf32>
    %10 = arith.addf %8, %9 : vector<8x2048xf32>
    %cst = arith.constant 0.000000e+00 : f32
    %11 = vector.broadcast %cst : f32 to vector<8x2048xf32>
    %12 = arith.cmpf oge, %10, %11 : vector<8x2048xf32>
    %cst_8 = arith.constant 0.00999999977 : f32
    %13 = vector.broadcast %cst_8 : f32 to vector<8x2048xf32>
    %14 = arith.mulf %13, %10 : vector<8x2048xf32>
    %15 = arith.select %12, %10, %14 : vector<8x2048xi1>, vector<8x2048xf32>
    %c0_9 = arith.constant 0 : index
    %c0_10 = arith.constant 0 : index
    %16 = vector.load %arg3[%c0_9, %c0_10] : memref<8x9xf32, #tpu.memory_space<vmem>>, vector<8x8xf32>
    %c0_11 = arith.constant 0 : index
    %c8 = arith.constant 8 : index
    %17 = vector.load %arg3[%c0_11, %c8] : memref<8x9xf32, #tpu.memory_space<vmem>>, vector<8x1xf32>
    %cst_12 = arith.constant dense<0.000000e+00> : vector<8x2048xf32>
    %18 = tpu.matmul %16, %15, %cst_12 {dimension_numbers = #tpu.dot_dimension_numbers<[1], [0], [0], [1], [0, 0, 1, 1], [], []>} : vector<8x8xf32>, vector<8x2048xf32>, vector<8x2048xf32> -> vector<8x2048xf32>
    %19 = vector.broadcast %17 : vector<8x1xf32> to vector<8x2048xf32>
    %20 = arith.addf %18, %19 : vector<8x2048xf32>
    %cst_13 = arith.constant 0.000000e+00 : f32
    %21 = vector.broadcast %cst_13 : f32 to vector<8x2048xf32>
    %22 = arith.cmpf oge, %20, %21 : vector<8x2048xf32>
    %cst_14 = arith.constant 0.00999999977 : f32
    %23 = vector.broadcast %cst_14 : f32 to vector<8x2048xf32>
    %24 = arith.mulf %23, %20 : vector<8x2048xf32>
    %25 = arith.select %22, %20, %24 : vector<8x2048xi1>, vector<8x2048xf32>
    %cst_15 = arith.constant 0.000000e+00 : f32
    %26 = vector.broadcast %cst_15 : f32 to vector<8x2560xf32>
    %c0_16 = arith.constant 0 : index
    %c0_17 = arith.constant 0 : index
    %27 = vector.load %arg7[%c0_16, %c0_17] : memref<8x2560xf32, #tpu.memory_space<vmem>>, vector<8x2560xf32>
    tpu.vector_store %arg7[%c0_16, %c0_17], %26 {strides = array<i32>} : memref<8x2560xf32, #tpu.memory_space<vmem>>, vector<8x2560xf32>,
    %c0_18 = arith.constant 0 : index
    %c256 = arith.constant 256 : index
    %28 = vector.load %arg7[%c0_18, %c256] : memref<8x2560xf32, #tpu.memory_space<vmem>>, vector<8x2048xf32>
    tpu.vector_store %arg7[%c0_18, %c256], %25 {strides = array<i32>} : memref<8x2560xf32, #tpu.memory_space<vmem>>, vector<8x2048xf32>,
    %cst_19 = arith.constant 0.000000e+00 : f32
    %29 = vector.broadcast %cst_19 : f32 to vector<4x2048xf32>
    %c0_20 = arith.constant 0 : index
    %c0_21 = arith.constant 0 : index
    %c0_22 = arith.constant 0 : index
    %30 = vector.load %arg4[%c0_20, %c0_21, %c0_22] : memref<5x4x8xf32, #tpu.memory_space<vmem>>, vector<1x4x8xf32>
    %31 = vector.shape_cast %30 : vector<1x4x8xf32> to vector<4x8xf32>
    %c0_23 = arith.constant 0 : index
    %c0_24 = arith.constant 0 : index
    %32 = vector.load %arg7[%c0_23, %c0_24] : memref<8x2560xf32, #tpu.memory_space<vmem>>, vector<8x2048xf32>
    %cst_25 = arith.constant dense<0.000000e+00> : vector<4x2048xf32>
    %33 = tpu.matmul %31, %32, %cst_25 {dimension_numbers = #tpu.dot_dimension_numbers<[1], [0], [0], [1], [0, 0, 1, 1], [], []>} : vector<4x8xf32>, vector<8x2048xf32>, vector<4x2048xf32> -> vector<4x2048xf32>
    %34 = arith.addf %29, %33 : vector<4x2048xf32>
    %c1_26 = arith.constant 1 : index
    %c0_27 = arith.constant 0 : index
    %c0_28 = arith.constant 0 : index
    %35 = vector.load %arg4[%c1_26, %c0_27, %c0_28] : memref<5x4x8xf32, #tpu.memory_space<vmem>>, vector<1x4x8xf32>
    %36 = vector.shape_cast %35 : vector<1x4x8xf32> to vector<4x8xf32>
    %c0_29 = arith.constant 0 : index
    %c128 = arith.constant 128 : index
    %37 = vector.load %arg7[%c0_29, %c128] : memref<8x2560xf32, #tpu.memory_space<vmem>>, vector<8x2048xf32>
    %cst_30 = arith.constant dense<0.000000e+00> : vector<4x2048xf32>
    %38 = tpu.matmul %36, %37, %cst_30 {dimension_numbers = #tpu.dot_dimension_numbers<[1], [0], [0], [1], [0, 0, 1, 1], [], []>} : vector<4x8xf32>, vector<8x2048xf32>, vector<4x2048xf32> -> vector<4x2048xf32>
    %39 = arith.addf %34, %38 : vector<4x2048xf32>
    %c2 = arith.constant 2 : index
    %c0_31 = arith.constant 0 : index
    %c0_32 = arith.constant 0 : index
    %40 = vector.load %arg4[%c2, %c0_31, %c0_32] : memref<5x4x8xf32, #tpu.memory_space<vmem>>, vector<1x4x8xf32>
    %41 = vector.shape_cast %40 : vector<1x4x8xf32> to vector<4x8xf32>
    %c0_33 = arith.constant 0 : index
    %c256_34 = arith.constant 256 : index
    %42 = vector.load %arg7[%c0_33, %c256_34] : memref<8x2560xf32, #tpu.memory_space<vmem>>, vector<8x2048xf32>
    %cst_35 = arith.constant dense<0.000000e+00> : vector<4x2048xf32>
    %43 = tpu.matmul %41, %42, %cst_35 {dimension_numbers = #tpu.dot_dimension_numbers<[1], [0], [0], [1], [0, 0, 1, 1], [], []>} : vector<4x8xf32>, vector<8x2048xf32>, vector<4x2048xf32> -> vector<4x2048xf32>
    %44 = arith.addf %39, %43 : vector<4x2048xf32>
    %c3 = arith.constant 3 : index
    %c0_36 = arith.constant 0 : index
    %c0_37 = arith.constant 0 : index
    %45 = vector.load %arg4[%c3, %c0_36, %c0_37] : memref<5x4x8xf32, #tpu.memory_space<vmem>>, vector<1x4x8xf32>
    %46 = vector.shape_cast %45 : vector<1x4x8xf32> to vector<4x8xf32>
    %c0_38 = arith.constant 0 : index
    %c384 = arith.constant 384 : index
    %47 = vector.load %arg7[%c0_38, %c384] : memref<8x2560xf32, #tpu.memory_space<vmem>>, vector<8x2048xf32>
    %cst_39 = arith.constant dense<0.000000e+00> : vector<4x2048xf32>
    %48 = tpu.matmul %46, %47, %cst_39 {dimension_numbers = #tpu.dot_dimension_numbers<[1], [0], [0], [1], [0, 0, 1, 1], [], []>} : vector<4x8xf32>, vector<8x2048xf32>, vector<4x2048xf32> -> vector<4x2048xf32>
    %49 = arith.addf %44, %48 : vector<4x2048xf32>
    %c4 = arith.constant 4 : index
    %c0_40 = arith.constant 0 : index
    %c0_41 = arith.constant 0 : index
    %50 = vector.load %arg4[%c4, %c0_40, %c0_41] : memref<5x4x8xf32, #tpu.memory_space<vmem>>, vector<1x4x8xf32>
    %51 = vector.shape_cast %50 : vector<1x4x8xf32> to vector<4x8xf32>
    %c0_42 = arith.constant 0 : index
    %c512 = arith.constant 512 : index
    %52 = vector.load %arg7[%c0_42, %c512] : memref<8x2560xf32, #tpu.memory_space<vmem>>, vector<8x2048xf32>
    %cst_43 = arith.constant dense<0.000000e+00> : vector<4x2048xf32>
    %53 = tpu.matmul %51, %52, %cst_43 {dimension_numbers = #tpu.dot_dimension_numbers<[1], [0], [0], [1], [0, 0, 1, 1], [], []>} : vector<4x8xf32>, vector<8x2048xf32>, vector<4x2048xf32> -> vector<4x2048xf32>
    %54 = arith.addf %49, %53 : vector<4x2048xf32>
    %c0_44 = arith.constant 0 : index
    %c0_45 = arith.constant 0 : index
    %55 = vector.load %arg5[%c0_44, %c0_45] : memref<4x1xf32, #tpu.memory_space<vmem>>, vector<4x1xf32>
    %56 = vector.broadcast %55 : vector<4x1xf32> to vector<4x2048xf32>
    %57 = arith.addf %54, %56 : vector<4x2048xf32>
    %c0_46 = arith.constant 0 : index
    %c8_47 = arith.constant 8 : index
    %c0_48 = arith.constant 0 : index
    %58 = vector.load %arg6[%c0_46, %c8_47, %c0_48] : memref<1x12x2048xf32, #tpu.memory_space<vmem>>, vector<1x4x2048xf32>
    %59 = vector.shape_cast %58 : vector<1x4x2048xf32> to vector<4x2048xf32>
    %60 = vector.shape_cast %57 : vector<4x2048xf32> to vector<1x4x2048xf32>
    tpu.vector_store %arg6[%c0_46, %c8_47, %c0_48], %60 {strides = array<i32>} : memref<1x12x2048xf32, #tpu.memory_space<vmem>>, vector<1x4x2048xf32>,
    return
  }
  func.func @transform_0(%arg0: i32) -> (i32, i32, i32) {
    %c0_i32 = arith.constant 0 : i32
    %c0_i32_0 = arith.constant 0 : i32
    %c0_i32_1 = arith.constant 0 : i32
    return %arg0, %c0_i32, %c0_i32_0 : i32, i32, i32
  }
  func.func @transform_1(%arg0: i32) -> (i32, i32) {
    %c0_i32 = arith.constant 0 : i32
    %c0_i32_0 = arith.constant 0 : i32
    %c0_i32_1 = arith.constant 0 : i32
    return %c0_i32, %c0_i32_0 : i32, i32
  }
  func.func @transform_2(%arg0: i32) -> (i32, i32) {
    %c0_i32 = arith.constant 0 : i32
    %c0_i32_0 = arith.constant 0 : i32
    %c0_i32_1 = arith.constant 0 : i32
    return %c0_i32, %c0_i32_0 : i32, i32
  }
  func.func @transform_3(%arg0: i32) -> (i32, i32, i32) {
    %c0_i32 = arith.constant 0 : i32
    %c0_i32_0 = arith.constant 0 : i32
    %c0_i32_1 = arith.constant 0 : i32
    %c0_i32_2 = arith.constant 0 : i32
    return %c0_i32, %c0_i32_0, %c0_i32_1 : i32, i32, i32
  }
  func.func @transform_4(%arg0: i32) -> (i32, i32) {
    %c0_i32 = arith.constant 0 : i32
    %c0_i32_0 = arith.constant 0 : i32
    %c0_i32_1 = arith.constant 0 : i32
    return %c0_i32, %c0_i32_0 : i32, i32
  }
  func.func @transform_5(%arg0: i32) -> (i32, i32, i32) {
    %c0_i32 = arith.constant 0 : i32
    %c0_i32_0 = arith.constant 0 : i32
    %c0_i32_1 = arith.constant 0 : i32
    return %arg0, %c0_i32, %c0_i32_0 : i32, i32, i32
  }
}

</mosaic_0001>

<llo_original>
// kernel: dense_filter.1
$region0: #{dense_filter.1}
  #allocation0 [shape = 'u32[]', space=smem, size = 0x4, offset = 0x4, fixed_abs, tag = 'smem constant byte address 0x4 - core index']
  #allocation1 [shape = 'u32[144,128]{1,0:T(1,128)}', space=vmem, size = 0x12000, scoped, tag = 'internal scratch']
  #allocation2 [shape = 'f32[8,2560]{1,0:T(8,128)}', space=vmem, size = 0x14000, scoped, tag = 'scratch operand']
  %s0 = inlined_call_operand.vmem [shape: f32[2,8,2048], index: 0, kind: input, shape index: {}]
  %s1 = inlined_call_operand.vmem [shape: f32[8,2], index: 1, kind: input, shape index: {}]
  %s2 = inlined_call_operand.vmem [shape: f32[8,9], index: 2, kind: input, shape index: {}]
  %s3 = inlined_call_operand.vmem [shape: f32[5,4,8], index: 3, kind: input, shape index: {}]
  %s4 = inlined_call_operand.vmem [shape: f32[4,1], index: 4, kind: input, shape index: {}]
  %s5 = inlined_call_operand.vmem [shape: f32[2,12,2048], index: 5, kind: output, shape index: {}]
  %s6 = sld [smem:[#allocation0]]
  $region53: #{dense_filter.1} parent=0
    _
  %s8 = ssub.s32 1, %s6
  %s9 = scalar_select 0, %s8, %s6
  loop: start=0, step=1, limit=4
  $region2: #{dense_filter.1} parent=0 // loop_pre_header
    _
  $region3: #{dense_filter.1} parent=0 // loop_header
    %s11 = sphi 0, %s15
    %p12 = scmp.ge.s32.totalorder %s11, 4
    %s21 = sphi 0, %s23
    %s24 = sphi 0, %s21
    %s25 = sphi 0, %s24
    %s41 = sphi 0, %s25
    %s45 = sphi 0, %s45
    %s47 = sphi 0, %s45
    %s48 = sphi 0, %s47
    %s62 = sphi 0, %s48
    %s66 = sphi 0, %s66
    %s68 = sphi 0, %s66
    %s69 = sphi 0, %s68
    %s83 = sphi 0, %s69
    %s87 = sphi 0, %s87
    %s89 = sphi 0, %s87
    %s90 = sphi 0, %s89
    %s104 = sphi 0, %s90
    %s108 = sphi 0, %s108
    %s110 = sphi 0, %s108
    %s111 = sphi 0, %s110
    %s125 = sphi 0, %s111
    %s131 = sphi 0, %s133
    %s134 = sphi 0, %s131
    %s135 = sphi 0, %s134
    %s151 = sphi 0, %s135
  $region4: #{dense_filter.1} parent=0 // loop_header_branch
    %14 = sbr.rel (%p12) target = $region8
  $region5: #{dense_filter.1} parent=0 // loop_body
    %s16 = ssub.s32 %s11, 1
    %s17 = ssub.s32 %s11, 2
    %s18 = sadd.s32 %s11, 1
    %s19 = ssub.s32 %s11, %s18
    %p20 = scmp.eq.s32.totalorder %s19, 0
    %s22 = sadd.s32 %s21, 1
    %s23 = scalar_select %p20, %s21, %s22
    %p26 = pneg %p20
    %p27 = scmp.eq.s32.totalorder %s11, 1
    %p28 = por %p26, %p27
    %p29 = scmp.ne.s32.totalorder %s21, %s24
    %p30 = scmp.eq.s32.totalorder %s11, 0
    %p31 = por %p29, %p30
    %p32 = scmp.ne.s32.totalorder %s21, %s24
    %p33 = scmp.eq.s32.totalorder %s16, 1
    %p34 = por %p32, %p33
    %p35 = scmp.ne.s32.totalorder %s24, %s25
    %p36 = scmp.eq.s32.totalorder %s16, 0
    %p37 = por %p35, %p36
    %p38 = scmp.ne.s32.totalorder %s24, %s25
    %p39 = scmp.eq.s32.totalorder %s17, 1
    %p40 = por %p38, %p39
    %p42 = scmp.ne.s32.totalorder %s25, %s41
    %p43 = scmp.eq.s32.totalorder %s17, 0
    %p44 = por %p42, %p43
    %s46 = sadd.s32 %s45, 1
    %p49 = scmp.eq.s32.totalorder %s11, 1
    %p50 = scmp.ne.s32.totalorder %s45, %s47
    %p51 = scmp.eq.s32.totalorder %s11, 0
    %p52 = por %p50, %p51
    %p53 = scmp.ne.s32.totalorder %s45, %s47
    %p54 = scmp.eq.s32.totalorder %s16, 1
    %p55 = por %p53, %p54
    %p56 = scmp.ne.s32.totalorder %s47, %s48
    %p57 = scmp.eq.s32.totalorder %s16, 0
    %p58 = por %p56, %p57
    %p59 = scmp.ne.s32.totalorder %s47, %s48
    %p60 = scmp.eq.s32.totalorder %s17, 1
    %p61 = por %p59, %p60
    %p63 = scmp.ne.s32.totalorder %s48, %s62
    %p64 = scmp.eq.s32.totalorder %s17, 0
    %p65 = por %p63, %p64
    %s67 = sadd.s32 %s66, 1
    %p70 = scmp.eq.s32.totalorder %s11, 1
    %p71 = scmp.ne.s32.totalorder %s66, %s68
    %p72 = scmp.eq.s32.totalorder %s11, 0
    %p73 = por %p71, %p72
    %p74 = scmp.ne.s32.totalorder %s66, %s68
    %p75 = scmp.eq.s32.totalorder %s16, 1
    %p76 = por %p74, %p75
    %p77 = scmp.ne.s32.totalorder %s68, %s69
    %p78 = scmp.eq.s32.totalorder %s16, 0
    %p79 = por %p77, %p78
    %p80 = scmp.ne.s32.totalorder %s68, %s69
    %p81 = scmp.eq.s32.totalorder %s17, 1
    %p82 = por %p80, %p81
    %p84 = scmp.ne.s32.totalorder %s69, %s83
    %p85 = scmp.eq.s32.totalorder %s17, 0
    %p86 = por %p84, %p85
    %s88 = sadd.s32 %s87, 1
    %p91 = scmp.eq.s32.totalorder %s11, 1
    %p92 = scmp.ne.s32.totalorder %s87, %s89
    %p93 = scmp.eq.s32.totalorder %s11, 0
    %p94 = por %p92, %p93
    %p95 = scmp.ne.s32.totalorder %s87, %s89
    %p96 = scmp.eq.s32.totalorder %s16, 1
    %p97 = por %p95, %p96
    %p98 = scmp.ne.s32.totalorder %s89, %s90
    %p99 = scmp.eq.s32.totalorder %s16, 0
    %p100 = por %p98, %p99
    %p101 = scmp.ne.s32.totalorder %s89, %s90
    %p102 = scmp.eq.s32.totalorder %s17, 1
    %p103 = por %p101, %p102
    %p105 = scmp.ne.s32.totalorder %s90, %s104
    %p106 = scmp.eq.s32.totalorder %s17, 0
    %p107 = por %p105, %p106
    %s109 = sadd.s32 %s108, 1
    %p112 = scmp.eq.s32.totalorder %s11, 1
    %p113 = scmp.ne.s32.totalorder %s108, %s110
    %p114 = scmp.eq.s32.totalorder %s11, 0
    %p115 = por %p113, %p114
    %p116 = scmp.ne.s32.totalorder %s108, %s110
    %p117 = scmp.eq.s32.totalorder %s16, 1
    %p118 = por %p116, %p117
    %p119 = scmp.ne.s32.totalorder %s110, %s111
    %p120 = scmp.eq.s32.totalorder %s16, 0
    %p121 = por %p119, %p120
    %p122 = scmp.ne.s32.totalorder %s110, %s111
    %p123 = scmp.eq.s32.totalorder %s17, 1
    %p124 = por %p122, %p123
    %p126 = scmp.ne.s32.totalorder %s111, %s125
    %p127 = scmp.eq.s32.totalorder %s17, 0
    %p128 = por %p126, %p127
    %s129 = ssub.s32 %s11, %s18
    %p130 = scmp.eq.s32.totalorder %s129, 0
    %s132 = sadd.s32 %s131, 1
    %s133 = scalar_select %p130, %s131, %s132
    %p136 = pneg %p130
    %p137 = scmp.eq.s32.totalorder %s11, 1
    %p138 = por %p136, %p137
    %p139 = scmp.ne.s32.totalorder %s131, %s134
    %p140 = scmp.eq.s32.totalorder %s11, 0
    %p141 = por %p139, %p140
    %p142 = scmp.ne.s32.totalorder %s131, %s134
    %p143 = scmp.eq.s32.totalorder %s16, 1
    %p144 = por %p142, %p143
    %p145 = scmp.ne.s32.totalorder %s134, %s135
    %p146 = scmp.eq.s32.totalorder %s16, 0
    %p147 = por %p145, %p146
    %p148 = scmp.ne.s32.totalorder %s134, %s135
    %p149 = scmp.eq.s32.totalorder %s17, 1
    %p150 = por %p148, %p149
    %p152 = scmp.ne.s32.totalorder %s135, %s151
    %p153 = scmp.eq.s32.totalorder %s17, 0
    %p154 = por %p152, %p153
    %p155 = scmp.le.s32.totalorder 1, %s11
    %p156 = scmp.lt.s32.totalorder %s11, 3
    %p157 = pnand %p155, %p156
    %p158 = pneg %p157
    // Predicated region
    $region9: #{dense_filter.1} parent=5 // pred_check
      _
    $region10: #{dense_filter.1} parent=5 // pred_check_branch
      %160 = sbr.rel (%p157) target = $region12
    $region11: #{dense_filter.1} parent=5 // pred_region
      %s161 = ssub.s32 %s11, 1
      // Predicated region
      $region13: #{dense_filter.1} parent=11 // pred_check
        %p162 = pneg %p58
      $region14: #{dense_filter.1} parent=11 // pred_check_branch
        %164 = sbr.rel (%p162) target = $region16
      $region15: #{dense_filter.1} parent=11 // pred_region
        _
      $region16: #{dense_filter.1} parent=11 // pred_fallthru
        _
      // Predicated region
      $region17: #{dense_filter.1} parent=11 // pred_check
        %p165 = pneg %p79
      $region18: #{dense_filter.1} parent=11 // pred_check_branch
        %167 = sbr.rel (%p165) target = $region20
      $region19: #{dense_filter.1} parent=11 // pred_region
        _
      $region20: #{dense_filter.1} parent=11 // pred_fallthru
        _
      // Predicated region
      $region21: #{dense_filter.1} parent=11 // pred_check
        %p168 = pneg %p100
      $region22: #{dense_filter.1} parent=11 // pred_check_branch
        %170 = sbr.rel (%p168) target = $region24
      $region23: #{dense_filter.1} parent=11 // pred_region
        _
      $region24: #{dense_filter.1} parent=11 // pred_fallthru
        _
      // Predicated region
      $region25: #{dense_filter.1} parent=11 // pred_check
        %p171 = pneg %p121
      $region26: #{dense_filter.1} parent=11 // pred_check_branch
        %173 = sbr.rel (%p171) target = $region28
      $region27: #{dense_filter.1} parent=11 // pred_region
        _
      $region28: #{dense_filter.1} parent=11 // pred_fallthru
        _
    $region12: #{dense_filter.1} parent=5 // pred_fallthru
      _
    %p174 = scmp.lt.s32.totalorder %s11, 2
    // Predicated region
    $region29: #{dense_filter.1} parent=5 // pred_check
      %p175 = pneg %p174
    $region30: #{dense_filter.1} parent=5 // pred_check_branch
      %177 = sbr.rel (%p175) target = $region32
    $region31: #{dense_filter.1} parent=5 // pred_region
      // Predicated region
      $region33: #{dense_filter.1} parent=31 // pred_check
        %p178 = pneg %p31
      $region34: #{dense_filter.1} parent=31 // pred_check_branch
        %180 = sbr.rel (%p178) target = $region36
      $region35: #{dense_filter.1} parent=31 // pred_region
        %p181 = scmp.lt.s32.totalorder %s11, 1
        %s182 = scalar_select %p181, %s11, 1
        %s183 = smul.addr %s182, 16
        %s184 = smul.addr %s183, 8
        %s185 = scalar_lea.vmem %s0, %s184
      $region36: #{dense_filter.1} parent=31 // pred_fallthru
        _
    $region32: #{dense_filter.1} parent=5 // pred_fallthru
      _
    %p186 = scmp.le.s32.totalorder 1, %s11
    %p187 = scmp.lt.s32.totalorder %s11, 3
    %p188 = pnand %p186, %p187
    %p189 = pneg %p188
    // Predicated region
    $region37: #{dense_filter.1} parent=5 // pred_check
      _
    $region38: #{dense_filter.1} parent=5 // pred_check_branch
      %191 = sbr.rel (%p188) target = $region40
    $region39: #{dense_filter.1} parent=5 // pred_region
      %s192 = ssub.s32 %s11, 1
      %p193 = scmp.lt.s32.totalorder %s16, 1
      %s194 = scalar_select %p193, %s16, 1
      %s195 = smul.addr %s194, 16
      %s196 = smul.addr %s195, 8
      %s197 = scalar_lea.vmem %s0, %s196
      %p198 = pneg %p37
      %p199 = pneg %p34
      %p200 = pneg %p58
      %p201 = pneg %p55
      %p202 = pneg %p79
      %p203 = pneg %p76
      %p204 = pneg %p100
      %p205 = pneg %p97
      %p206 = pneg %p121
      %p207 = pneg %p118
      %p208 = pneg %p147
      %p209 = pneg %p144
      %p210 = scmp.lt.s32.totalorder %s16, 1
      %s211 = scalar_select %p210, %s16, 1
      %s212 = smul.addr %s211, 32
      %s213 = smul.addr %s212, 8
      %s214 = scalar_lea.vmem %s5, %s213
      %p215 = scmp.lt.s32.totalorder %s16, 1
      %s216 = scalar_select %p215, %s16, 1
      %s217 = smul.addr %s216, 16
      %s218 = smul.addr %s217, 8
      %s219 = scalar_lea.vmem %s0, %s218
      %p220 = scmp.lt.s32.totalorder %s16, 1
      %s221 = scalar_select %p220, %s16, 1
      %s222 = smul.addr %s221, 32
      %s223 = smul.addr %s222, 8
      %s224 = scalar_lea.vmem %s5, %s223
      %v225 = vld [vmem:[%s219] sm:$0xff]
      %v226 = vld [vmem:[%s219 + $0x8] sm:$0xff]
      %v227 = vld [vmem:[%s219 + $0x10] sm:$0xff]
      %v228 = vld [vmem:[%s219 + $0x18] sm:$0xff]
      %v229 = vld [vmem:[%s219 + $0x20] sm:$0xff]
      %v230 = vld [vmem:[%s219 + $0x28] sm:$0xff]
      %v231 = vld [vmem:[%s219 + $0x30] sm:$0xff]
      %v232 = vld [vmem:[%s219 + $0x38] sm:$0xff]
      %v233 = vld [vmem:[%s219 + $0x40] sm:$0xff]
      %v234 = vld [vmem:[%s219 + $0x48] sm:$0xff]
      %v235 = vld [vmem:[%s219 + $0x50] sm:$0xff]
      %v236 = vld [vmem:[%s219 + $0x58] sm:$0xff]
      %v237 = vld [vmem:[%s219 + $0x60] sm:$0xff]
      %v238 = vld [vmem:[%s219 + $0x68] sm:$0xff]
      %v239 = vld [vmem:[%s219 + $0x70] sm:$0xff]
      %v240 = vld [vmem:[%s219 + $0x78] sm:$0xff]
      %241 = vst [vmem:[%s224] sm:$0xff] %v225
      %242 = vst [vmem:[%s224 + $0x8] sm:$0xff] %v226
      %243 = vst [vmem:[%s224 + $0x10] sm:$0xff] %v227
      %244 = vst [vmem:[%s224 + $0x18] sm:$0xff] %v228
      %245 = vst [vmem:[%s224 + $0x20] sm:$0xff] %v229
      %246 = vst [vmem:[%s224 + $0x28] sm:$0xff] %v230
      %247 = vst [vmem:[%s224 + $0x30] sm:$0xff] %v231
      %248 = vst [vmem:[%s224 + $0x38] sm:$0xff] %v232
      %249 = vst [vmem:[%s224 + $0x40] sm:$0xff] %v233
      %250 = vst [vmem:[%s224 + $0x48] sm:$0xff] %v234
      %251 = vst [vmem:[%s224 + $0x50] sm:$0xff] %v235
      %252 = vst [vmem:[%s224 + $0x58] sm:$0xff] %v236
      %253 = vst [vmem:[%s224 + $0x60] sm:$0xff] %v237
      %254 = vst [vmem:[%s224 + $0x68] sm:$0xff] %v238
      %255 = vst [vmem:[%s224 + $0x70] sm:$0xff] %v239
      %256 = vst [vmem:[%s224 + $0x78] sm:$0xff] %v240
      %v257 = vld [vmem:[%s1] sm:$0xff]
      %259 = vset.pattern.permute.xlu0 0
      %260 = vperm.xlu0 %259, %v257
      %v261 = vpop.permute.xlu0 %260
      %v263 = vmul.f32 %v225, %v261
      %v264 = vmul.f32 %v226, %v261
      %v265 = vmul.f32 %v227, %v261
      %v266 = vmul.f32 %v228, %v261
      %v267 = vmul.f32 %v229, %v261
      %v268 = vmul.f32 %v230, %v261
      %v269 = vmul.f32 %v231, %v261
      %v270 = vmul.f32 %v232, %v261
      %v271 = vmul.f32 %v233, %v261
      %v272 = vmul.f32 %v234, %v261
      %v273 = vmul.f32 %v235, %v261
      %v274 = vmul.f32 %v236, %v261
      %v275 = vmul.f32 %v237, %v261
      %v276 = vmul.f32 %v238, %v261
      %v277 = vmul.f32 %v239, %v261
      %v278 = vmul.f32 %v240, %v261
      %279 = vset.pattern.permute.xlu0 1
      %280 = vperm.xlu0 %279, %v257
      %v281 = vpop.permute.xlu0 %280
      %v283 = vadd.f32 %v263, %v281
      %v284 = vadd.f32 %v264, %v281
      %v285 = vadd.f32 %v265, %v281
      %v286 = vadd.f32 %v266, %v281
      %v287 = vadd.f32 %v267, %v281
      %v288 = vadd.f32 %v268, %v281
      %v289 = vadd.f32 %v269, %v281
      %v290 = vadd.f32 %v270, %v281
      %v291 = vadd.f32 %v271, %v281
      %v292 = vadd.f32 %v272, %v281
      %v293 = vadd.f32 %v273, %v281
      %v294 = vadd.f32 %v274, %v281
      %v295 = vadd.f32 %v275, %v281
      %v296 = vadd.f32 %v276, %v281
      %v297 = vadd.f32 %v277, %v281
      %v298 = vadd.f32 %v278, %v281
      %vm299 = vcmp.ge.f32.partialorder %v283, 0.0
      %vm300 = vcmp.ge.f32.partialorder %v284, 0.0
      %vm301 = vcmp.ge.f32.partialorder %v285, 0.0
      %vm302 = vcmp.ge.f32.partialorder %v286, 0.0
      %vm303 = vcmp.ge.f32.partialorder %v287, 0.0
      %vm304 = vcmp.ge.f32.partialorder %v288, 0.0
      %vm305 = vcmp.ge.f32.partialorder %v289, 0.0
      %vm306 = vcmp.ge.f32.partialorder %v290, 0.0
      %vm307 = vcmp.ge.f32.partialorder %v291, 0.0
      %vm308 = vcmp.ge.f32.partialorder %v292, 0.0
      %vm309 = vcmp.ge.f32.partialorder %v293, 0.0
      %vm310 = vcmp.ge.f32.partialorder %v294, 0.0
      %vm311 = vcmp.ge.f32.partialorder %v295, 0.0
      %vm312 = vcmp.ge.f32.partialorder %v296, 0.0
      %vm313 = vcmp.ge.f32.partialorder %v297, 0.0
      %vm314 = vcmp.ge.f32.partialorder %v298, 0.0
      %v315 = vmul.f32 %v283, 0.01
      %v316 = vmul.f32 %v284, 0.01
      %v317 = vmul.f32 %v285, 0.01
      %v318 = vmul.f32 %v286, 0.01
      %v319 = vmul.f32 %v287, 0.01
      %v320 = vmul.f32 %v288, 0.01
      %v321 = vmul.f32 %v289, 0.01
      %v322 = vmul.f32 %v290, 0.01
      %v323 = vmul.f32 %v291, 0.01
      %v324 = vmul.f32 %v292, 0.01
      %v325 = vmul.f32 %v293, 0.01
      %v326 = vmul.f32 %v294, 0.01
      %v327 = vmul.f32 %v295, 0.01
      %v328 = vmul.f32 %v296, 0.01
      %v329 = vmul.f32 %v297, 0.01
      %v330 = vmul.f32 %v298, 0.01
      %v331 = vsel %vm299, %v283, %v315
      %v332 = vsel %vm300, %v284, %v316
      %v333 = vsel %vm301, %v285, %v317
      %v334 = vsel %vm302, %v286, %v318
      %v335 = vsel %vm303, %v287, %v319
      %v336 = vsel %vm304, %v288, %v320
      %v337 = vsel %vm305, %v289, %v321
      %v338 = vsel %vm306, %v290, %v322
      %v339 = vsel %vm307, %v291, %v323
      %v340 = vsel %vm308, %v292, %v324
      %v341 = vsel %vm309, %v293, %v325
      %v342 = vsel %vm310, %v294, %v326
      %v343 = vsel %vm311, %v295, %v327
      %v344 = vsel %vm312, %v296, %v328
      %v345 = vsel %vm313, %v297, %v329
      %v346 = vsel %vm314, %v298, %v330
      %v347 = vld [vmem:[%s2] sm:$0xff]
      %349 = vset.pattern.permute.xlu0 8
      %350 = vperm.xlu0 %349, %v347
      %v351 = vpop.permute.xlu0 %350
      %vm353 = vcmask 64512
      %v354 = vsel %vm353, %v347, 0
      %356 = vmatprep.subr.mxu0 %v332
      %357 = vmatpush1.msra.mxu0 %v331
      %358 = vmatprep.subr.mxu0 0.0
      %359 = vmatpush1.msra.mxu0 0.0
      %360 = vmatprep.subr.mxu0 0.0
      %361 = vmatpush1.msra.mxu0 0.0
      %362 = vmatprep.subr.mxu0 0.0
      %363 = vmatpush1.msra.mxu0 0.0
      %364 = vmatprep.subr.mxu0 0.0
      %365 = vmatpush1.msra.mxu0 0.0
      %366 = vmatprep.subr.mxu0 0.0
      %367 = vmatpush1.msra.mxu0 0.0
      %368 = vmatprep.subr.mxu0 0.0
      %369 = vmatpush1.msra.mxu0 0.0
      %370 = vmatprep.subr.mxu0 0.0
      %371 = vmatpush1.msra.mxu0 0.0
      %372 = vmatprep.subr.mxu0 0.0
      %373 = vmatpush1.msra.mxu0 0.0
      %374 = vmatprep.subr.mxu0 0.0
      %375 = vmatpush1.msra.mxu0 0.0
      %376 = vmatprep.subr.mxu0 0.0
      %377 = vmatpush1.msra.mxu0 0.0
      %378 = vmatprep.subr.mxu0 0.0
      %379 = vmatpush1.msra.mxu0 0.0
      %380 = vmatprep.subr.mxu0 0.0
      %381 = vmatpush1.msra.mxu0 0.0
      %382 = vmatprep.subr.mxu0 0.0
      %383 = vmatpush1.msra.mxu0 0.0
      %384 = vmatprep.subr.mxu0 0.0
      %385 = vmatpush1.msra.mxu0 0.0
      %386 = vmatprep.subr.mxu0 0.0
      %387 = vmatpush1.msra.mxu0 0.0
      %388 = vmatprep.subr.mxu0 0.0
      %389 = vmatpush1.msra.mxu0 0.0
      %390 = vmatprep.subr.mxu0 0.0
      %391 = vmatpush1.msra.mxu0 0.0
      %392 = vmatprep.subr.mxu0 0.0
      %393 = vmatpush1.msra.mxu0 0.0
      %394 = vmatprep.subr.mxu0 0.0
      %395 = vmatpush1.msra.mxu0 0.0
      %396 = vmatprep.subr.mxu0 0.0
      %397 = vmatpush1.msra.mxu0 0.0
      %398 = vmatprep.subr.mxu0 0.0
      %399 = vmatpush1.msra.mxu0 0.0
      %400 = vmatprep.subr.mxu0 0.0
      %401 = vmatpush1.msra.mxu0 0.0
      %402 = vmatprep.subr.mxu0 0.0
      %403 = vmatpush1.msra.mxu0 0.0
      %404 = vmatprep.subr.mxu0 0.0
      %405 = vmatpush1.msra.mxu0 0.0
      %406 = vmatprep.subr.mxu0 0.0
      %407 = vmatpush1.msra.mxu0 0.0
      %408 = vmatprep.subr.mxu0 0.0
      %409 = vmatpush1.msra.mxu0 0.0
      %410 = vmatprep.subr.mxu0 0.0
      %411 = vmatpush1.msra.mxu0 0.0
      %412 = vmatprep.subr.mxu0 0.0
      %413 = vmatpush1.msra.mxu0 0.0
      %414 = vmatprep.subr.mxu0 0.0
      %415 = vmatpush1.msra.mxu0 0.0
      %416 = vmatprep.subr.mxu0 0.0
      %417 = vmatpush1.msra.mxu0 0.0
      %418 = vmatprep.subr.mxu0 0.0
      %419 = vmatpush1.msra.mxu0 0.0
      %420 = vmatprep.mubr.f32.mxu0 0.0
      %421 = vmatmul.mubr.f32.gmra.mrb[0].mxu0 %v354
      %v422 = vpop.f32.mrb[0].mxu0
      %v423 = vadd.f32 %v351, %v422
      %v424 = vpop.f32.mrb[0].mxu0
      %v425 = vadd.f32 %v351, %v424
      %426 = vdwg.mxu0
      %427 = vmatprep.subr.mxu0 %v334
      %428 = vmatpush1.msra.mxu0 %v333
      %429 = vmatprep.subr.mxu0 0.0
      %430 = vmatpush1.msra.mxu0 0.0
      %431 = vmatprep.subr.mxu0 0.0
      %432 = vmatpush1.msra.mxu0 0.0
      %433 = vmatprep.subr.mxu0 0.0
      %434 = vmatpush1.msra.mxu0 0.0
      %435 = vmatprep.subr.mxu0 0.0
      %436 = vmatpush1.msra.mxu0 0.0
      %437 = vmatprep.subr.mxu0 0.0
      %438 = vmatpush1.msra.mxu0 0.0
      %439 = vmatprep.subr.mxu0 0.0
      %440 = vmatpush1.msra.mxu0 0.0
      %441 = vmatprep.subr.mxu0 0.0
      %442 = vmatpush1.msra.mxu0 0.0
      %443 = vmatprep.subr.mxu0 0.0
      %444 = vmatpush1.msra.mxu0 0.0
      %445 = vmatprep.subr.mxu0 0.0
      %446 = vmatpush1.msra.mxu0 0.0
      %447 = vmatprep.subr.mxu0 0.0
      %448 = vmatpush1.msra.mxu0 0.0
      %449 = vmatprep.subr.mxu0 0.0
      %450 = vmatpush1.msra.mxu0 0.0
      %451 = vmatprep.subr.mxu0 0.0
      %452 = vmatpush1.msra.mxu0 0.0
      %453 = vmatprep.subr.mxu0 0.0
      %454 = vmatpush1.msra.mxu0 0.0
      %455 = vmatprep.subr.mxu0 0.0
      %456 = vmatpush1.msra.mxu0 0.0
      %457 = vmatprep.subr.mxu0 0.0
      %458 = vmatpush1.msra.mxu0 0.0
      %459 = vmatprep.subr.mxu0 0.0
      %460 = vmatpush1.msra.mxu0 0.0
      %461 = vmatprep.subr.mxu0 0.0
      %462 = vmatpush1.msra.mxu0 0.0
      %463 = vmatprep.subr.mxu0 0.0
      %464 = vmatpush1.msra.mxu0 0.0
      %465 = vmatprep.subr.mxu0 0.0
      %466 = vmatpush1.msra.mxu0 0.0
      %467 = vmatprep.subr.mxu0 0.0
      %468 = vmatpush1.msra.mxu0 0.0
      %469 = vmatprep.subr.mxu0 0.0
      %470 = vmatpush1.msra.mxu0 0.0
      %471 = vmatprep.subr.mxu0 0.0
      %472 = vmatpush1.msra.mxu0 0.0
      %473 = vmatprep.subr.mxu0 0.0
      %474 = vmatpush1.msra.mxu0 0.0
      %475 = vmatprep.subr.mxu0 0.0
      %476 = vmatpush1.msra.mxu0 0.0
      %477 = vmatprep.subr.mxu0 0.0
      %478 = vmatpush1.msra.mxu0 0.0
      %479 = vmatprep.subr.mxu0 0.0
      %480 = vmatpush1.msra.mxu0 0.0
      %481 = vmatprep.subr.mxu0 0.0
      %482 = vmatpush1.msra.mxu0 0.0
      %483 = vmatprep.subr.mxu0 0.0
      %484 = vmatpush1.msra.mxu0 0.0
      %485 = vmatprep.subr.mxu0 0.0
      %486 = vmatpush1.msra.mxu0 0.0
      %487 = vmatprep.subr.mxu0 0.0
      %488 = vmatpush1.msra.mxu0 0.0
      %489 = vmatprep.subr.mxu0 0.0
      %490 = vmatpush1.msra.mxu0 0.0
      %491 = vmatprep.mubr.f32.mxu0 0.0
      %492 = vmatmul.mubr.f32.gmra.mrb[0].mxu0 %v354
      %v493 = vpop.f32.mrb[0].mxu0
      %v494 = vadd.f32 %v351, %v493
      %v495 = vpop.f32.mrb[0].mxu0
      %v496 = vadd.f32 %v351, %v495
      %497 = vdwg.mxu0
      %498 = vmatprep.subr.mxu0 %v336
      %499 = vmatpush1.msra.mxu0 %v335
      %500 = vmatprep.subr.mxu0 0.0
      %501 = vmatpush1.msra.mxu0 0.0
      %502 = vmatprep.subr.mxu0 0.0
      %503 = vmatpush1.msra.mxu0 0.0
      %504 = vmatprep.subr.mxu0 0.0
      %505 = vmatpush1.msra.mxu0 0.0
      %506 = vmatprep.subr.mxu0 0.0
      %507 = vmatpush1.msra.mxu0 0.0
      %508 = vmatprep.subr.mxu0 0.0
      %509 = vmatpush1.msra.mxu0 0.0
      %510 = vmatprep.subr.mxu0 0.0
      %511 = vmatpush1.msra.mxu0 0.0
      %512 = vmatprep.subr.mxu0 0.0
      %513 = vmatpush1.msra.mxu0 0.0
      %514 = vmatprep.subr.mxu0 0.0
      %515 = vmatpush1.msra.mxu0 0.0
      %516 = vmatprep.subr.mxu0 0.0
      %517 = vmatpush1.msra.mxu0 0.0
      %518 = vmatprep.subr.mxu0 0.0
      %519 = vmatpush1.msra.mxu0 0.0
      %520 = vmatprep.subr.mxu0 0.0
      %521 = vmatpush1.msra.mxu0 0.0
      %522 = vmatprep.subr.mxu0 0.0
      %523 = vmatpush1.msra.mxu0 0.0
      %524 = vmatprep.subr.mxu0 0.0
      %525 = vmatpush1.msra.mxu0 0.0
      %526 = vmatprep.subr.mxu0 0.0
      %527 = vmatpush1.msra.mxu0 0.0
      %528 = vmatprep.subr.mxu0 0.0
      %529 = vmatpush1.msra.mxu0 0.0
      %530 = vmatprep.subr.mxu0 0.0
      %531 = vmatpush1.msra.mxu0 0.0
      %532 = vmatprep.subr.mxu0 0.0
      %533 = vmatpush1.msra.mxu0 0.0
      %534 = vmatprep.subr.mxu0 0.0
      %535 = vmatpush1.msra.mxu0 0.0
      %536 = vmatprep.subr.mxu0 0.0
      %537 = vmatpush1.msra.mxu0 0.0
      %538 = vmatprep.subr.mxu0 0.0
      %539 = vmatpush1.msra.mxu0 0.0
      %540 = vmatprep.subr.mxu0 0.0
      %541 = vmatpush1.msra.mxu0 0.0
      %542 = vmatprep.subr.mxu0 0.0
      %543 = vmatpush1.msra.mxu0 0.0
      %544 = vmatprep.subr.mxu0 0.0
      %545 = vmatpush1.msra.mxu0 0.0
      %546 = vmatprep.subr.mxu0 0.0
      %547 = vmatpush1.msra.mxu0 0.0
      %548 = vmatprep.subr.mxu0 0.0
      %549 = vmatpush1.msra.mxu0 0.0
      %550 = vmatprep.subr.mxu0 0.0
      %551 = vmatpush1.msra.mxu0 0.0
      %552 = vmatprep.subr.mxu0 0.0
      %553 = vmatpush1.msra.mxu0 0.0
      %554 = vmatprep.subr.mxu0 0.0
      %555 = vmatpush1.msra.mxu0 0.0
      %556 = vmatprep.subr.mxu0 0.0
      %557 = vmatpush1.msra.mxu0 0.0
      %558 = vmatprep.subr.mxu0 0.0
      %559 = vmatpush1.msra.mxu0 0.0
      %560 = vmatprep.subr.mxu0 0.0
      %561 = vmatpush1.msra.mxu0 0.0
      %562 = vmatprep.mubr.f32.mxu0 0.0
      %563 = vmatmul.mubr.f32.gmra.mrb[0].mxu0 %v354
      %v564 = vpop.f32.mrb[0].mxu0
      %v565 = vadd.f32 %v351, %v564
      %v566 = vpop.f32.mrb[0].mxu0
      %v567 = vadd.f32 %v351, %v566
      %568 = vdwg.mxu0
      %569 = vmatprep.subr.mxu0 %v338
      %570 = vmatpush1.msra.mxu0 %v337
      %571 = vmatprep.subr.mxu0 0.0
      %572 = vmatpush1.msra.mxu0 0.0
      %573 = vmatprep.subr.mxu0 0.0
      %574 = vmatpush1.msra.mxu0 0.0
      %575 = vmatprep.subr.mxu0 0.0
      %576 = vmatpush1.msra.mxu0 0.0
      %577 = vmatprep.subr.mxu0 0.0
      %578 = vmatpush1.msra.mxu0 0.0
      %579 = vmatprep.subr.mxu0 0.0
      %580 = vmatpush1.msra.mxu0 0.0
      %581 = vmatprep.subr.mxu0 0.0
      %582 = vmatpush1.msra.mxu0 0.0
      %583 = vmatprep.subr.mxu0 0.0
      %584 = vmatpush1.msra.mxu0 0.0
      %585 = vmatprep.subr.mxu0 0.0
      %586 = vmatpush1.msra.mxu0 0.0
      %587 = vmatprep.subr.mxu0 0.0
      %588 = vmatpush1.msra.mxu0 0.0
      %589 = vmatprep.subr.mxu0 0.0
      %590 = vmatpush1.msra.mxu0 0.0
      %591 = vmatprep.subr.mxu0 0.0
      %592 = vmatpush1.msra.mxu0 0.0
      %593 = vmatprep.subr.mxu0 0.0
      %594 = vmatpush1.msra.mxu0 0.0
      %595 = vmatprep.subr.mxu0 0.0
      %596 = vmatpush1.msra.mxu0 0.0
      %597 = vmatprep.subr.mxu0 0.0
      %598 = vmatpush1.msra.mxu0 0.0
      %599 = vmatprep.subr.mxu0 0.0
      %600 = vmatpush1.msra.mxu0 0.0
      %601 = vmatprep.subr.mxu0 0.0
      %602 = vmatpush1.msra.mxu0 0.0
      %603 = vmatprep.subr.mxu0 0.0
      %604 = vmatpush1.msra.mxu0 0.0
      %605 = vmatprep.subr.mxu0 0.0
      %606 = vmatpush1.msra.mxu0 0.0
      %607 = vmatprep.subr.mxu0 0.0
      %608 = vmatpush1.msra.mxu0 0.0
      %609 = vmatprep.subr.mxu0 0.0
      %610 = vmatpush1.msra.mxu0 0.0
      %611 = vmatprep.subr.mxu0 0.0
      %612 = vmatpush1.msra.mxu0 0.0
      %613 = vmatprep.subr.mxu0 0.0
      %614 = vmatpush1.msra.mxu0 0.0
      %615 = vmatprep.subr.mxu0 0.0
      %616 = vmatpush1.msra.mxu0 0.0
      %617 = vmatprep.subr.mxu0 0.0
      %618 = vmatpush1.msra.mxu0 0.0
      %619 = vmatprep.subr.mxu0 0.0
      %620 = vmatpush1.msra.mxu0 0.0
      %621 = vmatprep.subr.mxu0 0.0
      %622 = vmatpush1.msra.mxu0 0.0
      %623 = vmatprep.subr.mxu0 0.0
      %624 = vmatpush1.msra.mxu0 0.0
      %625 = vmatprep.subr.mxu0 0.0
      %626 = vmatpush1.msra.mxu0 0.0
      %627 = vmatprep.subr.mxu0 0.0
      %628 = vmatpush1.msra.mxu0 0.0
      %629 = vmatprep.subr.mxu0 0.0
      %630 = vmatpush1.msra.mxu0 0.0
      %631 = vmatprep.subr.mxu0 0.0
      %632 = vmatpush1.msra.mxu0 0.0
      %633 = vmatprep.mubr.f32.mxu0 0.0
      %634 = vmatmul.mubr.f32.gmra.mrb[0].mxu0 %v354
      %v635 = vpop.f32.mrb[0].mxu0
      %v636 = vadd.f32 %v351, %v635
      %v637 = vpop.f32.mrb[0].mxu0
      %v638 = vadd.f32 %v351, %v637
      %639 = vdwg.mxu0
      %640 = vmatprep.subr.mxu0 %v340
      %641 = vmatpush1.msra.mxu0 %v339
      %642 = vmatprep.subr.mxu0 0.0
      %643 = vmatpush1.msra.mxu0 0.0
      %644 = vmatprep.subr.mxu0 0.0
      %645 = vmatpush1.msra.mxu0 0.0
      %646 = vmatprep.subr.mxu0 0.0
      %647 = vmatpush1.msra.mxu0 0.0
      %648 = vmatprep.subr.mxu0 0.0
      %649 = vmatpush1.msra.mxu0 0.0
      %650 = vmatprep.subr.mxu0 0.0
      %651 = vmatpush1.msra.mxu0 0.0
      %652 = vmatprep.subr.mxu0 0.0
      %653 = vmatpush1.msra.mxu0 0.0
      %654 = vmatprep.subr.mxu0 0.0
      %655 = vmatpush1.msra.mxu0 0.0
      %656 = vmatprep.subr.mxu0 0.0
      %657 = vmatpush1.msra.mxu0 0.0
      %658 = vmatprep.subr.mxu0 0.0
      %659 = vmatpush1.msra.mxu0 0.0
      %660 = vmatprep.subr.mxu0 0.0
      %661 = vmatpush1.msra.mxu0 0.0
      %662 = vmatprep.subr.mxu0 0.0
      %663 = vmatpush1.msra.mxu0 0.0
      %664 = vmatprep.subr.mxu0 0.0
      %665 = vmatpush1.msra.mxu0 0.0
      %666 = vmatprep.subr.mxu0 0.0
      %667 = vmatpush1.msra.mxu0 0.0
      %668 = vmatprep.subr.mxu0 0.0
      %669 = vmatpush1.msra.mxu0 0.0
      %670 = vmatprep.subr.mxu0 0.0
      %671 = vmatpush1.msra.mxu0 0.0
      %672 = vmatprep.subr.mxu0 0.0
      %673 = vmatpush1.msra.mxu0 0.0
      %674 = vmatprep.subr.mxu0 0.0
      %675 = vmatpush1.msra.mxu0 0.0
      %676 = vmatprep.subr.mxu0 0.0
      %677 = vmatpush1.msra.mxu0 0.0
      %678 = vmatprep.subr.mxu0 0.0
      %679 = vmatpush1.msra.mxu0 0.0
      %680 = vmatprep.subr.mxu0 0.0
      %681 = vmatpush1.msra.mxu0 0.0
      %682 = vmatprep.subr.mxu0 0.0
      %683 = vmatpush1.msra.mxu0 0.0
      %684 = vmatprep.subr.mxu0 0.0
      %685 = vmatpush1.msra.mxu0 0.0
      %686 = vmatprep.subr.mxu0 0.0
      %687 = vmatpush1.msra.mxu0 0.0
      %688 = vmatprep.subr.mxu0 0.0
      %689 = vmatpush1.msra.mxu0 0.0
      %690 = vmatprep.subr.mxu0 0.0
      %691 = vmatpush1.msra.mxu0 0.0
      %692 = vmatprep.subr.mxu0 0.0
      %693 = vmatpush1.msra.mxu0 0.0
      %694 = vmatprep.subr.mxu0 0.0
      %695 = vmatpush1.msra.mxu0 0.0
      %696 = vmatprep.subr.mxu0 0.0
      %697 = vmatpush1.msra.mxu0 0.0
      %698 = vmatprep.subr.mxu0 0.0
      %699 = vmatpush1.msra.mxu0 0.0
      %700 = vmatprep.subr.mxu0 0.0
      %701 = vmatpush1.msra.mxu0 0.0
      %702 = vmatprep.subr.mxu0 0.0
      %703 = vmatpush1.msra.mxu0 0.0
      %704 = vmatprep.mubr.f32.mxu0 0.0
      %705 = vmatmul.mubr.f32.gmra.mrb[0].mxu0 %v354
      %v706 = vpop.f32.mrb[0].mxu0
      %v707 = vadd.f32 %v351, %v706
      %v708 = vpop.f32.mrb[0].mxu0
      %v709 = vadd.f32 %v351, %v708
      %710 = vdwg.mxu0
      %711 = vmatprep.subr.mxu0 %v342
      %712 = vmatpush1.msra.mxu0 %v341
      %713 = vmatprep.subr.mxu0 0.0
      %714 = vmatpush1.msra.mxu0 0.0
      %715 = vmatprep.subr.mxu0 0.0
      %716 = vmatpush1.msra.mxu0 0.0
      %717 = vmatprep.subr.mxu0 0.0
      %718 = vmatpush1.msra.mxu0 0.0
      %719 = vmatprep.subr.mxu0 0.0
      %720 = vmatpush1.msra.mxu0 0.0
      %721 = vmatprep.subr.mxu0 0.0
      %722 = vmatpush1.msra.mxu0 0.0
      %723 = vmatprep.subr.mxu0 0.0
      %724 = vmatpush1.msra.mxu0 0.0
      %725 = vmatprep.subr.mxu0 0.0
      %726 = vmatpush1.msra.mxu0 0.0
      %727 = vmatprep.subr.mxu0 0.0
      %728 = vmatpush1.msra.mxu0 0.0
      %729 = vmatprep.subr.mxu0 0.0
      %730 = vmatpush1.msra.mxu0 0.0
      %731 = vmatprep.subr.mxu0 0.0
      %732 = vmatpush1.msra.mxu0 0.0
      %733 = vmatprep.subr.mxu0 0.0
      %734 = vmatpush1.msra.mxu0 0.0
      %735 = vmatprep.subr.mxu0 0.0
      %736 = vmatpush1.msra.mxu0 0.0
      %737 = vmatprep.subr.mxu0 0.0
      %738 = vmatpush1.msra.mxu0 0.0
      %739 = vmatprep.subr.mxu0 0.0
      %740 = vmatpush1.msra.mxu0 0.0
      %741 = vmatprep.subr.mxu0 0.0
      %742 = vmatpush1.msra.mxu0 0.0
      %743 = vmatprep.subr.mxu0 0.0
      %744 = vmatpush1.msra.mxu0 0.0
      %745 = vmatprep.subr.mxu0 0.0
      %746 = vmatpush1.msra.mxu0 0.0
      %747 = vmatprep.subr.mxu0 0.0
      %748 = vmatpush1.msra.mxu0 0.0
      %749 = vmatprep.subr.mxu0 0.0
      %750 = vmatpush1.msra.mxu0 0.0
      %751 = vmatprep.subr.mxu0 0.0
      %752 = vmatpush1.msra.mxu0 0.0
      %753 = vmatprep.subr.mxu0 0.0
      %754 = vmatpush1.msra.mxu0 0.0
      %755 = vmatprep.subr.mxu0 0.0
      %756 = vmatpush1.msra.mxu0 0.0
      %757 = vmatprep.subr.mxu0 0.0
      %758 = vmatpush1.msra.mxu0 0.0
      %759 = vmatprep.subr.mxu0 0.0
      %760 = vmatpush1.msra.mxu0 0.0
      %761 = vmatprep.subr.mxu0 0.0
      %762 = vmatpush1.msra.mxu0 0.0
      %763 = vmatprep.subr.mxu0 0.0
      %764 = vmatpush1.msra.mxu0 0.0
      %765 = vmatprep.subr.mxu0 0.0
      %766 = vmatpush1.msra.mxu0 0.0
      %767 = vmatprep.subr.mxu0 0.0
      %768 = vmatpush1.msra.mxu0 0.0
      %769 = vmatprep.subr.mxu0 0.0
      %770 = vmatpush1.msra.mxu0 0.0
      %771 = vmatprep.subr.mxu0 0.0
      %772 = vmatpush1.msra.mxu0 0.0
      %773 = vmatprep.subr.mxu0 0.0
      %774 = vmatpush1.msra.mxu0 0.0
      %775 = vmatprep.mubr.f32.mxu0 0.0
      %776 = vmatmul.mubr.f32.gmra.mrb[0].mxu0 %v354
      %v777 = vpop.f32.mrb[0].mxu0
      %v778 = vadd.f32 %v351, %v777
      %v779 = vpop.f32.mrb[0].mxu0
      %v780 = vadd.f32 %v351, %v779
      %781 = vdwg.mxu0
      %782 = vmatprep.subr.mxu0 %v344
      %783 = vmatpush1.msra.mxu0 %v343
      %784 = vmatprep.subr.mxu0 0.0
      %785 = vmatpush1.msra.mxu0 0.0
      %786 = vmatprep.subr.mxu0 0.0
      %787 = vmatpush1.msra.mxu0 0.0
      %788 = vmatprep.subr.mxu0 0.0
      %789 = vmatpush1.msra.mxu0 0.0
      %790 = vmatprep.subr.mxu0 0.0
      %791 = vmatpush1.msra.mxu0 0.0
      %792 = vmatprep.subr.mxu0 0.0
      %793 = vmatpush1.msra.mxu0 0.0
      %794 = vmatprep.subr.mxu0 0.0
      %795 = vmatpush1.msra.mxu0 0.0
      %796 = vmatprep.subr.mxu0 0.0
      %797 = vmatpush1.msra.mxu0 0.0
      %798 = vmatprep.subr.mxu0 0.0
      %799 = vmatpush1.msra.mxu0 0.0
      %800 = vmatprep.subr.mxu0 0.0
      %801 = vmatpush1.msra.mxu0 0.0
      %802 = vmatprep.subr.mxu0 0.0
      %803 = vmatpush1.msra.mxu0 0.0
      %804 = vmatprep.subr.mxu0 0.0
      %805 = vmatpush1.msra.mxu0 0.0
      %806 = vmatprep.subr.mxu0 0.0
      %807 = vmatpush1.msra.mxu0 0.0
      %808 = vmatprep.subr.mxu0 0.0
      %809 = vmatpush1.msra.mxu0 0.0
      %810 = vmatprep.subr.mxu0 0.0
      %811 = vmatpush1.msra.mxu0 0.0
      %812 = vmatprep.subr.mxu0 0.0
      %813 = vmatpush1.msra.mxu0 0.0
      %814 = vmatprep.subr.mxu0 0.0
      %815 = vmatpush1.msra.mxu0 0.0
      %816 = vmatprep.subr.mxu0 0.0
      %817 = vmatpush1.msra.mxu0 0.0
      %818 = vmatprep.subr.mxu0 0.0
      %819 = vmatpush1.msra.mxu0 0.0
      %820 = vmatprep.subr.mxu0 0.0
      %821 = vmatpush1.msra.mxu0 0.0
      %822 = vmatprep.subr.mxu0 0.0
      %823 = vmatpush1.msra.mxu0 0.0
      %824 = vmatprep.subr.mxu0 0.0
      %825 = vmatpush1.msra.mxu0 0.0
      %826 = vmatprep.subr.mxu0 0.0
      %827 = vmatpush1.msra.mxu0 0.0
      %828 = vmatprep.subr.mxu0 0.0
      %829 = vmatpush1.msra.mxu0 0.0
      %830 = vmatprep.subr.mxu0 0.0
      %831 = vmatpush1.msra.mxu0 0.0
      %832 = vmatprep.subr.mxu0 0.0
      %833 = vmatpush1.msra.mxu0 0.0
      %834 = vmatprep.subr.mxu0 0.0
      %835 = vmatpush1.msra.mxu0 0.0
      %836 = vmatprep.subr.mxu0 0.0
      %837 = vmatpush1.msra.mxu0 0.0
      %838 = vmatprep.subr.mxu0 0.0
      %839 = vmatpush1.msra.mxu0 0.0
      %840 = vmatprep.subr.mxu0 0.0
      %841 = vmatpush1.msra.mxu0 0.0
      %842 = vmatprep.subr.mxu0 0.0
      %843 = vmatpush1.msra.mxu0 0.0
      %844 = vmatprep.subr.mxu0 0.0
      %845 = vmatpush1.msra.mxu0 0.0
      %846 = vmatprep.mubr.f32.mxu0 0.0
      %847 = vmatmul.mubr.f32.gmra.mrb[0].mxu0 %v354
      %v848 = vpop.f32.mrb[0].mxu0
      %v849 = vadd.f32 %v351, %v848
      %v850 = vpop.f32.mrb[0].mxu0
      %v851 = vadd.f32 %v351, %v850
      %852 = vdwg.mxu0
      %853 = vmatprep.subr.mxu0 %v346
      %854 = vmatpush1.msra.mxu0 %v345
      %855 = vmatprep.subr.mxu0 0.0
      %856 = vmatpush1.msra.mxu0 0.0
      %857 = vmatprep.subr.mxu0 0.0
      %858 = vmatpush1.msra.mxu0 0.0
      %859 = vmatprep.subr.mxu0 0.0
      %860 = vmatpush1.msra.mxu0 0.0
      %861 = vmatprep.subr.mxu0 0.0
      %862 = vmatpush1.msra.mxu0 0.0
      %863 = vmatprep.subr.mxu0 0.0
      %864 = vmatpush1.msra.mxu0 0.0
      %865 = vmatprep.subr.mxu0 0.0
      %866 = vmatpush1.msra.mxu0 0.0
      %867 = vmatprep.subr.mxu0 0.0
      %868 = vmatpush1.msra.mxu0 0.0
      %869 = vmatprep.subr.mxu0 0.0
      %870 = vmatpush1.msra.mxu0 0.0
      %871 = vmatprep.subr.mxu0 0.0
      %872 = vmatpush1.msra.mxu0 0.0
      %873 = vmatprep.subr.mxu0 0.0
      %874 = vmatpush1.msra.mxu0 0.0
      %875 = vmatprep.subr.mxu0 0.0
      %876 = vmatpush1.msra.mxu0 0.0
      %877 = vmatprep.subr.mxu0 0.0
      %878 = vmatpush1.msra.mxu0 0.0
      %879 = vmatprep.subr.mxu0 0.0
      %880 = vmatpush1.msra.mxu0 0.0
      %881 = vmatprep.subr.mxu0 0.0
      %882 = vmatpush1.msra.mxu0 0.0
      %883 = vmatprep.subr.mxu0 0.0
      %884 = vmatpush1.msra.mxu0 0.0
      %885 = vmatprep.subr.mxu0 0.0
      %886 = vmatpush1.msra.mxu0 0.0
      %887 = vmatprep.subr.mxu0 0.0
      %888 = vmatpush1.msra.mxu0 0.0
      %889 = vmatprep.subr.mxu0 0.0
      %890 = vmatpush1.msra.mxu0 0.0
      %891 = vmatprep.subr.mxu0 0.0
      %892 = vmatpush1.msra.mxu0 0.0
      %893 = vmatprep.subr.mxu0 0.0
      %894 = vmatpush1.msra.mxu0 0.0
      %895 = vmatprep.subr.mxu0 0.0
      %896 = vmatpush1.msra.mxu0 0.0
      %897 = vmatprep.subr.mxu0 0.0
      %898 = vmatpush1.msra.mxu0 0.0
      %899 = vmatprep.subr.mxu0 0.0
      %900 = vmatpush1.msra.mxu0 0.0
      %901 = vmatprep.subr.mxu0 0.0
      %902 = vmatpush1.msra.mxu0 0.0
      %903 = vmatprep.subr.mxu0 0.0
      %904 = vmatpush1.msra.mxu0 0.0
      %905 = vmatprep.subr.mxu0 0.0
      %906 = vmatpush1.msra.mxu0 0.0
      %907 = vmatprep.subr.mxu0 0.0
      %908 = vmatpush1.msra.mxu0 0.0
      %909 = vmatprep.subr.mxu0 0.0
      %910 = vmatpush1.msra.mxu0 0.0
      %911 = vmatprep.subr.mxu0 0.0
      %912 = vmatpush1.msra.mxu0 0.0
      %913 = vmatprep.subr.mxu0 0.0
      %914 = vmatpush1.msra.mxu0 0.0
      %915 = vmatprep.subr.mxu0 0.0
      %916 = vmatpush1.msra.mxu0 0.0
      %917 = vmatprep.mubr.f32.mxu0 0.0
      %918 = vmatmul.mubr.f32.gmra.mrb[0].mxu0 %v354
      %v919 = vpop.f32.mrb[0].mxu0
      %v920 = vadd.f32 %v351, %v919
      %v921 = vpop.f32.mrb[0].mxu0
      %v922 = vadd.f32 %v351, %v921
      %923 = vdwg.mxu0
      %vm924 = vcmp.ge.f32.partialorder %v423, 0.0
      %vm925 = vcmp.ge.f32.partialorder %v425, 0.0
      %vm926 = vcmp.ge.f32.partialorder %v494, 0.0
      %vm927 = vcmp.ge.f32.partialorder %v496, 0.0
      %vm928 = vcmp.ge.f32.partialorder %v565, 0.0
      %vm929 = vcmp.ge.f32.partialorder %v567, 0.0
      %vm930 = vcmp.ge.f32.partialorder %v636, 0.0
      %vm931 = vcmp.ge.f32.partialorder %v638, 0.0
      %vm932 = vcmp.ge.f32.partialorder %v707, 0.0
      %vm933 = vcmp.ge.f32.partialorder %v709, 0.0
      %vm934 = vcmp.ge.f32.partialorder %v778, 0.0
      %vm935 = vcmp.ge.f32.partialorder %v780, 0.0
      %vm936 = vcmp.ge.f32.partialorder %v849, 0.0
      %vm937 = vcmp.ge.f32.partialorder %v851, 0.0
      %vm938 = vcmp.ge.f32.partialorder %v920, 0.0
      %vm939 = vcmp.ge.f32.partialorder %v922, 0.0
      %v940 = vmul.f32 %v423, 0.01
      %v941 = vmul.f32 %v425, 0.01
      %v942 = vmul.f32 %v494, 0.01
      %v943 = vmul.f32 %v496, 0.01
      %v944 = vmul.f32 %v565, 0.01
      %v945 = vmul.f32 %v567, 0.01
      %v946 = vmul.f32 %v636, 0.01
      %v947 = vmul.f32 %v638, 0.01
      %v948 = vmul.f32 %v707, 0.01
      %v949 = vmul.f32 %v709, 0.01
      %v950 = vmul.f32 %v778, 0.01
      %v951 = vmul.f32 %v780, 0.01
      %v952 = vmul.f32 %v849, 0.01
      %v953 = vmul.f32 %v851, 0.01
      %v954 = vmul.f32 %v920, 0.01
      %v955 = vmul.f32 %v922, 0.01
      %v956 = vsel %vm924, %v423, %v940
      %v957 = vsel %vm925, %v425, %v941
      %v958 = vsel %vm926, %v494, %v942
      %v959 = vsel %vm927, %v496, %v943
      %v960 = vsel %vm928, %v565, %v944
      %v961 = vsel %vm929, %v567, %v945
      %v962 = vsel %vm930, %v636, %v946
      %v963 = vsel %vm931, %v638, %v947
      %v964 = vsel %vm932, %v707, %v948
      %v965 = vsel %vm933, %v709, %v949
      %v966 = vsel %vm934, %v778, %v950
      %v967 = vsel %vm935, %v780, %v951
      %v968 = vsel %vm936, %v849, %v952
      %v969 = vsel %vm937, %v851, %v953
      %v970 = vsel %vm938, %v920, %v954
      %v971 = vsel %vm939, %v922, %v955
      %972 = vst [vmem:[#allocation2] sm:$0xff] 0.0
      %973 = vst [vmem:[#allocation2 + $0x8] sm:$0xff] 0.0
      %974 = vst [vmem:[#allocation2 + $0x10] sm:$0xff] 0.0
      %975 = vst [vmem:[#allocation2 + $0x18] sm:$0xff] 0.0
      %976 = vst [vmem:[#allocation2 + $0x20] sm:$0xff] 0.0
      %977 = vst [vmem:[#allocation2 + $0x28] sm:$0xff] 0.0
      %978 = vst [vmem:[#allocation2 + $0x30] sm:$0xff] 0.0
      %979 = vst [vmem:[#allocation2 + $0x38] sm:$0xff] 0.0
      %980 = vst [vmem:[#allocation2 + $0x40] sm:$0xff] 0.0
      %981 = vst [vmem:[#allocation2 + $0x48] sm:$0xff] 0.0
      %982 = vst [vmem:[#allocation2 + $0x50] sm:$0xff] 0.0
      %983 = vst [vmem:[#allocation2 + $0x58] sm:$0xff] 0.0
      %984 = vst [vmem:[#allocation2 + $0x60] sm:$0xff] 0.0
      %985 = vst [vmem:[#allocation2 + $0x68] sm:$0xff] 0.0
      %986 = vst [vmem:[#allocation2 + $0x70] sm:$0xff] 0.0
      %987 = vst [vmem:[#allocation2 + $0x78] sm:$0xff] 0.0
      %988 = vst [vmem:[#allocation2 + $0x80] sm:$0xff] 0.0
      %989 = vst [vmem:[#allocation2 + $0x88] sm:$0xff] 0.0
      %990 = vst [vmem:[#allocation2 + $0x90] sm:$0xff] 0.0
      %991 = vst [vmem:[#allocation2 + $0x98] sm:$0xff] 0.0
      %992 = vst [vmem:[#allocation2 + $0x10] sm:$0xff] %v956
      %993 = vst [vmem:[#allocation2 + $0x18] sm:$0xff] %v957
      %994 = vst [vmem:[#allocation2 + $0x20] sm:$0xff] %v958
      %995 = vst [vmem:[#allocation2 + $0x28] sm:$0xff] %v959
      %996 = vst [vmem:[#allocation2 + $0x30] sm:$0xff] %v960
      %997 = vst [vmem:[#allocation2 + $0x38] sm:$0xff] %v961
      %998 = vst [vmem:[#allocation2 + $0x40] sm:$0xff] %v962
      %999 = vst [vmem:[#allocation2 + $0x48] sm:$0xff] %v963
      %1000 = vst [vmem:[#allocation2 + $0x50] sm:$0xff] %v964
      %1001 = vst [vmem:[#allocation2 + $0x58] sm:$0xff] %v965
      %1002 = vst [vmem:[#allocation2 + $0x60] sm:$0xff] %v966
      %1003 = vst [vmem:[#allocation2 + $0x68] sm:$0xff] %v967
      %1004 = vst [vmem:[#allocation2 + $0x70] sm:$0xff] %v968
      %1005 = vst [vmem:[#allocation2 + $0x78] sm:$0xff] %v969
      %1006 = vst [vmem:[#allocation2 + $0x80] sm:$0xff] %v970
      %1007 = vst [vmem:[#allocation2 + $0x88] sm:$0xff] %v971
      %v1008 = vld [vmem:[%s3] sm:$0xf]
      %v1009 = vld [vmem:[#allocation2] sm:$0xff]
      %v1010 = vld [vmem:[#allocation2 + $0x8] sm:$0xff]
      %v1011 = vld [vmem:[#allocation2 + $0x10] sm:$0xff]
      %v1012 = vld [vmem:[#allocation2 + $0x18] sm:$0xff]
      %v1013 = vld [vmem:[#allocation2 + $0x20] sm:$0xff]
      %v1014 = vld [vmem:[#allocation2 + $0x28] sm:$0xff]
      %v1015 = vld [vmem:[#allocation2 + $0x30] sm:$0xff]
      %v1016 = vld [vmem:[#allocation2 + $0x38] sm:$0xff]
      %v1017 = vld [vmem:[#allocation2 + $0x40] sm:$0xff]
      %v1018 = vld [vmem:[#allocation2 + $0x48] sm:$0xff]
      %v1019 = vld [vmem:[#allocation2 + $0x50] sm:$0xff]
      %v1020 = vld [vmem:[#allocation2 + $0x58] sm:$0xff]
      %v1021 = vld [vmem:[#allocation2 + $0x60] sm:$0xff]
      %v1022 = vld [vmem:[#allocation2 + $0x68] sm:$0xff]
      %v1023 = vld [vmem:[#allocation2 + $0x70] sm:$0xff]
      %v1024 = vld [vmem:[#allocation2 + $0x78] sm:$0xff]
      %s1025 = scalar_lea.vmem %s3, 4
      %v1026 = vld [vmem:[%s1025] sm:$0xf]
      %v1027 = vld [vmem:[#allocation2 + $0x80] sm:$0xff]
      %v1029 = vsel %vm353, %v1026, 0
      %1031 = vmatprep.subr.mxu0 %v1011
      %1032 = vmatpush1.msra.mxu0 %v1010
      %1033 = vmatprep.subr.mxu0 0.0
      %1034 = vmatpush1.msra.mxu0 0.0
      %1035 = vmatprep.subr.mxu0 0.0
      %1036 = vmatpush1.msra.mxu0 0.0
      %1037 = vmatprep.subr.mxu0 0.0
      %1038 = vmatpush1.msra.mxu0 0.0
      %1039 = vmatprep.subr.mxu0 0.0
      %1040 = vmatpush1.msra.mxu0 0.0
      %1041 = vmatprep.subr.mxu0 0.0
      %1042 = vmatpush1.msra.mxu0 0.0
      %1043 = vmatprep.subr.mxu0 0.0
      %1044 = vmatpush1.msra.mxu0 0.0
      %1045 = vmatprep.subr.mxu0 0.0
      %1046 = vmatpush1.msra.mxu0 0.0
      %1047 = vmatprep.subr.mxu0 0.0
      %1048 = vmatpush1.msra.mxu0 0.0
      %1049 = vmatprep.subr.mxu0 0.0
      %1050 = vmatpush1.msra.mxu0 0.0
      %1051 = vmatprep.subr.mxu0 0.0
      %1052 = vmatpush1.msra.mxu0 0.0
      %1053 = vmatprep.subr.mxu0 0.0
      %1054 = vmatpush1.msra.mxu0 0.0
      %1055 = vmatprep.subr.mxu0 0.0
      %1056 = vmatpush1.msra.mxu0 0.0
      %1057 = vmatprep.subr.mxu0 0.0
      %1058 = vmatpush1.msra.mxu0 0.0
      %1059 = vmatprep.subr.mxu0 0.0
      %1060 = vmatpush1.msra.mxu0 0.0
      %1061 = vmatprep.subr.mxu0 0.0
      %1062 = vmatpush1.msra.mxu0 0.0
      %1063 = vmatprep.subr.mxu0 0.0
      %1064 = vmatpush1.msra.mxu0 0.0
      %1065 = vmatprep.subr.mxu0 0.0
      %1066 = vmatpush1.msra.mxu0 0.0
      %1067 = vmatprep.subr.mxu0 0.0
      %1068 = vmatpush1.msra.mxu0 0.0
      %1069 = vmatprep.subr.mxu0 0.0
      %1070 = vmatpush1.msra.mxu0 0.0
      %1071 = vmatprep.subr.mxu0 0.0
      %1072 = vmatpush1.msra.mxu0 0.0
      %1073 = vmatprep.subr.mxu0 0.0
      %1074 = vmatpush1.msra.mxu0 0.0
      %1075 = vmatprep.subr.mxu0 0.0
      %1076 = vmatpush1.msra.mxu0 0.0
      %1077 = vmatprep.subr.mxu0 0.0
      %1078 = vmatpush1.msra.mxu0 0.0
      %1079 = vmatprep.subr.mxu0 0.0
      %1080 = vmatpush1.msra.mxu0 0.0
      %1081 = vmatprep.subr.mxu0 0.0
      %1082 = vmatpush1.msra.mxu0 0.0
      %1083 = vmatprep.subr.mxu0 0.0
      %1084 = vmatpush1.msra.mxu0 0.0
      %1085 = vmatprep.subr.mxu0 0.0
      %1086 = vmatpush1.msra.mxu0 0.0
      %1087 = vmatprep.subr.mxu0 0.0
      %1088 = vmatpush1.msra.mxu0 0.0
      %1089 = vmatprep.subr.mxu0 0.0
      %1090 = vmatpush1.msra.mxu0 0.0
      %1091 = vmatprep.subr.mxu0 0.0
      %1092 = vmatpush1.msra.mxu0 0.0
      %1093 = vmatprep.subr.mxu0 0.0
      %1094 = vmatpush1.msra.mxu0 0.0
      %1095 = vmatprep.mubr.f32.mxu0 0.0
      %1096 = vmatmul.mubr.f32.gmra.mrb[0].mxu0 %v1029
      %v1097 = vpop.f32.mrb[0].mxu0
      %v1098 = vadd.f32 0.0, %v1097
      %v1099 = vpop.f32.mrb[0].mxu0
      %v1100 = vadd.f32 0.0, %v1099
      %1101 = vdwg.mxu0
      %1102 = vmatprep.subr.mxu0 %v1013
      %1103 = vmatpush1.msra.mxu0 %v1012
      %1104 = vmatprep.subr.mxu0 0.0
      %1105 = vmatpush1.msra.mxu0 0.0
      %1106 = vmatprep.subr.mxu0 0.0
      %1107 = vmatpush1.msra.mxu0 0.0
      %1108 = vmatprep.subr.mxu0 0.0
      %1109 = vmatpush1.msra.mxu0 0.0
      %1110 = vmatprep.subr.mxu0 0.0
      %1111 = vmatpush1.msra.mxu0 0.0
      %1112 = vmatprep.subr.mxu0 0.0
      %1113 = vmatpush1.msra.mxu0 0.0
      %1114 = vmatprep.subr.mxu0 0.0
      %1115 = vmatpush1.msra.mxu0 0.0
      %1116 = vmatprep.subr.mxu0 0.0
      %1117 = vmatpush1.msra.mxu0 0.0
      %1118 = vmatprep.subr.mxu0 0.0
      %1119 = vmatpush1.msra.mxu0 0.0
      %1120 = vmatprep.subr.mxu0 0.0
      %1121 = vmatpush1.msra.mxu0 0.0
      %1122 = vmatprep.subr.mxu0 0.0
      %1123 = vmatpush1.msra.mxu0 0.0
      %1124 = vmatprep.subr.mxu0 0.0
      %1125 = vmatpush1.msra.mxu0 0.0
      %1126 = vmatprep.subr.mxu0 0.0
      %1127 = vmatpush1.msra.mxu0 0.0
      %1128 = vmatprep.subr.mxu0 0.0
      %1129 = vmatpush1.msra.mxu0 0.0
      %1130 = vmatprep.subr.mxu0 0.0
      %1131 = vmatpush1.msra.mxu0 0.0
      %1132 = vmatprep.subr.mxu0 0.0
      %1133 = vmatpush1.msra.mxu0 0.0
      %1134 = vmatprep.subr.mxu0 0.0
      %1135 = vmatpush1.msra.mxu0 0.0
      %1136 = vmatprep.subr.mxu0 0.0
      %1137 = vmatpush1.msra.mxu0 0.0
      %1138 = vmatprep.subr.mxu0 0.0
      %1139 = vmatpush1.msra.mxu0 0.0
      %1140 = vmatprep.subr.mxu0 0.0
      %1141 = vmatpush1.msra.mxu0 0.0
      %1142 = vmatprep.subr.mxu0 0.0
      %1143 = vmatpush1.msra.mxu0 0.0
      %1144 = vmatprep.subr.mxu0 0.0
      %1145 = vmatpush1.msra.mxu0 0.0
      %1146 = vmatprep.subr.mxu0 0.0
      %1147 = vmatpush1.msra.mxu0 0.0
      %1148 = vmatprep.subr.mxu0 0.0
      %1149 = vmatpush1.msra.mxu0 0.0
      %1150 = vmatprep.subr.mxu0 0.0
      %1151 = vmatpush1.msra.mxu0 0.0
      %1152 = vmatprep.subr.mxu0 0.0
      %1153 = vmatpush1.msra.mxu0 0.0
      %1154 = vmatprep.subr.mxu0 0.0
      %1155 = vmatpush1.msra.mxu0 0.0
      %1156 = vmatprep.subr.mxu0 0.0
      %1157 = vmatpush1.msra.mxu0 0.0
      %1158 = vmatprep.subr.mxu0 0.0
      %1159 = vmatpush1.msra.mxu0 0.0
      %1160 = vmatprep.subr.mxu0 0.0
      %1161 = vmatpush1.msra.mxu0 0.0
      %1162 = vmatprep.subr.mxu0 0.0
      %1163 = vmatpush1.msra.mxu0 0.0
      %1164 = vmatprep.subr.mxu0 0.0
      %1165 = vmatpush1.msra.mxu0 0.0
      %1166 = vmatprep.mubr.f32.mxu0 0.0
      %1167 = vmatmul.mubr.f32.gmra.mrb[0].mxu0 %v1029
      %v1168 = vpop.f32.mrb[0].mxu0
      %v1169 = vadd.f32 0.0, %v1168
      %v1170 = vpop.f32.mrb[0].mxu0
      %v1171 = vadd.f32 0.0, %v1170
      %1172 = vdwg.mxu0
      %1173 = vmatprep.subr.mxu0 %v1015
      %1174 = vmatpush1.msra.mxu0 %v1014
      %1175 = vmatprep.subr.mxu0 0.0
      %1176 = vmatpush1.msra.mxu0 0.0
      %1177 = vmatprep.subr.mxu0 0.0
      %1178 = vmatpush1.msra.mxu0 0.0
      %1179 = vmatprep.subr.mxu0 0.0
      %1180 = vmatpush1.msra.mxu0 0.0
      %1181 = vmatprep.subr.mxu0 0.0
      %1182 = vmatpush1.msra.mxu0 0.0
      %1183 = vmatprep.subr.mxu0 0.0
      %1184 = vmatpush1.msra.mxu0 0.0
      %1185 = vmatprep.subr.mxu0 0.0
      %1186 = vmatpush1.msra.mxu0 0.0
      %1187 = vmatprep.subr.mxu0 0.0
      %1188 = vmatpush1.msra.mxu0 0.0
      %1189 = vmatprep.subr.mxu0 0.0
      %1190 = vmatpush1.msra.mxu0 0.0
      %1191 = vmatprep.subr.mxu0 0.0
      %1192 = vmatpush1.msra.mxu0 0.0
      %1193 = vmatprep.subr.mxu0 0.0
      %1194 = vmatpush1.msra.mxu0 0.0
      %1195 = vmatprep.subr.mxu0 0.0
      %1196 = vmatpush1.msra.mxu0 0.0
      %1197 = vmatprep.subr.mxu0 0.0
      %1198 = vmatpush1.msra.mxu0 0.0
      %1199 = vmatprep.subr.mxu0 0.0
      %1200 = vmatpush1.msra.mxu0 0.0
      %1201 = vmatprep.subr.mxu0 0.0
      %1202 = vmatpush1.msra.mxu0 0.0
      %1203 = vmatprep.subr.mxu0 0.0
      %1204 = vmatpush1.msra.mxu0 0.0
      %1205 = vmatprep.subr.mxu0 0.0
      %1206 = vmatpush1.msra.mxu0 0.0
      %1207 = vmatprep.subr.mxu0 0.0
      %1208 = vmatpush1.msra.mxu0 0.0
      %1209 = vmatprep.subr.mxu0 0.0
      %1210 = vmatpush1.msra.mxu0 0.0
      %1211 = vmatprep.subr.mxu0 0.0
      %1212 = vmatpush1.msra.mxu0 0.0
      %1213 = vmatprep.subr.mxu0 0.0
      %1214 = vmatpush1.msra.mxu0 0.0
      %1215 = vmatprep.subr.mxu0 0.0
      %1216 = vmatpush1.msra.mxu0 0.0
      %1217 = vmatprep.subr.mxu0 0.0
      %1218 = vmatpush1.msra.mxu0 0.0
      %1219 = vmatprep.subr.mxu0 0.0
      %1220 = vmatpush1.msra.mxu0 0.0
      %1221 = vmatprep.subr.mxu0 0.0
      %1222 = vmatpush1.msra.mxu0 0.0
      %1223 = vmatprep.subr.mxu0 0.0
      %1224 = vmatpush1.msra.mxu0 0.0
      %1225 = vmatprep.subr.mxu0 0.0
      %1226 = vmatpush1.msra.mxu0 0.0
      %1227 = vmatprep.subr.mxu0 0.0
      %1228 = vmatpush1.msra.mxu0 0.0
      %1229 = vmatprep.subr.mxu0 0.0
      %1230 = vmatpush1.msra.mxu0 0.0
      %1231 = vmatprep.subr.mxu0 0.0
      %1232 = vmatpush1.msra.mxu0 0.0
      %1233 = vmatprep.subr.mxu0 0.0
      %1234 = vmatpush1.msra.mxu0 0.0
      %1235 = vmatprep.subr.mxu0 0.0
      %1236 = vmatpush1.msra.mxu0 0.0
      %1237 = vmatprep.mubr.f32.mxu0 0.0
      %1238 = vmatmul.mubr.f32.gmra.mrb[0].mxu0 %v1029
      %v1239 = vpop.f32.mrb[0].mxu0
      %v1240 = vadd.f32 0.0, %v1239
      %v1241 = vpop.f32.mrb[0].mxu0
      %v1242 = vadd.f32 0.0, %v1241
      %1243 = vdwg.mxu0
      %1244 = vmatprep.subr.mxu0 %v1017
      %1245 = vmatpush1.msra.mxu0 %v1016
      %1246 = vmatprep.subr.mxu0 0.0
      %1247 = vmatpush1.msra.mxu0 0.0
      %1248 = vmatprep.subr.mxu0 0.0
      %1249 = vmatpush1.msra.mxu0 0.0
      %1250 = vmatprep.subr.mxu0 0.0
      %1251 = vmatpush1.msra.mxu0 0.0
      %1252 = vmatprep.subr.mxu0 0.0
      %1253 = vmatpush1.msra.mxu0 0.0
      %1254 = vmatprep.subr.mxu0 0.0
      %1255 = vmatpush1.msra.mxu0 0.0
      %1256 = vmatprep.subr.mxu0 0.0
      %1257 = vmatpush1.msra.mxu0 0.0
      %1258 = vmatprep.subr.mxu0 0.0
      %1259 = vmatpush1.msra.mxu0 0.0
      %1260 = vmatprep.subr.mxu0 0.0
      %1261 = vmatpush1.msra.mxu0 0.0
      %1262 = vmatprep.subr.mxu0 0.0
      %1263 = vmatpush1.msra.mxu0 0.0
      %1264 = vmatprep.subr.mxu0 0.0
      %1265 = vmatpush1.msra.mxu0 0.0
      %1266 = vmatprep.subr.mxu0 0.0
      %1267 = vmatpush1.msra.mxu0 0.0
      %1268 = vmatprep.subr.mxu0 0.0
      %1269 = vmatpush1.msra.mxu0 0.0
      %1270 = vmatprep.subr.mxu0 0.0
      %1271 = vmatpush1.msra.mxu0 0.0
      %1272 = vmatprep.subr.mxu0 0.0
      %1273 = vmatpush1.msra.mxu0 0.0
      %1274 = vmatprep.subr.mxu0 0.0
      %1275 = vmatpush1.msra.mxu0 0.0
      %1276 = vmatprep.subr.mxu0 0.0
      %1277 = vmatpush1.msra.mxu0 0.0
      %1278 = vmatprep.subr.mxu0 0.0
      %1279 = vmatpush1.msra.mxu0 0.0
      %1280 = vmatprep.subr.mxu0 0.0
      %1281 = vmatpush1.msra.mxu0 0.0
      %1282 = vmatprep.subr.mxu0 0.0
      %1283 = vmatpush1.msra.mxu0 0.0
      %1284 = vmatprep.subr.mxu0 0.0
      %1285 = vmatpush1.msra.mxu0 0.0
      %1286 = vmatprep.subr.mxu0 0.0
      %1287 = vmatpush1.msra.mxu0 0.0
      %1288 = vmatprep.subr.mxu0 0.0
      %1289 = vmatpush1.msra.mxu0 0.0
      %1290 = vmatprep.subr.mxu0 0.0
      %1291 = vmatpush1.msra.mxu0 0.0
      %1292 = vmatprep.subr.mxu0 0.0
      %1293 = vmatpush1.msra.mxu0 0.0
      %1294 = vmatprep.subr.mxu0 0.0
      %1295 = vmatpush1.msra.mxu0 0.0
      %1296 = vmatprep.subr.mxu0 0.0
      %1297 = vmatpush1.msra.mxu0 0.0
      %1298 = vmatprep.subr.mxu0 0.0
      %1299 = vmatpush1.msra.mxu0 0.0
      %1300 = vmatprep.subr.mxu0 0.0
      %1301 = vmatpush1.msra.mxu0 0.0
      %1302 = vmatprep.subr.mxu0 0.0
      %1303 = vmatpush1.msra.mxu0 0.0
      %1304 = vmatprep.subr.mxu0 0.0
      %1305 = vmatpush1.msra.mxu0 0.0
      %1306 = vmatprep.subr.mxu0 0.0
      %1307 = vmatpush1.msra.mxu0 0.0
      %1308 = vmatprep.mubr.f32.mxu0 0.0
      %1309 = vmatmul.mubr.f32.gmra.mrb[0].mxu0 %v1029
      %v1310 = vpop.f32.mrb[0].mxu0
      %v1311 = vadd.f32 0.0, %v1310
      %v1312 = vpop.f32.mrb[0].mxu0
      %v1313 = vadd.f32 0.0, %v1312
      %1314 = vdwg.mxu0
      %1315 = vmatprep.subr.mxu0 %v1019
      %1316 = vmatpush1.msra.mxu0 %v1018
      %1317 = vmatprep.subr.mxu0 0.0
      %1318 = vmatpush1.msra.mxu0 0.0
      %1319 = vmatprep.subr.mxu0 0.0
      %1320 = vmatpush1.msra.mxu0 0.0
      %1321 = vmatprep.subr.mxu0 0.0
      %1322 = vmatpush1.msra.mxu0 0.0
      %1323 = vmatprep.subr.mxu0 0.0
      %1324 = vmatpush1.msra.mxu0 0.0
      %1325 = vmatprep.subr.mxu0 0.0
      %1326 = vmatpush1.msra.mxu0 0.0
      %1327 = vmatprep.subr.mxu0 0.0
      %1328 = vmatpush1.msra.mxu0 0.0
      %1329 = vmatprep.subr.mxu0 0.0
      %1330 = vmatpush1.msra.mxu0 0.0
      %1331 = vmatprep.subr.mxu0 0.0
      %1332 = vmatpush1.msra.mxu0 0.0
      %1333 = vmatprep.subr.mxu0 0.0
      %1334 = vmatpush1.msra.mxu0 0.0
      %1335 = vmatprep.subr.mxu0 0.0
      %1336 = vmatpush1.msra.mxu0 0.0
      %1337 = vmatprep.subr.mxu0 0.0
      %1338 = vmatpush1.msra.mxu0 0.0
      %1339 = vmatprep.subr.mxu0 0.0
      %1340 = vmatpush1.msra.mxu0 0.0
      %1341 = vmatprep.subr.mxu0 0.0
      %1342 = vmatpush1.msra.mxu0 0.0
      %1343 = vmatprep.subr.mxu0 0.0
      %1344 = vmatpush1.msra.mxu0 0.0
      %1345 = vmatprep.subr.mxu0 0.0
      %1346 = vmatpush1.msra.mxu0 0.0
      %1347 = vmatprep.subr.mxu0 0.0
      %1348 = vmatpush1.msra.mxu0 0.0
      %1349 = vmatprep.subr.mxu0 0.0
      %1350 = vmatpush1.msra.mxu0 0.0
      %1351 = vmatprep.subr.mxu0 0.0
      %1352 = vmatpush1.msra.mxu0 0.0
      %1353 = vmatprep.subr.mxu0 0.0
      %1354 = vmatpush1.msra.mxu0 0.0
      %1355 = vmatprep.subr.mxu0 0.0
      %1356 = vmatpush1.msra.mxu0 0.0
      %1357 = vmatprep.subr.mxu0 0.0
      %1358 = vmatpush1.msra.mxu0 0.0
      %1359 = vmatprep.subr.mxu0 0.0
      %1360 = vmatpush1.msra.mxu0 0.0
      %1361 = vmatprep.subr.mxu0 0.0
      %1362 = vmatpush1.msra.mxu0 0.0
      %1363 = vmatprep.subr.mxu0 0.0
      %1364 = vmatpush1.msra.mxu0 0.0
      %1365 = vmatprep.subr.mxu0 0.0
      %1366 = vmatpush1.msra.mxu0 0.0
      %1367 = vmatprep.subr.mxu0 0.0
      %1368 = vmatpush1.msra.mxu0 0.0
      %1369 = vmatprep.subr.mxu0 0.0
      %1370 = vmatpush1.msra.mxu0 0.0
      %1371 = vmatprep.subr.mxu0 0.0
      %1372 = vmatpush1.msra.mxu0 0.0
      %1373 = vmatprep.subr.mxu0 0.0
      %1374 = vmatpush1.msra.mxu0 0.0
      %1375 = vmatprep.subr.mxu0 0.0
      %1376 = vmatpush1.msra.mxu0 0.0
      %1377 = vmatprep.subr.mxu0 0.0
      %1378 = vmatpush1.msra.mxu0 0.0
      %1379 = vmatprep.mubr.f32.mxu0 0.0
      %1380 = vmatmul.mubr.f32.gmra.mrb[0].mxu0 %v1029
      %v1381 = vpop.f32.mrb[0].mxu0
      %v1382 = vadd.f32 0.0, %v1381
      %v1383 = vpop.f32.mrb[0].mxu0
      %v1384 = vadd.f32 0.0, %v1383
      %1385 = vdwg.mxu0
      %1386 = vmatprep.subr.mxu0 %v1021
      %1387 = vmatpush1.msra.mxu0 %v1020
      %1388 = vmatprep.subr.mxu0 0.0
      %1389 = vmatpush1.msra.mxu0 0.0
      %1390 = vmatprep.subr.mxu0 0.0
      %1391 = vmatpush1.msra.mxu0 0.0
      %1392 = vmatprep.subr.mxu0 0.0
      %1393 = vmatpush1.msra.mxu0 0.0
      %1394 = vmatprep.subr.mxu0 0.0
      %1395 = vmatpush1.msra.mxu0 0.0
      %1396 = vmatprep.subr.mxu0 0.0
      %1397 = vmatpush1.msra.mxu0 0.0
      %1398 = vmatprep.subr.mxu0 0.0
      %1399 = vmatpush1.msra.mxu0 0.0
      %1400 = vmatprep.subr.mxu0 0.0
      %1401 = vmatpush1.msra.mxu0 0.0
      %1402 = vmatprep.subr.mxu0 0.0
      %1403 = vmatpush1.msra.mxu0 0.0
      %1404 = vmatprep.subr.mxu0 0.0
      %1405 = vmatpush1.msra.mxu0 0.0
      %1406 = vmatprep.subr.mxu0 0.0
      %1407 = vmatpush1.msra.mxu0 0.0
      %1408 = vmatprep.subr.mxu0 0.0
      %1409 = vmatpush1.msra.mxu0 0.0
      %1410 = vmatprep.subr.mxu0 0.0
      %1411 = vmatpush1.msra.mxu0 0.0
      %1412 = vmatprep.subr.mxu0 0.0
      %1413 = vmatpush1.msra.mxu0 0.0
      %1414 = vmatprep.subr.mxu0 0.0
      %1415 = vmatpush1.msra.mxu0 0.0
      %1416 = vmatprep.subr.mxu0 0.0
      %1417 = vmatpush1.msra.mxu0 0.0
      %1418 = vmatprep.subr.mxu0 0.0
      %1419 = vmatpush1.msra.mxu0 0.0
      %1420 = vmatprep.subr.mxu0 0.0
      %1421 = vmatpush1.msra.mxu0 0.0
      %1422 = vmatprep.subr.mxu0 0.0
      %1423 = vmatpush1.msra.mxu0 0.0
      %1424 = vmatprep.subr.mxu0 0.0
      %1425 = vmatpush1.msra.mxu0 0.0
      %1426 = vmatprep.subr.mxu0 0.0
      %1427 = vmatpush1.msra.mxu0 0.0
      %1428 = vmatprep.subr.mxu0 0.0
      %1429 = vmatpush1.msra.mxu0 0.0
      %1430 = vmatprep.subr.mxu0 0.0
      %1431 = vmatpush1.msra.mxu0 0.0
      %1432 = vmatprep.subr.mxu0 0.0
      %1433 = vmatpush1.msra.mxu0 0.0
      %1434 = vmatprep.subr.mxu0 0.0
      %1435 = vmatpush1.msra.mxu0 0.0
      %1436 = vmatprep.subr.mxu0 0.0
      %1437 = vmatpush1.msra.mxu0 0.0
      %1438 = vmatprep.subr.mxu0 0.0
      %1439 = vmatpush1.msra.mxu0 0.0
      %1440 = vmatprep.subr.mxu0 0.0
      %1441 = vmatpush1.msra.mxu0 0.0
      %1442 = vmatprep.subr.mxu0 0.0
      %1443 = vmatpush1.msra.mxu0 0.0
      %1444 = vmatprep.subr.mxu0 0.0
      %1445 = vmatpush1.msra.mxu0 0.0
      %1446 = vmatprep.subr.mxu0 0.0
      %1447 = vmatpush1.msra.mxu0 0.0
      %1448 = vmatprep.subr.mxu0 0.0
      %1449 = vmatpush1.msra.mxu0 0.0
      %1450 = vmatprep.mubr.f32.mxu0 0.0
      %1451 = vmatmul.mubr.f32.gmra.mrb[0].mxu0 %v1029
      %v1452 = vpop.f32.mrb[0].mxu0
      %v1453 = vadd.f32 0.0, %v1452
      %v1454 = vpop.f32.mrb[0].mxu0
      %v1455 = vadd.f32 0.0, %v1454
      %1456 = vdwg.mxu0
      %1457 = vmatprep.subr.mxu0 %v1023
      %1458 = vmatpush1.msra.mxu0 %v1022
      %1459 = vmatprep.subr.mxu0 0.0
      %1460 = vmatpush1.msra.mxu0 0.0
      %1461 = vmatprep.subr.mxu0 0.0
      %1462 = vmatpush1.msra.mxu0 0.0
      %1463 = vmatprep.subr.mxu0 0.0
      %1464 = vmatpush1.msra.mxu0 0.0
      %1465 = vmatprep.subr.mxu0 0.0
      %1466 = vmatpush1.msra.mxu0 0.0
      %1467 = vmatprep.subr.mxu0 0.0
      %1468 = vmatpush1.msra.mxu0 0.0
      %1469 = vmatprep.subr.mxu0 0.0
      %1470 = vmatpush1.msra.mxu0 0.0
      %1471 = vmatprep.subr.mxu0 0.0
      %1472 = vmatpush1.msra.mxu0 0.0
      %1473 = vmatprep.subr.mxu0 0.0
      %1474 = vmatpush1.msra.mxu0 0.0
      %1475 = vmatprep.subr.mxu0 0.0
      %1476 = vmatpush1.msra.mxu0 0.0
      %1477 = vmatprep.subr.mxu0 0.0
      %1478 = vmatpush1.msra.mxu0 0.0
      %1479 = vmatprep.subr.mxu0 0.0
      %1480 = vmatpush1.msra.mxu0 0.0
      %1481 = vmatprep.subr.mxu0 0.0
      %1482 = vmatpush1.msra.mxu0 0.0
      %1483 = vmatprep.subr.mxu0 0.0
      %1484 = vmatpush1.msra.mxu0 0.0
      %1485 = vmatprep.subr.mxu0 0.0
      %1486 = vmatpush1.msra.mxu0 0.0
      %1487 = vmatprep.subr.mxu0 0.0
      %1488 = vmatpush1.msra.mxu0 0.0
      %1489 = vmatprep.subr.mxu0 0.0
      %1490 = vmatpush1.msra.mxu0 0.0
      %1491 = vmatprep.subr.mxu0 0.0
      %1492 = vmatpush1.msra.mxu0 0.0
      %1493 = vmatprep.subr.mxu0 0.0
      %1494 = vmatpush1.msra.mxu0 0.0
      %1495 = vmatprep.subr.mxu0 0.0
      %1496 = vmatpush1.msra.mxu0 0.0
      %1497 = vmatprep.subr.mxu0 0.0
      %1498 = vmatpush1.msra.mxu0 0.0
      %1499 = vmatprep.subr.mxu0 0.0
      %1500 = vmatpush1.msra.mxu0 0.0
      %1501 = vmatprep.subr.mxu0 0.0
      %1502 = vmatpush1.msra.mxu0 0.0
      %1503 = vmatprep.subr.mxu0 0.0
      %1504 = vmatpush1.msra.mxu0 0.0
      %1505 = vmatprep.subr.mxu0 0.0
      %1506 = vmatpush1.msra.mxu0 0.0
      %1507 = vmatprep.subr.mxu0 0.0
      %1508 = vmatpush1.msra.mxu0 0.0
      %1509 = vmatprep.subr.mxu0 0.0
      %1510 = vmatpush1.msra.mxu0 0.0
      %1511 = vmatprep.subr.mxu0 0.0
      %1512 = vmatpush1.msra.mxu0 0.0
      %1513 = vmatprep.subr.mxu0 0.0
      %1514 = vmatpush1.msra.mxu0 0.0
      %1515 = vmatprep.subr.mxu0 0.0
      %1516 = vmatpush1.msra.mxu0 0.0
      %1517 = vmatprep.subr.mxu0 0.0
      %1518 = vmatpush1.msra.mxu0 0.0
      %1519 = vmatprep.subr.mxu0 0.0
      %1520 = vmatpush1.msra.mxu0 0.0
      %1521 = vmatprep.mubr.f32.mxu0 0.0
      %1522 = vmatmul.mubr.f32.gmra.mrb[0].mxu0 %v1029
      %v1523 = vpop.f32.mrb[0].mxu0
      %v1524 = vadd.f32 0.0, %v1523
      %v1525 = vpop.f32.mrb[0].mxu0
      %v1526 = vadd.f32 0.0, %v1525
      %1527 = vdwg.mxu0
      %1528 = vmatprep.subr.mxu0 %v1027
      %1529 = vmatpush1.msra.mxu0 %v1024
      %1530 = vmatprep.subr.mxu0 0.0
      %1531 = vmatpush1.msra.mxu0 0.0
      %1532 = vmatprep.subr.mxu0 0.0
      %1533 = vmatpush1.msra.mxu0 0.0
      %1534 = vmatprep.subr.mxu0 0.0
      %1535 = vmatpush1.msra.mxu0 0.0
      %1536 = vmatprep.subr.mxu0 0.0
      %1537 = vmatpush1.msra.mxu0 0.0
      %1538 = vmatprep.subr.mxu0 0.0
      %1539 = vmatpush1.msra.mxu0 0.0
      %1540 = vmatprep.subr.mxu0 0.0
      %1541 = vmatpush1.msra.mxu0 0.0
      %1542 = vmatprep.subr.mxu0 0.0
      %1543 = vmatpush1.msra.mxu0 0.0
      %1544 = vmatprep.subr.mxu0 0.0
      %1545 = vmatpush1.msra.mxu0 0.0
      %1546 = vmatprep.subr.mxu0 0.0
      %1547 = vmatpush1.msra.mxu0 0.0
      %1548 = vmatprep.subr.mxu0 0.0
      %1549 = vmatpush1.msra.mxu0 0.0
      %1550 = vmatprep.subr.mxu0 0.0
      %1551 = vmatpush1.msra.mxu0 0.0
      %1552 = vmatprep.subr.mxu0 0.0
      %1553 = vmatpush1.msra.mxu0 0.0
      %1554 = vmatprep.subr.mxu0 0.0
      %1555 = vmatpush1.msra.mxu0 0.0
      %1556 = vmatprep.subr.mxu0 0.0
      %1557 = vmatpush1.msra.mxu0 0.0
      %1558 = vmatprep.subr.mxu0 0.0
      %1559 = vmatpush1.msra.mxu0 0.0
      %1560 = vmatprep.subr.mxu0 0.0
      %1561 = vmatpush1.msra.mxu0 0.0
      %1562 = vmatprep.subr.mxu0 0.0
      %1563 = vmatpush1.msra.mxu0 0.0
      %1564 = vmatprep.subr.mxu0 0.0
      %1565 = vmatpush1.msra.mxu0 0.0
      %1566 = vmatprep.subr.mxu0 0.0
      %1567 = vmatpush1.msra.mxu0 0.0
      %1568 = vmatprep.subr.mxu0 0.0
      %1569 = vmatpush1.msra.mxu0 0.0
      %1570 = vmatprep.subr.mxu0 0.0
      %1571 = vmatpush1.msra.mxu0 0.0
      %1572 = vmatprep.subr.mxu0 0.0
      %1573 = vmatpush1.msra.mxu0 0.0
      %1574 = vmatprep.subr.mxu0 0.0
      %1575 = vmatpush1.msra.mxu0 0.0
      %1576 = vmatprep.subr.mxu0 0.0
      %1577 = vmatpush1.msra.mxu0 0.0
      %1578 = vmatprep.subr.mxu0 0.0
      %1579 = vmatpush1.msra.mxu0 0.0
      %1580 = vmatprep.subr.mxu0 0.0
      %1581 = vmatpush1.msra.mxu0 0.0
      %1582 = vmatprep.subr.mxu0 0.0
      %1583 = vmatpush1.msra.mxu0 0.0
      %1584 = vmatprep.subr.mxu0 0.0
      %1585 = vmatpush1.msra.mxu0 0.0
      %1586 = vmatprep.subr.mxu0 0.0
      %1587 = vmatpush1.msra.mxu0 0.0
      %1588 = vmatprep.subr.mxu0 0.0
      %1589 = vmatpush1.msra.mxu0 0.0
      %1590 = vmatprep.subr.mxu0 0.0
      %1591 = vmatpush1.msra.mxu0 0.0
      %1592 = vmatprep.mubr.f32.mxu0 0.0
      %1593 = vmatmul.mubr.f32.gmra.mrb[0].mxu0 %v1029
      %v1594 = vpop.f32.mrb[0].mxu0
      %v1595 = vadd.f32 0.0, %v1594
      %v1596 = vpop.f32.mrb[0].mxu0
      %v1597 = vadd.f32 0.0, %v1596
      %1598 = vdwg.mxu0
      %v1600 = vsel %vm353, %v1008, 0
      %1602 = vmatprep.subr.mxu0 %v1010
      %1603 = vmatpush1.msra.mxu0 %v1009
      %1604 = vmatprep.subr.mxu0 0.0
      %1605 = vmatpush1.msra.mxu0 0.0
      %1606 = vmatprep.subr.mxu0 0.0
      %1607 = vmatpush1.msra.mxu0 0.0
      %1608 = vmatprep.subr.mxu0 0.0
      %1609 = vmatpush1.msra.mxu0 0.0
      %1610 = vmatprep.subr.mxu0 0.0
      %1611 = vmatpush1.msra.mxu0 0.0
      %1612 = vmatprep.subr.mxu0 0.0
      %1613 = vmatpush1.msra.mxu0 0.0
      %1614 = vmatprep.subr.mxu0 0.0
      %1615 = vmatpush1.msra.mxu0 0.0
      %1616 = vmatprep.subr.mxu0 0.0
      %1617 = vmatpush1.msra.mxu0 0.0
      %1618 = vmatprep.subr.mxu0 0.0
      %1619 = vmatpush1.msra.mxu0 0.0
      %1620 = vmatprep.subr.mxu0 0.0
      %1621 = vmatpush1.msra.mxu0 0.0
      %1622 = vmatprep.subr.mxu0 0.0
      %1623 = vmatpush1.msra.mxu0 0.0
      %1624 = vmatprep.subr.mxu0 0.0
      %1625 = vmatpush1.msra.mxu0 0.0
      %1626 = vmatprep.subr.mxu0 0.0
      %1627 = vmatpush1.msra.mxu0 0.0
      %1628 = vmatprep.subr.mxu0 0.0
      %1629 = vmatpush1.msra.mxu0 0.0
      %1630 = vmatprep.subr.mxu0 0.0
      %1631 = vmatpush1.msra.mxu0 0.0
      %1632 = vmatprep.subr.mxu0 0.0
      %1633 = vmatpush1.msra.mxu0 0.0
      %1634 = vmatprep.subr.mxu0 0.0
      %1635 = vmatpush1.msra.mxu0 0.0
      %1636 = vmatprep.subr.mxu0 0.0
      %1637 = vmatpush1.msra.mxu0 0.0
      %1638 = vmatprep.subr.mxu0 0.0
      %1639 = vmatpush1.msra.mxu0 0.0
      %1640 = vmatprep.subr.mxu0 0.0
      %1641 = vmatpush1.msra.mxu0 0.0
      %1642 = vmatprep.subr.mxu0 0.0
      %1643 = vmatpush1.msra.mxu0 0.0
      %1644 = vmatprep.subr.mxu0 0.0
      %1645 = vmatpush1.msra.mxu0 0.0
      %1646 = vmatprep.subr.mxu0 0.0
      %1647 = vmatpush1.msra.mxu0 0.0
      %1648 = vmatprep.subr.mxu0 0.0
      %1649 = vmatpush1.msra.mxu0 0.0
      %1650 = vmatprep.subr.mxu0 0.0
      %1651 = vmatpush1.msra.mxu0 0.0
      %1652 = vmatprep.subr.mxu0 0.0
      %1653 = vmatpush1.msra.mxu0 0.0
      %1654 = vmatprep.subr.mxu0 0.0
      %1655 = vmatpush1.msra.mxu0 0.0
      %1656 = vmatprep.subr.mxu0 0.0
      %1657 = vmatpush1.msra.mxu0 0.0
      %1658 = vmatprep.subr.mxu0 0.0
      %1659 = vmatpush1.msra.mxu0 0.0
      %1660 = vmatprep.subr.mxu0 0.0
      %1661 = vmatpush1.msra.mxu0 0.0
      %1662 = vmatprep.subr.mxu0 0.0
      %1663 = vmatpush1.msra.mxu0 0.0
      %1664 = vmatprep.subr.mxu0 0.0
      %1665 = vmatpush1.msra.mxu0 0.0
      %1666 = vmatprep.mubr.f32.mxu0 0.0
      %1667 = vmatmul.mubr.f32.gmra.mrb[0].mxu0 %v1600
      %v1668 = vpop.f32.mrb[0].mxu0
      %v1669 = vadd.f32 %v1098, %v1668
      %v1670 = vpop.f32.mrb[0].mxu0
      %v1671 = vadd.f32 %v1100, %v1670
      %1672 = vdwg.mxu0
      %1673 = vmatprep.subr.mxu0 %v1012
      %1674 = vmatpush1.msra.mxu0 %v1011
      %1675 = vmatprep.subr.mxu0 0.0
      %1676 = vmatpush1.msra.mxu0 0.0
      %1677 = vmatprep.subr.mxu0 0.0
      %1678 = vmatpush1.msra.mxu0 0.0
      %1679 = vmatprep.subr.mxu0 0.0
      %1680 = vmatpush1.msra.mxu0 0.0
      %1681 = vmatprep.subr.mxu0 0.0
      %1682 = vmatpush1.msra.mxu0 0.0
      %1683 = vmatprep.subr.mxu0 0.0
      %1684 = vmatpush1.msra.mxu0 0.0
      %1685 = vmatprep.subr.mxu0 0.0
      %1686 = vmatpush1.msra.mxu0 0.0
      %1687 = vmatprep.subr.mxu0 0.0
      %1688 = vmatpush1.msra.mxu0 0.0
      %1689 = vmatprep.subr.mxu0 0.0
      %1690 = vmatpush1.msra.mxu0 0.0
      %1691 = vmatprep.subr.mxu0 0.0
      %1692 = vmatpush1.msra.mxu0 0.0
      %1693 = vmatprep.subr.mxu0 0.0
      %1694 = vmatpush1.msra.mxu0 0.0
      %1695 = vmatprep.subr.mxu0 0.0
      %1696 = vmatpush1.msra.mxu0 0.0
      %1697 = vmatprep.subr.mxu0 0.0
      %1698 = vmatpush1.msra.mxu0 0.0
      %1699 = vmatprep.subr.mxu0 0.0
      %1700 = vmatpush1.msra.mxu0 0.0
      %1701 = vmatprep.subr.mxu0 0.0
      %1702 = vmatpush1.msra.mxu0 0.0
      %1703 = vmatprep.subr.mxu0 0.0
      %1704 = vmatpush1.msra.mxu0 0.0
      %1705 = vmatprep.subr.mxu0 0.0
      %1706 = vmatpush1.msra.mxu0 0.0
      %1707 = vmatprep.subr.mxu0 0.0
      %1708 = vmatpush1.msra.mxu0 0.0
      %1709 = vmatprep.subr.mxu0 0.0
      %1710 = vmatpush1.msra.mxu0 0.0
      %1711 = vmatprep.subr.mxu0 0.0
      %1712 = vmatpush1.msra.mxu0 0.0
      %1713 = vmatprep.subr.mxu0 0.0
      %1714 = vmatpush1.msra.mxu0 0.0
      %1715 = vmatprep.subr.mxu0 0.0
      %1716 = vmatpush1.msra.mxu0 0.0
      %1717 = vmatprep.subr.mxu0 0.0
      %1718 = vmatpush1.msra.mxu0 0.0
      %1719 = vmatprep.subr.mxu0 0.0
      %1720 = vmatpush1.msra.mxu0 0.0
      %1721 = vmatprep.subr.mxu0 0.0
      %1722 = vmatpush1.msra.mxu0 0.0
      %1723 = vmatprep.subr.mxu0 0.0
      %1724 = vmatpush1.msra.mxu0 0.0
      %1725 = vmatprep.subr.mxu0 0.0
      %1726 = vmatpush1.msra.mxu0 0.0
      %1727 = vmatprep.subr.mxu0 0.0
      %1728 = vmatpush1.msra.mxu0 0.0
      %1729 = vmatprep.subr.mxu0 0.0
      %1730 = vmatpush1.msra.mxu0 0.0
      %1731 = vmatprep.subr.mxu0 0.0
      %1732 = vmatpush1.msra.mxu0 0.0
      %1733 = vmatprep.subr.mxu0 0.0
      %1734 = vmatpush1.msra.mxu0 0.0
      %1735 = vmatprep.subr.mxu0 0.0
      %1736 = vmatpush1.msra.mxu0 0.0
      %1737 = vmatprep.mubr.f32.mxu0 0.0
      %1738 = vmatmul.mubr.f32.gmra.mrb[0].mxu0 %v1600
      %v1739 = vpop.f32.mrb[0].mxu0
      %v1740 = vadd.f32 %v1169, %v1739
      %v1741 = vpop.f32.mrb[0].mxu0
      %v1742 = vadd.f32 %v1171, %v1741
      %1743 = vdwg.mxu0
      %1744 = vmatprep.subr.mxu0 %v1014
      %1745 = vmatpush1.msra.mxu0 %v1013
      %1746 = vmatprep.subr.mxu0 0.0
      %1747 = vmatpush1.msra.mxu0 0.0
      %1748 = vmatprep.subr.mxu0 0.0
      %1749 = vmatpush1.msra.mxu0 0.0
      %1750 = vmatprep.subr.mxu0 0.0
      %1751 = vmatpush1.msra.mxu0 0.0
      %1752 = vmatprep.subr.mxu0 0.0
      %1753 = vmatpush1.msra.mxu0 0.0
      %1754 = vmatprep.subr.mxu0 0.0
      %1755 = vmatpush1.msra.mxu0 0.0
      %1756 = vmatprep.subr.mxu0 0.0
      %1757 = vmatpush1.msra.mxu0 0.0
      %1758 = vmatprep.subr.mxu0 0.0
      %1759 = vmatpush1.msra.mxu0 0.0
      %1760 = vmatprep.subr.mxu0 0.0
      %1761 = vmatpush1.msra.mxu0 0.0
      %1762 = vmatprep.subr.mxu0 0.0
      %1763 = vmatpush1.msra.mxu0 0.0
      %1764 = vmatprep.subr.mxu0 0.0
      %1765 = vmatpush1.msra.mxu0 0.0
      %1766 = vmatprep.subr.mxu0 0.0
      %1767 = vmatpush1.msra.mxu0 0.0
      %1768 = vmatprep.subr.mxu0 0.0
      %1769 = vmatpush1.msra.mxu0 0.0
      %1770 = vmatprep.subr.mxu0 0.0
      %1771 = vmatpush1.msra.mxu0 0.0
      %1772 = vmatprep.subr.mxu0 0.0
      %1773 = vmatpush1.msra.mxu0 0.0
      %1774 = vmatprep.subr.mxu0 0.0
      %1775 = vmatpush1.msra.mxu0 0.0
      %1776 = vmatprep.subr.mxu0 0.0
      %1777 = vmatpush1.msra.mxu0 0.0
      %1778 = vmatprep.subr.mxu0 0.0
      %1779 = vmatpush1.msra.mxu0 0.0
      %1780 = vmatprep.subr.mxu0 0.0
      %1781 = vmatpush1.msra.mxu0 0.0
      %1782 = vmatprep.subr.mxu0 0.0
      %1783 = vmatpush1.msra.mxu0 0.0
      %1784 = vmatprep.subr.mxu0 0.0
      %1785 = vmatpush1.msra.mxu0 0.0
      %1786 = vmatprep.subr.mxu0 0.0
      %1787 = vmatpush1.msra.mxu0 0.0
      %1788 = vmatprep.subr.mxu0 0.0
      %1789 = vmatpush1.msra.mxu0 0.0
      %1790 = vmatprep.subr.mxu0 0.0
      %1791 = vmatpush1.msra.mxu0 0.0
      %1792 = vmatprep.subr.mxu0 0.0
      %1793 = vmatpush1.msra.mxu0 0.0
      %1794 = vmatprep.subr.mxu0 0.0
      %1795 = vmatpush1.msra.mxu0 0.0
      %1796 = vmatprep.subr.mxu0 0.0
      %1797 = vmatpush1.msra.mxu0 0.0
      %1798 = vmatprep.subr.mxu0 0.0
      %1799 = vmatpush1.msra.mxu0 0.0
      %1800 = vmatprep.subr.mxu0 0.0
      %1801 = vmatpush1.msra.mxu0 0.0
      %1802 = vmatprep.subr.mxu0 0.0
      %1803 = vmatpush1.msra.mxu0 0.0
      %1804 = vmatprep.subr.mxu0 0.0
      %1805 = vmatpush1.msra.mxu0 0.0
      %1806 = vmatprep.subr.mxu0 0.0
      %1807 = vmatpush1.msra.mxu0 0.0
      %1808 = vmatprep.mubr.f32.mxu0 0.0
      %1809 = vmatmul.mubr.f32.gmra.mrb[0].mxu0 %v1600
      %v1810 = vpop.f32.mrb[0].mxu0
      %v1811 = vadd.f32 %v1240, %v1810
      %v1812 = vpop.f32.mrb[0].mxu0
      %v1813 = vadd.f32 %v1242, %v1812
      %1814 = vdwg.mxu0
      %1815 = vmatprep.subr.mxu0 %v1016
      %1816 = vmatpush1.msra.mxu0 %v1015
      %1817 = vmatprep.subr.mxu0 0.0
      %1818 = vmatpush1.msra.mxu0 0.0
      %1819 = vmatprep.subr.mxu0 0.0
      %1820 = vmatpush1.msra.mxu0 0.0
      %1821 = vmatprep.subr.mxu0 0.0
      %1822 = vmatpush1.msra.mxu0 0.0
      %1823 = vmatprep.subr.mxu0 0.0
      %1824 = vmatpush1.msra.mxu0 0.0
      %1825 = vmatprep.subr.mxu0 0.0
      %1826 = vmatpush1.msra.mxu0 0.0
      %1827 = vmatprep.subr.mxu0 0.0
      %1828 = vmatpush1.msra.mxu0 0.0
      %1829 = vmatprep.subr.mxu0 0.0
      %1830 = vmatpush1.msra.mxu0 0.0
      %1831 = vmatprep.subr.mxu0 0.0
      %1832 = vmatpush1.msra.mxu0 0.0
      %1833 = vmatprep.subr.mxu0 0.0
      %1834 = vmatpush1.msra.mxu0 0.0
      %1835 = vmatprep.subr.mxu0 0.0
      %1836 = vmatpush1.msra.mxu0 0.0
      %1837 = vmatprep.subr.mxu0 0.0
      %1838 = vmatpush1.msra.mxu0 0.0
      %1839 = vmatprep.subr.mxu0 0.0
      %1840 = vmatpush1.msra.mxu0 0.0
      %1841 = vmatprep.subr.mxu0 0.0
      %1842 = vmatpush1.msra.mxu0 0.0
      %1843 = vmatprep.subr.mxu0 0.0
      %1844 = vmatpush1.msra.mxu0 0.0
      %1845 = vmatprep.subr.mxu0 0.0
      %1846 = vmatpush1.msra.mxu0 0.0
      %1847 = vmatprep.subr.mxu0 0.0
      %1848 = vmatpush1.msra.mxu0 0.0
      %1849 = vmatprep.subr.mxu0 0.0
      %1850 = vmatpush1.msra.mxu0 0.0
      %1851 = vmatprep.subr.mxu0 0.0
      %1852 = vmatpush1.msra.mxu0 0.0
      %1853 = vmatprep.subr.mxu0 0.0
      %1854 = vmatpush1.msra.mxu0 0.0
      %1855 = vmatprep.subr.mxu0 0.0
      %1856 = vmatpush1.msra.mxu0 0.0
      %1857 = vmatprep.subr.mxu0 0.0
      %1858 = vmatpush1.msra.mxu0 0.0
      %1859 = vmatprep.subr.mxu0 0.0
      %1860 = vmatpush1.msra.mxu0 0.0
      %1861 = vmatprep.subr.mxu0 0.0
      %1862 = vmatpush1.msra.mxu0 0.0
      %1863 = vmatprep.subr.mxu0 0.0
      %1864 = vmatpush1.msra.mxu0 0.0
      %1865 = vmatprep.subr.mxu0 0.0
      %1866 = vmatpush1.msra.mxu0 0.0
      %1867 = vmatprep.subr.mxu0 0.0
      %1868 = vmatpush1.msra.mxu0 0.0
      %1869 = vmatprep.subr.mxu0 0.0
      %1870 = vmatpush1.msra.mxu0 0.0
      %1871 = vmatprep.subr.mxu0 0.0
      %1872 = vmatpush1.msra.mxu0 0.0
      %1873 = vmatprep.subr.mxu0 0.0
      %1874 = vmatpush1.msra.mxu0 0.0
      %1875 = vmatprep.subr.mxu0 0.0
      %1876 = vmatpush1.msra.mxu0 0.0
      %1877 = vmatprep.subr.mxu0 0.0
      %1878 = vmatpush1.msra.mxu0 0.0
      %1879 = vmatprep.mubr.f32.mxu0 0.0
      %1880 = vmatmul.mubr.f32.gmra.mrb[0].mxu0 %v1600
      %v1881 = vpop.f32.mrb[0].mxu0
      %v1882 = vadd.f32 %v1311, %v1881
      %v1883 = vpop.f32.mrb[0].mxu0
      %v1884 = vadd.f32 %v1313, %v1883
      %1885 = vdwg.mxu0
      %1886 = vmatprep.subr.mxu0 %v1018
      %1887 = vmatpush1.msra.mxu0 %v1017
      %1888 = vmatprep.subr.mxu0 0.0
      %1889 = vmatpush1.msra.mxu0 0.0
      %1890 = vmatprep.subr.mxu0 0.0
      %1891 = vmatpush1.msra.mxu0 0.0
      %1892 = vmatprep.subr.mxu0 0.0
      %1893 = vmatpush1.msra.mxu0 0.0
      %1894 = vmatprep.subr.mxu0 0.0
      %1895 = vmatpush1.msra.mxu0 0.0
      %1896 = vmatprep.subr.mxu0 0.0
      %1897 = vmatpush1.msra.mxu0 0.0
      %1898 = vmatprep.subr.mxu0 0.0
      %1899 = vmatpush1.msra.mxu0 0.0
      %1900 = vmatprep.subr.mxu0 0.0
      %1901 = vmatpush1.msra.mxu0 0.0
      %1902 = vmatprep.subr.mxu0 0.0
      %1903 = vmatpush1.msra.mxu0 0.0
      %1904 = vmatprep.subr.mxu0 0.0
      %1905 = vmatpush1.msra.mxu0 0.0
      %1906 = vmatprep.subr.mxu0 0.0
      %1907 = vmatpush1.msra.mxu0 0.0
      %1908 = vmatprep.subr.mxu0 0.0
      %1909 = vmatpush1.msra.mxu0 0.0
      %1910 = vmatprep.subr.mxu0 0.0
      %1911 = vmatpush1.msra.mxu0 0.0
      %1912 = vmatprep.subr.mxu0 0.0
      %1913 = vmatpush1.msra.mxu0 0.0
      %1914 = vmatprep.subr.mxu0 0.0
      %1915 = vmatpush1.msra.mxu0 0.0
      %1916 = vmatprep.subr.mxu0 0.0
      %1917 = vmatpush1.msra.mxu0 0.0
      %1918 = vmatprep.subr.mxu0 0.0
      %1919 = vmatpush1.msra.mxu0 0.0
      %1920 = vmatprep.subr.mxu0 0.0
      %1921 = vmatpush1.msra.mxu0 0.0
      %1922 = vmatprep.subr.mxu0 0.0
      %1923 = vmatpush1.msra.mxu0 0.0
      %1924 = vmatprep.subr.mxu0 0.0
      %1925 = vmatpush1.msra.mxu0 0.0
      %1926 = vmatprep.subr.mxu0 0.0
      %1927 = vmatpush1.msra.mxu0 0.0
      %1928 = vmatprep.subr.mxu0 0.0
      %1929 = vmatpush1.msra.mxu0 0.0
      %1930 = vmatprep.subr.mxu0 0.0
      %1931 = vmatpush1.msra.mxu0 0.0
      %1932 = vmatprep.subr.mxu0 0.0
      %1933 = vmatpush1.msra.mxu0 0.0
      %1934 = vmatprep.subr.mxu0 0.0
      %1935 = vmatpush1.msra.mxu0 0.0
      %1936 = vmatprep.subr.mxu0 0.0
      %1937 = vmatpush1.msra.mxu0 0.0
      %1938 = vmatprep.subr.mxu0 0.0
      %1939 = vmatpush1.msra.mxu0 0.0
      %1940 = vmatprep.subr.mxu0 0.0
      %1941 = vmatpush1.msra.mxu0 0.0
      %1942 = vmatprep.subr.mxu0 0.0
      %1943 = vmatpush1.msra.mxu0 0.0
      %1944 = vmatprep.subr.mxu0 0.0
      %1945 = vmatpush1.msra.mxu0 0.0
      %1946 = vmatprep.subr.mxu0 0.0
      %1947 = vmatpush1.msra.mxu0 0.0
      %1948 = vmatprep.subr.mxu0 0.0
      %1949 = vmatpush1.msra.mxu0 0.0
      %1950 = vmatprep.mubr.f32.mxu0 0.0
      %1951 = vmatmul.mubr.f32.gmra.mrb[0].mxu0 %v1600
      %v1952 = vpop.f32.mrb[0].mxu0
      %v1953 = vadd.f32 %v1382, %v1952
      %v1954 = vpop.f32.mrb[0].mxu0
      %v1955 = vadd.f32 %v1384, %v1954
      %1956 = vdwg.mxu0
      %1957 = vmatprep.subr.mxu0 %v1020
      %1958 = vmatpush1.msra.mxu0 %v1019
      %1959 = vmatprep.subr.mxu0 0.0
      %1960 = vmatpush1.msra.mxu0 0.0
      %1961 = vmatprep.subr.mxu0 0.0
      %1962 = vmatpush1.msra.mxu0 0.0
      %1963 = vmatprep.subr.mxu0 0.0
      %1964 = vmatpush1.msra.mxu0 0.0
      %1965 = vmatprep.subr.mxu0 0.0
      %1966 = vmatpush1.msra.mxu0 0.0
      %1967 = vmatprep.subr.mxu0 0.0
      %1968 = vmatpush1.msra.mxu0 0.0
      %1969 = vmatprep.subr.mxu0 0.0
      %1970 = vmatpush1.msra.mxu0 0.0
      %1971 = vmatprep.subr.mxu0 0.0
      %1972 = vmatpush1.msra.mxu0 0.0
      %1973 = vmatprep.subr.mxu0 0.0
      %1974 = vmatpush1.msra.mxu0 0.0
      %1975 = vmatprep.subr.mxu0 0.0
      %1976 = vmatpush1.msra.mxu0 0.0
      %1977 = vmatprep.subr.mxu0 0.0
      %1978 = vmatpush1.msra.mxu0 0.0
      %1979 = vmatprep.subr.mxu0 0.0
      %1980 = vmatpush1.msra.mxu0 0.0
      %1981 = vmatprep.subr.mxu0 0.0
      %1982 = vmatpush1.msra.mxu0 0.0
      %1983 = vmatprep.subr.mxu0 0.0
      %1984 = vmatpush1.msra.mxu0 0.0
      %1985 = vmatprep.subr.mxu0 0.0
      %1986 = vmatpush1.msra.mxu0 0.0
      %1987 = vmatprep.subr.mxu0 0.0
      %1988 = vmatpush1.msra.mxu0 0.0
      %1989 = vmatprep.subr.mxu0 0.0
      %1990 = vmatpush1.msra.mxu0 0.0
      %1991 = vmatprep.subr.mxu0 0.0
      %1992 = vmatpush1.msra.mxu0 0.0
      %1993 = vmatprep.subr.mxu0 0.0
      %1994 = vmatpush1.msra.mxu0 0.0
      %1995 = vmatprep.subr.mxu0 0.0
      %1996 = vmatpush1.msra.mxu0 0.0
      %1997 = vmatprep.subr.mxu0 0.0
      %1998 = vmatpush1.msra.mxu0 0.0
      %1999 = vmatprep.subr.mxu0 0.0
      %2000 = vmatpush1.msra.mxu0 0.0
      %2001 = vmatprep.subr.mxu0 0.0
      %2002 = vmatpush1.msra.mxu0 0.0
      %2003 = vmatprep.subr.mxu0 0.0
      %2004 = vmatpush1.msra.mxu0 0.0
      %2005 = vmatprep.subr.mxu0 0.0
      %2006 = vmatpush1.msra.mxu0 0.0
      %2007 = vmatprep.subr.mxu0 0.0
      %2008 = vmatpush1.msra.mxu0 0.0
      %2009 = vmatprep.subr.mxu0 0.0
      %2010 = vmatpush1.msra.mxu0 0.0
      %2011 = vmatprep.subr.mxu0 0.0
      %2012 = vmatpush1.msra.mxu0 0.0
      %2013 = vmatprep.subr.mxu0 0.0
      %2014 = vmatpush1.msra.mxu0 0.0
      %2015 = vmatprep.subr.mxu0 0.0
      %2016 = vmatpush1.msra.mxu0 0.0
      %2017 = vmatprep.subr.mxu0 0.0
      %2018 = vmatpush1.msra.mxu0 0.0
      %2019 = vmatprep.subr.mxu0 0.0
      %2020 = vmatpush1.msra.mxu0 0.0
      %2021 = vmatprep.mubr.f32.mxu0 0.0
      %2022 = vmatmul.mubr.f32.gmra.mrb[0].mxu0 %v1600
      %v2023 = vpop.f32.mrb[0].mxu0
      %v2024 = vadd.f32 %v1453, %v2023
      %v2025 = vpop.f32.mrb[0].mxu0
      %v2026 = vadd.f32 %v1455, %v2025
      %2027 = vdwg.mxu0
      %2028 = vmatprep.subr.mxu0 %v1022
      %2029 = vmatpush1.msra.mxu0 %v1021
      %2030 = vmatprep.subr.mxu0 0.0
      %2031 = vmatpush1.msra.mxu0 0.0
      %2032 = vmatprep.subr.mxu0 0.0
      %2033 = vmatpush1.msra.mxu0 0.0
      %2034 = vmatprep.subr.mxu0 0.0
      %2035 = vmatpush1.msra.mxu0 0.0
      %2036 = vmatprep.subr.mxu0 0.0
      %2037 = vmatpush1.msra.mxu0 0.0
      %2038 = vmatprep.subr.mxu0 0.0
      %2039 = vmatpush1.msra.mxu0 0.0
      %2040 = vmatprep.subr.mxu0 0.0
      %2041 = vmatpush1.msra.mxu0 0.0
      %2042 = vmatprep.subr.mxu0 0.0
      %2043 = vmatpush1.msra.mxu0 0.0
      %2044 = vmatprep.subr.mxu0 0.0
      %2045 = vmatpush1.msra.mxu0 0.0
      %2046 = vmatprep.subr.mxu0 0.0
      %2047 = vmatpush1.msra.mxu0 0.0
      %2048 = vmatprep.subr.mxu0 0.0
      %2049 = vmatpush1.msra.mxu0 0.0
      %2050 = vmatprep.subr.mxu0 0.0
      %2051 = vmatpush1.msra.mxu0 0.0
      %2052 = vmatprep.subr.mxu0 0.0
      %2053 = vmatpush1.msra.mxu0 0.0
      %2054 = vmatprep.subr.mxu0 0.0
      %2055 = vmatpush1.msra.mxu0 0.0
      %2056 = vmatprep.subr.mxu0 0.0
      %2057 = vmatpush1.msra.mxu0 0.0
      %2058 = vmatprep.subr.mxu0 0.0
      %2059 = vmatpush1.msra.mxu0 0.0
      %2060 = vmatprep.subr.mxu0 0.0
      %2061 = vmatpush1.msra.mxu0 0.0
      %2062 = vmatprep.subr.mxu0 0.0
      %2063 = vmatpush1.msra.mxu0 0.0
      %2064 = vmatprep.subr.mxu0 0.0
      %2065 = vmatpush1.msra.mxu0 0.0
      %2066 = vmatprep.subr.mxu0 0.0
      %2067 = vmatpush1.msra.mxu0 0.0
      %2068 = vmatprep.subr.mxu0 0.0
      %2069 = vmatpush1.msra.mxu0 0.0
      %2070 = vmatprep.subr.mxu0 0.0
      %2071 = vmatpush1.msra.mxu0 0.0
      %2072 = vmatprep.subr.mxu0 0.0
      %2073 = vmatpush1.msra.mxu0 0.0
      %2074 = vmatprep.subr.mxu0 0.0
      %2075 = vmatpush1.msra.mxu0 0.0
      %2076 = vmatprep.subr.mxu0 0.0
      %2077 = vmatpush1.msra.mxu0 0.0
      %2078 = vmatprep.subr.mxu0 0.0
      %2079 = vmatpush1.msra.mxu0 0.0
      %2080 = vmatprep.subr.mxu0 0.0
      %2081 = vmatpush1.msra.mxu0 0.0
      %2082 = vmatprep.subr.mxu0 0.0
      %2083 = vmatpush1.msra.mxu0 0.0
      %2084 = vmatprep.subr.mxu0 0.0
      %2085 = vmatpush1.msra.mxu0 0.0
      %2086 = vmatprep.subr.mxu0 0.0
      %2087 = vmatpush1.msra.mxu0 0.0
      %2088 = vmatprep.subr.mxu0 0.0
      %2089 = vmatpush1.msra.mxu0 0.0
      %2090 = vmatprep.subr.mxu0 0.0
      %2091 = vmatpush1.msra.mxu0 0.0
      %2092 = vmatprep.mubr.f32.mxu0 0.0
      %2093 = vmatmul.mubr.f32.gmra.mrb[0].mxu0 %v1600
      %v2094 = vpop.f32.mrb[0].mxu0
      %v2095 = vadd.f32 %v1524, %v2094
      %v2096 = vpop.f32.mrb[0].mxu0
      %v2097 = vadd.f32 %v1526, %v2096
      %2098 = vdwg.mxu0
      %2099 = vmatprep.subr.mxu0 %v1024
      %2100 = vmatpush1.msra.mxu0 %v1023
      %2101 = vmatprep.subr.mxu0 0.0
      %2102 = vmatpush1.msra.mxu0 0.0
      %2103 = vmatprep.subr.mxu0 0.0
      %2104 = vmatpush1.msra.mxu0 0.0
      %2105 = vmatprep.subr.mxu0 0.0
      %2106 = vmatpush1.msra.mxu0 0.0
      %2107 = vmatprep.subr.mxu0 0.0
      %2108 = vmatpush1.msra.mxu0 0.0
      %2109 = vmatprep.subr.mxu0 0.0
      %2110 = vmatpush1.msra.mxu0 0.0
      %2111 = vmatprep.subr.mxu0 0.0
      %2112 = vmatpush1.msra.mxu0 0.0
      %2113 = vmatprep.subr.mxu0 0.0
      %2114 = vmatpush1.msra.mxu0 0.0
      %2115 = vmatprep.subr.mxu0 0.0
      %2116 = vmatpush1.msra.mxu0 0.0
      %2117 = vmatprep.subr.mxu0 0.0
      %2118 = vmatpush1.msra.mxu0 0.0
      %2119 = vmatprep.subr.mxu0 0.0
      %2120 = vmatpush1.msra.mxu0 0.0
      %2121 = vmatprep.subr.mxu0 0.0
      %2122 = vmatpush1.msra.mxu0 0.0
      %2123 = vmatprep.subr.mxu0 0.0
      %2124 = vmatpush1.msra.mxu0 0.0
      %2125 = vmatprep.subr.mxu0 0.0
      %2126 = vmatpush1.msra.mxu0 0.0
      %2127 = vmatprep.subr.mxu0 0.0
      %2128 = vmatpush1.msra.mxu0 0.0
      %2129 = vmatprep.subr.mxu0 0.0
      %2130 = vmatpush1.msra.mxu0 0.0
      %2131 = vmatprep.subr.mxu0 0.0
      %2132 = vmatpush1.msra.mxu0 0.0
      %2133 = vmatprep.subr.mxu0 0.0
      %2134 = vmatpush1.msra.mxu0 0.0
      %2135 = vmatprep.subr.mxu0 0.0
      %2136 = vmatpush1.msra.mxu0 0.0
      %2137 = vmatprep.subr.mxu0 0.0
      %2138 = vmatpush1.msra.mxu0 0.0
      %2139 = vmatprep.subr.mxu0 0.0
      %2140 = vmatpush1.msra.mxu0 0.0
      %2141 = vmatprep.subr.mxu0 0.0
      %2142 = vmatpush1.msra.mxu0 0.0
      %2143 = vmatprep.subr.mxu0 0.0
      %2144 = vmatpush1.msra.mxu0 0.0
      %2145 = vmatprep.subr.mxu0 0.0
      %2146 = vmatpush1.msra.mxu0 0.0
      %2147 = vmatprep.subr.mxu0 0.0
      %2148 = vmatpush1.msra.mxu0 0.0
      %2149 = vmatprep.subr.mxu0 0.0
      %2150 = vmatpush1.msra.mxu0 0.0
      %2151 = vmatprep.subr.mxu0 0.0
      %2152 = vmatpush1.msra.mxu0 0.0
      %2153 = vmatprep.subr.mxu0 0.0
      %2154 = vmatpush1.msra.mxu0 0.0
      %2155 = vmatprep.subr.mxu0 0.0
      %2156 = vmatpush1.msra.mxu0 0.0
      %2157 = vmatprep.subr.mxu0 0.0
      %2158 = vmatpush1.msra.mxu0 0.0
      %2159 = vmatprep.subr.mxu0 0.0
      %2160 = vmatpush1.msra.mxu0 0.0
      %2161 = vmatprep.subr.mxu0 0.0
      %2162 = vmatpush1.msra.mxu0 0.0
      %2163 = vmatprep.mubr.f32.mxu0 0.0
      %2164 = vmatmul.mubr.f32.gmra.mrb[0].mxu0 %v1600
      %v2165 = vpop.f32.mrb[0].mxu0
      %v2166 = vadd.f32 %v1595, %v2165
      %v2167 = vpop.f32.mrb[0].mxu0
      %v2168 = vadd.f32 %v1597, %v2167
      %2169 = vdwg.mxu0
      %s2170 = scalar_lea.vmem %s3, 8
      %v2171 = vld [vmem:[%s2170] sm:$0xf]
      %v2172 = vld [vmem:[#allocation2 + $0x10] sm:$0xff]
      %v2173 = vld [vmem:[#allocation2 + $0x18] sm:$0xff]
      %v2174 = vld [vmem:[#allocation2 + $0x20] sm:$0xff]
      %v2175 = vld [vmem:[#allocation2 + $0x28] sm:$0xff]
      %v2176 = vld [vmem:[#allocation2 + $0x30] sm:$0xff]
      %v2177 = vld [vmem:[#allocation2 + $0x38] sm:$0xff]
      %v2178 = vld [vmem:[#allocation2 + $0x40] sm:$0xff]
      %v2179 = vld [vmem:[#allocation2 + $0x48] sm:$0xff]
      %v2180 = vld [vmem:[#allocation2 + $0x50] sm:$0xff]
      %v2181 = vld [vmem:[#allocation2 + $0x58] sm:$0xff]
      %v2182 = vld [vmem:[#allocation2 + $0x60] sm:$0xff]
      %v2183 = vld [vmem:[#allocation2 + $0x68] sm:$0xff]
      %v2184 = vld [vmem:[#allocation2 + $0x70] sm:$0xff]
      %v2185 = vld [vmem:[#allocation2 + $0x78] sm:$0xff]
      %v2186 = vld [vmem:[#allocation2 + $0x80] sm:$0xff]
      %v2187 = vld [vmem:[#allocation2 + $0x88] sm:$0xff]
      %v2189 = vsel %vm353, %v2171, 0
      %2191 = vmatprep.subr.mxu0 %v2173
      %2192 = vmatpush1.msra.mxu0 %v2172
      %2193 = vmatprep.subr.mxu0 0.0
      %2194 = vmatpush1.msra.mxu0 0.0
      %2195 = vmatprep.subr.mxu0 0.0
      %2196 = vmatpush1.msra.mxu0 0.0
      %2197 = vmatprep.subr.mxu0 0.0
      %2198 = vmatpush1.msra.mxu0 0.0
      %2199 = vmatprep.subr.mxu0 0.0
      %2200 = vmatpush1.msra.mxu0 0.0
      %2201 = vmatprep.subr.mxu0 0.0
      %2202 = vmatpush1.msra.mxu0 0.0
      %2203 = vmatprep.subr.mxu0 0.0
      %2204 = vmatpush1.msra.mxu0 0.0
      %2205 = vmatprep.subr.mxu0 0.0
      %2206 = vmatpush1.msra.mxu0 0.0
      %2207 = vmatprep.subr.mxu0 0.0
      %2208 = vmatpush1.msra.mxu0 0.0
      %2209 = vmatprep.subr.mxu0 0.0
      %2210 = vmatpush1.msra.mxu0 0.0
      %2211 = vmatprep.subr.mxu0 0.0
      %2212 = vmatpush1.msra.mxu0 0.0
      %2213 = vmatprep.subr.mxu0 0.0
      %2214 = vmatpush1.msra.mxu0 0.0
      %2215 = vmatprep.subr.mxu0 0.0
      %2216 = vmatpush1.msra.mxu0 0.0
      %2217 = vmatprep.subr.mxu0 0.0
      %2218 = vmatpush1.msra.mxu0 0.0
      %2219 = vmatprep.subr.mxu0 0.0
      %2220 = vmatpush1.msra.mxu0 0.0
      %2221 = vmatprep.subr.mxu0 0.0
      %2222 = vmatpush1.msra.mxu0 0.0
      %2223 = vmatprep.subr.mxu0 0.0
      %2224 = vmatpush1.msra.mxu0 0.0
      %2225 = vmatprep.subr.mxu0 0.0
      %2226 = vmatpush1.msra.mxu0 0.0
      %2227 = vmatprep.subr.mxu0 0.0
      %2228 = vmatpush1.msra.mxu0 0.0
      %2229 = vmatprep.subr.mxu0 0.0
      %2230 = vmatpush1.msra.mxu0 0.0
      %2231 = vmatprep.subr.mxu0 0.0
      %2232 = vmatpush1.msra.mxu0 0.0
      %2233 = vmatprep.subr.mxu0 0.0
      %2234 = vmatpush1.msra.mxu0 0.0
      %2235 = vmatprep.subr.mxu0 0.0
      %2236 = vmatpush1.msra.mxu0 0.0
      %2237 = vmatprep.subr.mxu0 0.0
      %2238 = vmatpush1.msra.mxu0 0.0
      %2239 = vmatprep.subr.mxu0 0.0
      %2240 = vmatpush1.msra.mxu0 0.0
      %2241 = vmatprep.subr.mxu0 0.0
      %2242 = vmatpush1.msra.mxu0 0.0
      %2243 = vmatprep.subr.mxu0 0.0
      %2244 = vmatpush1.msra.mxu0 0.0
      %2245 = vmatprep.subr.mxu0 0.0
      %2246 = vmatpush1.msra.mxu0 0.0
      %2247 = vmatprep.subr.mxu0 0.0
      %2248 = vmatpush1.msra.mxu0 0.0
      %2249 = vmatprep.subr.mxu0 0.0
      %2250 = vmatpush1.msra.mxu0 0.0
      %2251 = vmatprep.subr.mxu0 0.0
      %2252 = vmatpush1.msra.mxu0 0.0
      %2253 = vmatprep.subr.mxu0 0.0
      %2254 = vmatpush1.msra.mxu0 0.0
      %2255 = vmatprep.mubr.f32.mxu0 0.0
      %2256 = vmatmul.mubr.f32.gmra.mrb[0].mxu0 %v2189
      %v2257 = vpop.f32.mrb[0].mxu0
      %v2258 = vadd.f32 0.0, %v2257
      %v2259 = vpop.f32.mrb[0].mxu0
      %v2260 = vadd.f32 0.0, %v2259
      %2261 = vdwg.mxu0
      %2262 = vmatprep.subr.mxu0 %v2175
      %2263 = vmatpush1.msra.mxu0 %v2174
      %2264 = vmatprep.subr.mxu0 0.0
      %2265 = vmatpush1.msra.mxu0 0.0
      %2266 = vmatprep.subr.mxu0 0.0
      %2267 = vmatpush1.msra.mxu0 0.0
      %2268 = vmatprep.subr.mxu0 0.0
      %2269 = vmatpush1.msra.mxu0 0.0
      %2270 = vmatprep.subr.mxu0 0.0
      %2271 = vmatpush1.msra.mxu0 0.0
      %2272 = vmatprep.subr.mxu0 0.0
      %2273 = vmatpush1.msra.mxu0 0.0
      %2274 = vmatprep.subr.mxu0 0.0
      %2275 = vmatpush1.msra.mxu0 0.0
      %2276 = vmatprep.subr.mxu0 0.0
      %2277 = vmatpush1.msra.mxu0 0.0
      %2278 = vmatprep.subr.mxu0 0.0
      %2279 = vmatpush1.msra.mxu0 0.0
      %2280 = vmatprep.subr.mxu0 0.0
      %2281 = vmatpush1.msra.mxu0 0.0
      %2282 = vmatprep.subr.mxu0 0.0
      %2283 = vmatpush1.msra.mxu0 0.0
      %2284 = vmatprep.subr.mxu0 0.0
      %2285 = vmatpush1.msra.mxu0 0.0
      %2286 = vmatprep.subr.mxu0 0.0
      %2287 = vmatpush1.msra.mxu0 0.0
      %2288 = vmatprep.subr.mxu0 0.0
      %2289 = vmatpush1.msra.mxu0 0.0
      %2290 = vmatprep.subr.mxu0 0.0
      %2291 = vmatpush1.msra.mxu0 0.0
      %2292 = vmatprep.subr.mxu0 0.0
      %2293 = vmatpush1.msra.mxu0 0.0
      %2294 = vmatprep.subr.mxu0 0.0
      %2295 = vmatpush1.msra.mxu0 0.0
      %2296 = vmatprep.subr.mxu0 0.0
      %2297 = vmatpush1.msra.mxu0 0.0
      %2298 = vmatprep.subr.mxu0 0.0
      %2299 = vmatpush1.msra.mxu0 0.0
      %2300 = vmatprep.subr.mxu0 0.0
      %2301 = vmatpush1.msra.mxu0 0.0
      %2302 = vmatprep.subr.mxu0 0.0
      %2303 = vmatpush1.msra.mxu0 0.0
      %2304 = vmatprep.subr.mxu0 0.0
      %2305 = vmatpush1.msra.mxu0 0.0
      %2306 = vmatprep.subr.mxu0 0.0
      %2307 = vmatpush1.msra.mxu0 0.0
      %2308 = vmatprep.subr.mxu0 0.0
      %2309 = vmatpush1.msra.mxu0 0.0
      %2310 = vmatprep.subr.mxu0 0.0
      %2311 = vmatpush1.msra.mxu0 0.0
      %2312 = vmatprep.subr.mxu0 0.0
      %2313 = vmatpush1.msra.mxu0 0.0
      %2314 = vmatprep.subr.mxu0 0.0
      %2315 = vmatpush1.msra.mxu0 0.0
      %2316 = vmatprep.subr.mxu0 0.0
      %2317 = vmatpush1.msra.mxu0 0.0
      %2318 = vmatprep.subr.mxu0 0.0
      %2319 = vmatpush1.msra.mxu0 0.0
      %2320 = vmatprep.subr.mxu0 0.0
      %2321 = vmatpush1.msra.mxu0 0.0
      %2322 = vmatprep.subr.mxu0 0.0
      %2323 = vmatpush1.msra.mxu0 0.0
      %2324 = vmatprep.subr.mxu0 0.0
      %2325 = vmatpush1.msra.mxu0 0.0
      %2326 = vmatprep.mubr.f32.mxu0 0.0
      %2327 = vmatmul.mubr.f32.gmra.mrb[0].mxu0 %v2189
      %v2328 = vpop.f32.mrb[0].mxu0
      %v2329 = vadd.f32 0.0, %v2328
      %v2330 = vpop.f32.mrb[0].mxu0
      %v2331 = vadd.f32 0.0, %v2330
      %2332 = vdwg.mxu0
      %2333 = vmatprep.subr.mxu0 %v2177
      %2334 = vmatpush1.msra.mxu0 %v2176
      %2335 = vmatprep.subr.mxu0 0.0
      %2336 = vmatpush1.msra.mxu0 0.0
      %2337 = vmatprep.subr.mxu0 0.0
      %2338 = vmatpush1.msra.mxu0 0.0
      %2339 = vmatprep.subr.mxu0 0.0
      %2340 = vmatpush1.msra.mxu0 0.0
      %2341 = vmatprep.subr.mxu0 0.0
      %2342 = vmatpush1.msra.mxu0 0.0
      %2343 = vmatprep.subr.mxu0 0.0
      %2344 = vmatpush1.msra.mxu0 0.0
      %2345 = vmatprep.subr.mxu0 0.0
      %2346 = vmatpush1.msra.mxu0 0.0
      %2347 = vmatprep.subr.mxu0 0.0
      %2348 = vmatpush1.msra.mxu0 0.0
      %2349 = vmatprep.subr.mxu0 0.0
      %2350 = vmatpush1.msra.mxu0 0.0
      %2351 = vmatprep.subr.mxu0 0.0
      %2352 = vmatpush1.msra.mxu0 0.0
      %2353 = vmatprep.subr.mxu0 0.0
      %2354 = vmatpush1.msra.mxu0 0.0
      %2355 = vmatprep.subr.mxu0 0.0
      %2356 = vmatpush1.msra.mxu0 0.0
      %2357 = vmatprep.subr.mxu0 0.0
      %2358 = vmatpush1.msra.mxu0 0.0
      %2359 = vmatprep.subr.mxu0 0.0
      %2360 = vmatpush1.msra.mxu0 0.0
      %2361 = vmatprep.subr.mxu0 0.0
      %2362 = vmatpush1.msra.mxu0 0.0
      %2363 = vmatprep.subr.mxu0 0.0
      %2364 = vmatpush1.msra.mxu0 0.0
      %2365 = vmatprep.subr.mxu0 0.0
      %2366 = vmatpush1.msra.mxu0 0.0
      %2367 = vmatprep.subr.mxu0 0.0
      %2368 = vmatpush1.msra.mxu0 0.0
      %2369 = vmatprep.subr.mxu0 0.0
      %2370 = vmatpush1.msra.mxu0 0.0
      %2371 = vmatprep.subr.mxu0 0.0
      %2372 = vmatpush1.msra.mxu0 0.0
      %2373 = vmatprep.subr.mxu0 0.0
      %2374 = vmatpush1.msra.mxu0 0.0
      %2375 = vmatprep.subr.mxu0 0.0
      %2376 = vmatpush1.msra.mxu0 0.0
      %2377 = vmatprep.subr.mxu0 0.0
      %2378 = vmatpush1.msra.mxu0 0.0
      %2379 = vmatprep.subr.mxu0 0.0
      %2380 = vmatpush1.msra.mxu0 0.0
      %2381 = vmatprep.subr.mxu0 0.0
      %2382 = vmatpush1.msra.mxu0 0.0
      %2383 = vmatprep.subr.mxu0 0.0
      %2384 = vmatpush1.msra.mxu0 0.0
      %2385 = vmatprep.subr.mxu0 0.0
      %2386 = vmatpush1.msra.mxu0 0.0
      %2387 = vmatprep.subr.mxu0 0.0
      %2388 = vmatpush1.msra.mxu0 0.0
      %2389 = vmatprep.subr.mxu0 0.0
      %2390 = vmatpush1.msra.mxu0 0.0
      %2391 = vmatprep.subr.mxu0 0.0
      %2392 = vmatpush1.msra.mxu0 0.0
      %2393 = vmatprep.subr.mxu0 0.0
      %2394 = vmatpush1.msra.mxu0 0.0
      %2395 = vmatprep.subr.mxu0 0.0
      %2396 = vmatpush1.msra.mxu0 0.0
      %2397 = vmatprep.mubr.f32.mxu0 0.0
      %2398 = vmatmul.mubr.f32.gmra.mrb[0].mxu0 %v2189
      %v2399 = vpop.f32.mrb[0].mxu0
      %v2400 = vadd.f32 0.0, %v2399
      %v2401 = vpop.f32.mrb[0].mxu0
      %v2402 = vadd.f32 0.0, %v2401
      %2403 = vdwg.mxu0
      %2404 = vmatprep.subr.mxu0 %v2179
      %2405 = vmatpush1.msra.mxu0 %v2178
      %2406 = vmatprep.subr.mxu0 0.0
      %2407 = vmatpush1.msra.mxu0 0.0
      %2408 = vmatprep.subr.mxu0 0.0
      %2409 = vmatpush1.msra.mxu0 0.0
      %2410 = vmatprep.subr.mxu0 0.0
      %2411 = vmatpush1.msra.mxu0 0.0
      %2412 = vmatprep.subr.mxu0 0.0
      %2413 = vmatpush1.msra.mxu0 0.0
      %2414 = vmatprep.subr.mxu0 0.0
      %2415 = vmatpush1.msra.mxu0 0.0
      %2416 = vmatprep.subr.mxu0 0.0
      %2417 = vmatpush1.msra.mxu0 0.0
      %2418 = vmatprep.subr.mxu0 0.0
      %2419 = vmatpush1.msra.mxu0 0.0
      %2420 = vmatprep.subr.mxu0 0.0
      %2421 = vmatpush1.msra.mxu0 0.0
      %2422 = vmatprep.subr.mxu0 0.0
      %2423 = vmatpush1.msra.mxu0 0.0
      %2424 = vmatprep.subr.mxu0 0.0
      %2425 = vmatpush1.msra.mxu0 0.0
      %2426 = vmatprep.subr.mxu0 0.0
      %2427 = vmatpush1.msra.mxu0 0.0
      %2428 = vmatprep.subr.mxu0 0.0
      %2429 = vmatpush1.msra.mxu0 0.0
      %2430 = vmatprep.subr.mxu0 0.0
      %2431 = vmatpush1.msra.mxu0 0.0
      %2432 = vmatprep.subr.mxu0 0.0
      %2433 = vmatpush1.msra.mxu0 0.0
      %2434 = vmatprep.subr.mxu0 0.0
      %2435 = vmatpush1.msra.mxu0 0.0
      %2436 = vmatprep.subr.mxu0 0.0
      %2437 = vmatpush1.msra.mxu0 0.0
      %2438 = vmatprep.subr.mxu0 0.0
      %2439 = vmatpush1.msra.mxu0 0.0
      %2440 = vmatprep.subr.mxu0 0.0
      %2441 = vmatpush1.msra.mxu0 0.0
      %2442 = vmatprep.subr.mxu0 0.0
      %2443 = vmatpush1.msra.mxu0 0.0
      %2444 = vmatprep.subr.mxu0 0.0
      %2445 = vmatpush1.msra.mxu0 0.0
      %2446 = vmatprep.subr.mxu0 0.0
      %2447 = vmatpush1.msra.mxu0 0.0
      %2448 = vmatprep.subr.mxu0 0.0
      %2449 = vmatpush1.msra.mxu0 0.0
      %2450 = vmatprep.subr.mxu0 0.0
      %2451 = vmatpush1.msra.mxu0 0.0
      %2452 = vmatprep.subr.mxu0 0.0
      %2453 = vmatpush1.msra.mxu0 0.0
      %2454 = vmatprep.subr.mxu0 0.0
      %2455 = vmatpush1.msra.mxu0 0.0
      %2456 = vmatprep.subr.mxu0 0.0
      %2457 = vmatpush1.msra.mxu0 0.0
      %2458 = vmatprep.subr.mxu0 0.0
      %2459 = vmatpush1.msra.mxu0 0.0
      %2460 = vmatprep.subr.mxu0 0.0
      %2461 = vmatpush1.msra.mxu0 0.0
      %2462 = vmatprep.subr.mxu0 0.0
      %2463 = vmatpush1.msra.mxu0 0.0
      %2464 = vmatprep.subr.mxu0 0.0
      %2465 = vmatpush1.msra.mxu0 0.0
      %2466 = vmatprep.subr.mxu0 0.0
      %2467 = vmatpush1.msra.mxu0 0.0
      %2468 = vmatprep.mubr.f32.mxu0 0.0
      %2469 = vmatmul.mubr.f32.gmra.mrb[0].mxu0 %v2189
      %v2470 = vpop.f32.mrb[0].mxu0
      %v2471 = vadd.f32 0.0, %v2470
      %v2472 = vpop.f32.mrb[0].mxu0
      %v2473 = vadd.f32 0.0, %v2472
      %2474 = vdwg.mxu0
      %2475 = vmatprep.subr.mxu0 %v2181
      %2476 = vmatpush1.msra.mxu0 %v2180
      %2477 = vmatprep.subr.mxu0 0.0
      %2478 = vmatpush1.msra.mxu0 0.0
      %2479 = vmatprep.subr.mxu0 0.0
      %2480 = vmatpush1.msra.mxu0 0.0
      %2481 = vmatprep.subr.mxu0 0.0
      %2482 = vmatpush1.msra.mxu0 0.0
      %2483 = vmatprep.subr.mxu0 0.0
      %2484 = vmatpush1.msra.mxu0 0.0
      %2485 = vmatprep.subr.mxu0 0.0
      %2486 = vmatpush1.msra.mxu0 0.0
      %2487 = vmatprep.subr.mxu0 0.0
      %2488 = vmatpush1.msra.mxu0 0.0
      %2489 = vmatprep.subr.mxu0 0.0
      %2490 = vmatpush1.msra.mxu0 0.0
      %2491 = vmatprep.subr.mxu0 0.0
      %2492 = vmatpush1.msra.mxu0 0.0
      %2493 = vmatprep.subr.mxu0 0.0
      %2494 = vmatpush1.msra.mxu0 0.0
      %2495 = vmatprep.subr.mxu0 0.0
      %2496 = vmatpush1.msra.mxu0 0.0
      %2497 = vmatprep.subr.mxu0 0.0
      %2498 = vmatpush1.msra.mxu0 0.0
      %2499 = vmatprep.subr.mxu0 0.0
      %2500 = vmatpush1.msra.mxu0 0.0
      %2501 = vmatprep.subr.mxu0 0.0
      %2502 = vmatpush1.msra.mxu0 0.0
      %2503 = vmatprep.subr.mxu0 0.0
      %2504 = vmatpush1.msra.mxu0 0.0
      %2505 = vmatprep.subr.mxu0 0.0
      %2506 = vmatpush1.msra.mxu0 0.0
      %2507 = vmatprep.subr.mxu0 0.0
      %2508 = vmatpush1.msra.mxu0 0.0
      %2509 = vmatprep.subr.mxu0 0.0
      %2510 = vmatpush1.msra.mxu0 0.0
      %2511 = vmatprep.subr.mxu0 0.0
      %2512 = vmatpush1.msra.mxu0 0.0
      %2513 = vmatprep.subr.mxu0 0.0
      %2514 = vmatpush1.msra.mxu0 0.0
      %2515 = vmatprep.subr.mxu0 0.0
      %2516 = vmatpush1.msra.mxu0 0.0
      %2517 = vmatprep.subr.mxu0 0.0
      %2518 = vmatpush1.msra.mxu0 0.0
      %2519 = vmatprep.subr.mxu0 0.0
      %2520 = vmatpush1.msra.mxu0 0.0
      %2521 = vmatprep.subr.mxu0 0.0
      %2522 = vmatpush1.msra.mxu0 0.0
      %2523 = vmatprep.subr.mxu0 0.0
      %2524 = vmatpush1.msra.mxu0 0.0
      %2525 = vmatprep.subr.mxu0 0.0
      %2526 = vmatpush1.msra.mxu0 0.0
      %2527 = vmatprep.subr.mxu0 0.0
      %2528 = vmatpush1.msra.mxu0 0.0
      %2529 = vmatprep.subr.mxu0 0.0
      %2530 = vmatpush1.msra.mxu0 0.0
      %2531 = vmatprep.subr.mxu0 0.0
      %2532 = vmatpush1.msra.mxu0 0.0
      %2533 = vmatprep.subr.mxu0 0.0
      %2534 = vmatpush1.msra.mxu0 0.0
      %2535 = vmatprep.subr.mxu0 0.0
      %2536 = vmatpush1.msra.mxu0 0.0
      %2537 = vmatprep.subr.mxu0 0.0
      %2538 = vmatpush1.msra.mxu0 0.0
      %2539 = vmatprep.mubr.f32.mxu0 0.0
      %2540 = vmatmul.mubr.f32.gmra.mrb[0].mxu0 %v2189
      %v2541 = vpop.f32.mrb[0].mxu0
      %v2542 = vadd.f32 0.0, %v2541
      %v2543 = vpop.f32.mrb[0].mxu0
      %v2544 = vadd.f32 0.0, %v2543
      %2545 = vdwg.mxu0
      %2546 = vmatprep.subr.mxu0 %v2183
      %2547 = vmatpush1.msra.mxu0 %v2182
      %2548 = vmatprep.subr.mxu0 0.0
      %2549 = vmatpush1.msra.mxu0 0.0
      %2550 = vmatprep.subr.mxu0 0.0
      %2551 = vmatpush1.msra.mxu0 0.0
      %2552 = vmatprep.subr.mxu0 0.0
      %2553 = vmatpush1.msra.mxu0 0.0
      %2554 = vmatprep.subr.mxu0 0.0
      %2555 = vmatpush1.msra.mxu0 0.0
      %2556 = vmatprep.subr.mxu0 0.0
      %2557 = vmatpush1.msra.mxu0 0.0
      %2558 = vmatprep.subr.mxu0 0.0
      %2559 = vmatpush1.msra.mxu0 0.0
      %2560 = vmatprep.subr.mxu0 0.0
      %2561 = vmatpush1.msra.mxu0 0.0
      %2562 = vmatprep.subr.mxu0 0.0
      %2563 = vmatpush1.msra.mxu0 0.0
      %2564 = vmatprep.subr.mxu0 0.0
      %2565 = vmatpush1.msra.mxu0 0.0
      %2566 = vmatprep.subr.mxu0 0.0
      %2567 = vmatpush1.msra.mxu0 0.0
      %2568 = vmatprep.subr.mxu0 0.0
      %2569 = vmatpush1.msra.mxu0 0.0
      %2570 = vmatprep.subr.mxu0 0.0
      %2571 = vmatpush1.msra.mxu0 0.0
      %2572 = vmatprep.subr.mxu0 0.0
      %2573 = vmatpush1.msra.mxu0 0.0
      %2574 = vmatprep.subr.mxu0 0.0
      %2575 = vmatpush1.msra.mxu0 0.0
      %2576 = vmatprep.subr.mxu0 0.0
      %2577 = vmatpush1.msra.mxu0 0.0
      %2578 = vmatprep.subr.mxu0 0.0
      %2579 = vmatpush1.msra.mxu0 0.0
      %2580 = vmatprep.subr.mxu0 0.0
      %2581 = vmatpush1.msra.mxu0 0.0
      %2582 = vmatprep.subr.mxu0 0.0
      %2583 = vmatpush1.msra.mxu0 0.0
      %2584 = vmatprep.subr.mxu0 0.0
      %2585 = vmatpush1.msra.mxu0 0.0
      %2586 = vmatprep.subr.mxu0 0.0
      %2587 = vmatpush1.msra.mxu0 0.0
      %2588 = vmatprep.subr.mxu0 0.0
      %2589 = vmatpush1.msra.mxu0 0.0
      %2590 = vmatprep.subr.mxu0 0.0
      %2591 = vmatpush1.msra.mxu0 0.0
      %2592 = vmatprep.subr.mxu0 0.0
      %2593 = vmatpush1.msra.mxu0 0.0
      %2594 = vmatprep.subr.mxu0 0.0
      %2595 = vmatpush1.msra.mxu0 0.0
      %2596 = vmatprep.subr.mxu0 0.0
      %2597 = vmatpush1.msra.mxu0 0.0
      %2598 = vmatprep.subr.mxu0 0.0
      %2599 = vmatpush1.msra.mxu0 0.0
      %2600 = vmatprep.subr.mxu0 0.0
      %2601 = vmatpush1.msra.mxu0 0.0
      %2602 = vmatprep.subr.mxu0 0.0
      %2603 = vmatpush1.msra.mxu0 0.0
      %2604 = vmatprep.subr.mxu0 0.0
      %2605 = vmatpush1.msra.mxu0 0.0
      %2606 = vmatprep.subr.mxu0 0.0
      %2607 = vmatpush1.msra.mxu0 0.0
      %2608 = vmatprep.subr.mxu0 0.0
      %2609 = vmatpush1.msra.mxu0 0.0
      %2610 = vmatprep.mubr.f32.mxu0 0.0
      %2611 = vmatmul.mubr.f32.gmra.mrb[0].mxu0 %v2189
      %v2612 = vpop.f32.mrb[0].mxu0
      %v2613 = vadd.f32 0.0, %v2612
      %v2614 = vpop.f32.mrb[0].mxu0
      %v2615 = vadd.f32 0.0, %v2614
      %2616 = vdwg.mxu0
      %2617 = vmatprep.subr.mxu0 %v2185
      %2618 = vmatpush1.msra.mxu0 %v2184
      %2619 = vmatprep.subr.mxu0 0.0
      %2620 = vmatpush1.msra.mxu0 0.0
      %2621 = vmatprep.subr.mxu0 0.0
      %2622 = vmatpush1.msra.mxu0 0.0
      %2623 = vmatprep.subr.mxu0 0.0
      %2624 = vmatpush1.msra.mxu0 0.0
      %2625 = vmatprep.subr.mxu0 0.0
      %2626 = vmatpush1.msra.mxu0 0.0
      %2627 = vmatprep.subr.mxu0 0.0
      %2628 = vmatpush1.msra.mxu0 0.0
      %2629 = vmatprep.subr.mxu0 0.0
      %2630 = vmatpush1.msra.mxu0 0.0
      %2631 = vmatprep.subr.mxu0 0.0
      %2632 = vmatpush1.msra.mxu0 0.0
      %2633 = vmatprep.subr.mxu0 0.0
      %2634 = vmatpush1.msra.mxu0 0.0
      %2635 = vmatprep.subr.mxu0 0.0
      %2636 = vmatpush1.msra.mxu0 0.0
      %2637 = vmatprep.subr.mxu0 0.0
      %2638 = vmatpush1.msra.mxu0 0.0
      %2639 = vmatprep.subr.mxu0 0.0
      %2640 = vmatpush1.msra.mxu0 0.0
      %2641 = vmatprep.subr.mxu0 0.0
      %2642 = vmatpush1.msra.mxu0 0.0
      %2643 = vmatprep.subr.mxu0 0.0
      %2644 = vmatpush1.msra.mxu0 0.0
      %2645 = vmatprep.subr.mxu0 0.0
      %2646 = vmatpush1.msra.mxu0 0.0
      %2647 = vmatprep.subr.mxu0 0.0
      %2648 = vmatpush1.msra.mxu0 0.0
      %2649 = vmatprep.subr.mxu0 0.0
      %2650 = vmatpush1.msra.mxu0 0.0
      %2651 = vmatprep.subr.mxu0 0.0
      %2652 = vmatpush1.msra.mxu0 0.0
      %2653 = vmatprep.subr.mxu0 0.0
      %2654 = vmatpush1.msra.mxu0 0.0
      %2655 = vmatprep.subr.mxu0 0.0
      %2656 = vmatpush1.msra.mxu0 0.0
      %2657 = vmatprep.subr.mxu0 0.0
      %2658 = vmatpush1.msra.mxu0 0.0
      %2659 = vmatprep.subr.mxu0 0.0
      %2660 = vmatpush1.msra.mxu0 0.0
      %2661 = vmatprep.subr.mxu0 0.0
      %2662 = vmatpush1.msra.mxu0 0.0
      %2663 = vmatprep.subr.mxu0 0.0
      %2664 = vmatpush1.msra.mxu0 0.0
      %2665 = vmatprep.subr.mxu0 0.0
      %2666 = vmatpush1.msra.mxu0 0.0
      %2667 = vmatprep.subr.mxu0 0.0
      %2668 = vmatpush1.msra.mxu0 0.0
      %2669 = vmatprep.subr.mxu0 0.0
      %2670 = vmatpush1.msra.mxu0 0.0
      %2671 = vmatprep.subr.mxu0 0.0
      %2672 = vmatpush1.msra.mxu0 0.0
      %2673 = vmatprep.subr.mxu0 0.0
      %2674 = vmatpush1.msra.mxu0 0.0
      %2675 = vmatprep.subr.mxu0 0.0
      %2676 = vmatpush1.msra.mxu0 0.0
      %2677 = vmatprep.subr.mxu0 0.0
      %2678 = vmatpush1.msra.mxu0 0.0
      %2679 = vmatprep.subr.mxu0 0.0
      %2680 = vmatpush1.msra.mxu0 0.0
      %2681 = vmatprep.mubr.f32.mxu0 0.0
      %2682 = vmatmul.mubr.f32.gmra.mrb[0].mxu0 %v2189
      %v2683 = vpop.f32.mrb[0].mxu0
      %v2684 = vadd.f32 0.0, %v2683
      %v2685 = vpop.f32.mrb[0].mxu0
      %v2686 = vadd.f32 0.0, %v2685
      %2687 = vdwg.mxu0
      %2688 = vmatprep.subr.mxu0 %v2187
      %2689 = vmatpush1.msra.mxu0 %v2186
      %2690 = vmatprep.subr.mxu0 0.0
      %2691 = vmatpush1.msra.mxu0 0.0
      %2692 = vmatprep.subr.mxu0 0.0
      %2693 = vmatpush1.msra.mxu0 0.0
      %2694 = vmatprep.subr.mxu0 0.0
      %2695 = vmatpush1.msra.mxu0 0.0
      %2696 = vmatprep.subr.mxu0 0.0
      %2697 = vmatpush1.msra.mxu0 0.0
      %2698 = vmatprep.subr.mxu0 0.0
      %2699 = vmatpush1.msra.mxu0 0.0
      %2700 = vmatprep.subr.mxu0 0.0
      %2701 = vmatpush1.msra.mxu0 0.0
      %2702 = vmatprep.subr.mxu0 0.0
      %2703 = vmatpush1.msra.mxu0 0.0
      %2704 = vmatprep.subr.mxu0 0.0
      %2705 = vmatpush1.msra.mxu0 0.0
      %2706 = vmatprep.subr.mxu0 0.0
      %2707 = vmatpush1.msra.mxu0 0.0
      %2708 = vmatprep.subr.mxu0 0.0
      %2709 = vmatpush1.msra.mxu0 0.0
      %2710 = vmatprep.subr.mxu0 0.0
      %2711 = vmatpush1.msra.mxu0 0.0
      %2712 = vmatprep.subr.mxu0 0.0
      %2713 = vmatpush1.msra.mxu0 0.0
      %2714 = vmatprep.subr.mxu0 0.0
      %2715 = vmatpush1.msra.mxu0 0.0
      %2716 = vmatprep.subr.mxu0 0.0
      %2717 = vmatpush1.msra.mxu0 0.0
      %2718 = vmatprep.subr.mxu0 0.0
      %2719 = vmatpush1.msra.mxu0 0.0
      %2720 = vmatprep.subr.mxu0 0.0
      %2721 = vmatpush1.msra.mxu0 0.0
      %2722 = vmatprep.subr.mxu0 0.0
      %2723 = vmatpush1.msra.mxu0 0.0
      %2724 = vmatprep.subr.mxu0 0.0
      %2725 = vmatpush1.msra.mxu0 0.0
      %2726 = vmatprep.subr.mxu0 0.0
      %2727 = vmatpush1.msra.mxu0 0.0
      %2728 = vmatprep.subr.mxu0 0.0
      %2729 = vmatpush1.msra.mxu0 0.0
      %2730 = vmatprep.subr.mxu0 0.0
      %2731 = vmatpush1.msra.mxu0 0.0
      %2732 = vmatprep.subr.mxu0 0.0
      %2733 = vmatpush1.msra.mxu0 0.0
      %2734 = vmatprep.subr.mxu0 0.0
      %2735 = vmatpush1.msra.mxu0 0.0
      %2736 = vmatprep.subr.mxu0 0.0
      %2737 = vmatpush1.msra.mxu0 0.0
      %2738 = vmatprep.subr.mxu0 0.0
      %2739 = vmatpush1.msra.mxu0 0.0
      %2740 = vmatprep.subr.mxu0 0.0
      %2741 = vmatpush1.msra.mxu0 0.0
      %2742 = vmatprep.subr.mxu0 0.0
      %2743 = vmatpush1.msra.mxu0 0.0
      %2744 = vmatprep.subr.mxu0 0.0
      %2745 = vmatpush1.msra.mxu0 0.0
      %2746 = vmatprep.subr.mxu0 0.0
      %2747 = vmatpush1.msra.mxu0 0.0
      %2748 = vmatprep.subr.mxu0 0.0
      %2749 = vmatpush1.msra.mxu0 0.0
      %2750 = vmatprep.subr.mxu0 0.0
      %2751 = vmatpush1.msra.mxu0 0.0
      %2752 = vmatprep.mubr.f32.mxu0 0.0
      %2753 = vmatmul.mubr.f32.gmra.mrb[0].mxu0 %v2189
      %v2754 = vpop.f32.mrb[0].mxu0
      %v2755 = vadd.f32 0.0, %v2754
      %v2756 = vpop.f32.mrb[0].mxu0
      %v2757 = vadd.f32 0.0, %v2756
      %2758 = vdwg.mxu0
      %v2759 = vadd.f32 %v1669, %v2258
      %v2760 = vadd.f32 %v1671, %v2260
      %v2761 = vadd.f32 %v1740, %v2329
      %v2762 = vadd.f32 %v1742, %v2331
      %v2763 = vadd.f32 %v1811, %v2400
      %v2764 = vadd.f32 %v1813, %v2402
      %v2765 = vadd.f32 %v1882, %v2471
      %v2766 = vadd.f32 %v1884, %v2473
      %v2767 = vadd.f32 %v1953, %v2542
      %v2768 = vadd.f32 %v1955, %v2544
      %v2769 = vadd.f32 %v2024, %v2613
      %v2770 = vadd.f32 %v2026, %v2615
      %v2771 = vadd.f32 %v2095, %v2684
      %v2772 = vadd.f32 %v2097, %v2686
      %v2773 = vadd.f32 %v2166, %v2755
      %v2774 = vadd.f32 %v2168, %v2757
      %s2775 = scalar_lea.vmem %s3, 12
      %v2776 = vld [vmem:[%s2775] sm:$0xf]
      %v2777 = vld [vmem:[#allocation2 + $0x18] sm:$0xff]
      %v2778 = vld [vmem:[#allocation2 + $0x20] sm:$0xff]
      %v2779 = vld [vmem:[#allocation2 + $0x28] sm:$0xff]
      %v2780 = vld [vmem:[#allocation2 + $0x30] sm:$0xff]
      %v2781 = vld [vmem:[#allocation2 + $0x38] sm:$0xff]
      %v2782 = vld [vmem:[#allocation2 + $0x40] sm:$0xff]
      %v2783 = vld [vmem:[#allocation2 + $0x48] sm:$0xff]
      %v2784 = vld [vmem:[#allocation2 + $0x50] sm:$0xff]
      %v2785 = vld [vmem:[#allocation2 + $0x58] sm:$0xff]
      %v2786 = vld [vmem:[#allocation2 + $0x60] sm:$0xff]
      %v2787 = vld [vmem:[#allocation2 + $0x68] sm:$0xff]
      %v2788 = vld [vmem:[#allocation2 + $0x70] sm:$0xff]
      %v2789 = vld [vmem:[#allocation2 + $0x78] sm:$0xff]
      %v2790 = vld [vmem:[#allocation2 + $0x80] sm:$0xff]
      %v2791 = vld [vmem:[#allocation2 + $0x88] sm:$0xff]
      %v2792 = vld [vmem:[#allocation2 + $0x90] sm:$0xff]
      %v2794 = vsel %vm353, %v2776, 0
      %2796 = vmatprep.subr.mxu0 %v2778
      %2797 = vmatpush1.msra.mxu0 %v2777
      %2798 = vmatprep.subr.mxu0 0.0
      %2799 = vmatpush1.msra.mxu0 0.0
      %2800 = vmatprep.subr.mxu0 0.0
      %2801 = vmatpush1.msra.mxu0 0.0
      %2802 = vmatprep.subr.mxu0 0.0
      %2803 = vmatpush1.msra.mxu0 0.0
      %2804 = vmatprep.subr.mxu0 0.0
      %2805 = vmatpush1.msra.mxu0 0.0
      %2806 = vmatprep.subr.mxu0 0.0
      %2807 = vmatpush1.msra.mxu0 0.0
      %2808 = vmatprep.subr.mxu0 0.0
      %2809 = vmatpush1.msra.mxu0 0.0
      %2810 = vmatprep.subr.mxu0 0.0
      %2811 = vmatpush1.msra.mxu0 0.0
      %2812 = vmatprep.subr.mxu0 0.0
      %2813 = vmatpush1.msra.mxu0 0.0
      %2814 = vmatprep.subr.mxu0 0.0
      %2815 = vmatpush1.msra.mxu0 0.0
      %2816 = vmatprep.subr.mxu0 0.0
      %2817 = vmatpush1.msra.mxu0 0.0
      %2818 = vmatprep.subr.mxu0 0.0
      %2819 = vmatpush1.msra.mxu0 0.0
      %2820 = vmatprep.subr.mxu0 0.0
      %2821 = vmatpush1.msra.mxu0 0.0
      %2822 = vmatprep.subr.mxu0 0.0
      %2823 = vmatpush1.msra.mxu0 0.0
      %2824 = vmatprep.subr.mxu0 0.0
      %2825 = vmatpush1.msra.mxu0 0.0
      %2826 = vmatprep.subr.mxu0 0.0
      %2827 = vmatpush1.msra.mxu0 0.0
      %2828 = vmatprep.subr.mxu0 0.0
      %2829 = vmatpush1.msra.mxu0 0.0
      %2830 = vmatprep.subr.mxu0 0.0
      %2831 = vmatpush1.msra.mxu0 0.0
      %2832 = vmatprep.subr.mxu0 0.0
      %2833 = vmatpush1.msra.mxu0 0.0
      %2834 = vmatprep.subr.mxu0 0.0
      %2835 = vmatpush1.msra.mxu0 0.0
      %2836 = vmatprep.subr.mxu0 0.0
      %2837 = vmatpush1.msra.mxu0 0.0
      %2838 = vmatprep.subr.mxu0 0.0
      %2839 = vmatpush1.msra.mxu0 0.0
      %2840 = vmatprep.subr.mxu0 0.0
      %2841 = vmatpush1.msra.mxu0 0.0
      %2842 = vmatprep.subr.mxu0 0.0
      %2843 = vmatpush1.msra.mxu0 0.0
      %2844 = vmatprep.subr.mxu0 0.0
      %2845 = vmatpush1.msra.mxu0 0.0
      %2846 = vmatprep.subr.mxu0 0.0
      %2847 = vmatpush1.msra.mxu0 0.0
      %2848 = vmatprep.subr.mxu0 0.0
      %2849 = vmatpush1.msra.mxu0 0.0
      %2850 = vmatprep.subr.mxu0 0.0
      %2851 = vmatpush1.msra.mxu0 0.0
      %2852 = vmatprep.subr.mxu0 0.0
      %2853 = vmatpush1.msra.mxu0 0.0
      %2854 = vmatprep.subr.mxu0 0.0
      %2855 = vmatpush1.msra.mxu0 0.0
      %2856 = vmatprep.subr.mxu0 0.0
      %2857 = vmatpush1.msra.mxu0 0.0
      %2858 = vmatprep.subr.mxu0 0.0
      %2859 = vmatpush1.msra.mxu0 0.0
      %2860 = vmatprep.mubr.f32.mxu0 0.0
      %2861 = vmatmul.mubr.f32.gmra.mrb[0].mxu0 %v2794
      %v2862 = vpop.f32.mrb[0].mxu0
      %v2863 = vadd.f32 0.0, %v2862
      %v2864 = vpop.f32.mrb[0].mxu0
      %v2865 = vadd.f32 0.0, %v2864
      %2866 = vdwg.mxu0
      %2867 = vmatprep.subr.mxu0 %v2780
      %2868 = vmatpush1.msra.mxu0 %v2779
      %2869 = vmatprep.subr.mxu0 0.0
      %2870 = vmatpush1.msra.mxu0 0.0
      %2871 = vmatprep.subr.mxu0 0.0
      %2872 = vmatpush1.msra.mxu0 0.0
      %2873 = vmatprep.subr.mxu0 0.0
      %2874 = vmatpush1.msra.mxu0 0.0
      %2875 = vmatprep.subr.mxu0 0.0
      %2876 = vmatpush1.msra.mxu0 0.0
      %2877 = vmatprep.subr.mxu0 0.0
      %2878 = vmatpush1.msra.mxu0 0.0
      %2879 = vmatprep.subr.mxu0 0.0
      %2880 = vmatpush1.msra.mxu0 0.0
      %2881 = vmatprep.subr.mxu0 0.0
      %2882 = vmatpush1.msra.mxu0 0.0
      %2883 = vmatprep.subr.mxu0 0.0
      %2884 = vmatpush1.msra.mxu0 0.0
      %2885 = vmatprep.subr.mxu0 0.0
      %2886 = vmatpush1.msra.mxu0 0.0
      %2887 = vmatprep.subr.mxu0 0.0
      %2888 = vmatpush1.msra.mxu0 0.0
      %2889 = vmatprep.subr.mxu0 0.0
      %2890 = vmatpush1.msra.mxu0 0.0
      %2891 = vmatprep.subr.mxu0 0.0
      %2892 = vmatpush1.msra.mxu0 0.0
      %2893 = vmatprep.subr.mxu0 0.0
      %2894 = vmatpush1.msra.mxu0 0.0
      %2895 = vmatprep.subr.mxu0 0.0
      %2896 = vmatpush1.msra.mxu0 0.0
      %2897 = vmatprep.subr.mxu0 0.0
      %2898 = vmatpush1.msra.mxu0 0.0
      %2899 = vmatprep.subr.mxu0 0.0
      %2900 = vmatpush1.msra.mxu0 0.0
      %2901 = vmatprep.subr.mxu0 0.0
      %2902 = vmatpush1.msra.mxu0 0.0
      %2903 = vmatprep.subr.mxu0 0.0
      %2904 = vmatpush1.msra.mxu0 0.0
      %2905 = vmatprep.subr.mxu0 0.0
      %2906 = vmatpush1.msra.mxu0 0.0
      %2907 = vmatprep.subr.mxu0 0.0
      %2908 = vmatpush1.msra.mxu0 0.0
      %2909 = vmatprep.subr.mxu0 0.0
      %2910 = vmatpush1.msra.mxu0 0.0
      %2911 = vmatprep.subr.mxu0 0.0
      %2912 = vmatpush1.msra.mxu0 0.0
      %2913 = vmatprep.subr.mxu0 0.0
      %2914 = vmatpush1.msra.mxu0 0.0
      %2915 = vmatprep.subr.mxu0 0.0
      %2916 = vmatpush1.msra.mxu0 0.0
      %2917 = vmatprep.subr.mxu0 0.0
      %2918 = vmatpush1.msra.mxu0 0.0
      %2919 = vmatprep.subr.mxu0 0.0
      %2920 = vmatpush1.msra.mxu0 0.0
      %2921 = vmatprep.subr.mxu0 0.0
      %2922 = vmatpush1.msra.mxu0 0.0
      %2923 = vmatprep.subr.mxu0 0.0
      %2924 = vmatpush1.msra.mxu0 0.0
      %2925 = vmatprep.subr.mxu0 0.0
      %2926 = vmatpush1.msra.mxu0 0.0
      %2927 = vmatprep.subr.mxu0 0.0
      %2928 = vmatpush1.msra.mxu0 0.0
      %2929 = vmatprep.subr.mxu0 0.0
      %2930 = vmatpush1.msra.mxu0 0.0
      %2931 = vmatprep.mubr.f32.mxu0 0.0
      %2932 = vmatmul.mubr.f32.gmra.mrb[0].mxu0 %v2794
      %v2933 = vpop.f32.mrb[0].mxu0
      %v2934 = vadd.f32 0.0, %v2933
      %v2935 = vpop.f32.mrb[0].mxu0
      %v2936 = vadd.f32 0.0, %v2935
      %2937 = vdwg.mxu0
      %2938 = vmatprep.subr.mxu0 %v2782
      %2939 = vmatpush1.msra.mxu0 %v2781
      %2940 = vmatprep.subr.mxu0 0.0
      %2941 = vmatpush1.msra.mxu0 0.0
      %2942 = vmatprep.subr.mxu0 0.0
      %2943 = vmatpush1.msra.mxu0 0.0
      %2944 = vmatprep.subr.mxu0 0.0
      %2945 = vmatpush1.msra.mxu0 0.0
      %2946 = vmatprep.subr.mxu0 0.0
      %2947 = vmatpush1.msra.mxu0 0.0
      %2948 = vmatprep.subr.mxu0 0.0
      %2949 = vmatpush1.msra.mxu0 0.0
      %2950 = vmatprep.subr.mxu0 0.0
      %2951 = vmatpush1.msra.mxu0 0.0
      %2952 = vmatprep.subr.mxu0 0.0
      %2953 = vmatpush1.msra.mxu0 0.0
      %2954 = vmatprep.subr.mxu0 0.0
      %2955 = vmatpush1.msra.mxu0 0.0
      %2956 = vmatprep.subr.mxu0 0.0
      %2957 = vmatpush1.msra.mxu0 0.0
      %2958 = vmatprep.subr.mxu0 0.0
      %2959 = vmatpush1.msra.mxu0 0.0
      %2960 = vmatprep.subr.mxu0 0.0
      %2961 = vmatpush1.msra.mxu0 0.0
      %2962 = vmatprep.subr.mxu0 0.0
      %2963 = vmatpush1.msra.mxu0 0.0
      %2964 = vmatprep.subr.mxu0 0.0
      %2965 = vmatpush1.msra.mxu0 0.0
      %2966 = vmatprep.subr.mxu0 0.0
      %2967 = vmatpush1.msra.mxu0 0.0
      %2968 = vmatprep.subr.mxu0 0.0
      %2969 = vmatpush1.msra.mxu0 0.0
      %2970 = vmatprep.subr.mxu0 0.0
      %2971 = vmatpush1.msra.mxu0 0.0
      %2972 = vmatprep.subr.mxu0 0.0
      %2973 = vmatpush1.msra.mxu0 0.0
      %2974 = vmatprep.subr.mxu0 0.0
      %2975 = vmatpush1.msra.mxu0 0.0
      %2976 = vmatprep.subr.mxu0 0.0
      %2977 = vmatpush1.msra.mxu0 0.0
      %2978 = vmatprep.subr.mxu0 0.0
      %2979 = vmatpush1.msra.mxu0 0.0
      %2980 = vmatprep.subr.mxu0 0.0
      %2981 = vmatpush1.msra.mxu0 0.0
      %2982 = vmatprep.subr.mxu0 0.0
      %2983 = vmatpush1.msra.mxu0 0.0
      %2984 = vmatprep.subr.mxu0 0.0
      %2985 = vmatpush1.msra.mxu0 0.0
      %2986 = vmatprep.subr.mxu0 0.0
      %2987 = vmatpush1.msra.mxu0 0.0
      %2988 = vmatprep.subr.mxu0 0.0
      %2989 = vmatpush1.msra.mxu0 0.0
      %2990 = vmatprep.subr.mxu0 0.0
      %2991 = vmatpush1.msra.mxu0 0.0
      %2992 = vmatprep.subr.mxu0 0.0
      %2993 = vmatpush1.msra.mxu0 0.0
      %2994 = vmatprep.subr.mxu0 0.0
      %2995 = vmatpush1.msra.mxu0 0.0
      %2996 = vmatprep.subr.mxu0 0.0
      %2997 = vmatpush1.msra.mxu0 0.0
      %2998 = vmatprep.subr.mxu0 0.0
      %2999 = vmatpush1.msra.mxu0 0.0
      %3000 = vmatprep.subr.mxu0 0.0
      %3001 = vmatpush1.msra.mxu0 0.0
      %3002 = vmatprep.mubr.f32.mxu0 0.0
      %3003 = vmatmul.mubr.f32.gmra.mrb[0].mxu0 %v2794
      %v3004 = vpop.f32.mrb[0].mxu0
      %v3005 = vadd.f32 0.0, %v3004
      %v3006 = vpop.f32.mrb[0].mxu0
      %v3007 = vadd.f32 0.0, %v3006
      %3008 = vdwg.mxu0
      %3009 = vmatprep.subr.mxu0 %v2784
      %3010 = vmatpush1.msra.mxu0 %v2783
      %3011 = vmatprep.subr.mxu0 0.0
      %3012 = vmatpush1.msra.mxu0 0.0
      %3013 = vmatprep.subr.mxu0 0.0
      %3014 = vmatpush1.msra.mxu0 0.0
      %3015 = vmatprep.subr.mxu0 0.0
      %3016 = vmatpush1.msra.mxu0 0.0
      %3017 = vmatprep.subr.mxu0 0.0
      %3018 = vmatpush1.msra.mxu0 0.0
      %3019 = vmatprep.subr.mxu0 0.0
      %3020 = vmatpush1.msra.mxu0 0.0
      %3021 = vmatprep.subr.mxu0 0.0
      %3022 = vmatpush1.msra.mxu0 0.0
      %3023 = vmatprep.subr.mxu0 0.0
      %3024 = vmatpush1.msra.mxu0 0.0
      %3025 = vmatprep.subr.mxu0 0.0
      %3026 = vmatpush1.msra.mxu0 0.0
      %3027 = vmatprep.subr.mxu0 0.0
      %3028 = vmatpush1.msra.mxu0 0.0
      %3029 = vmatprep.subr.mxu0 0.0
      %3030 = vmatpush1.msra.mxu0 0.0
      %3031 = vmatprep.subr.mxu0 0.0
      %3032 = vmatpush1.msra.mxu0 0.0
      %3033 = vmatprep.subr.mxu0 0.0
      %3034 = vmatpush1.msra.mxu0 0.0
      %3035 = vmatprep.subr.mxu0 0.0
      %3036 = vmatpush1.msra.mxu0 0.0
      %3037 = vmatprep.subr.mxu0 0.0
      %3038 = vmatpush1.msra.mxu0 0.0
      %3039 = vmatprep.subr.mxu0 0.0
      %3040 = vmatpush1.msra.mxu0 0.0
      %3041 = vmatprep.subr.mxu0 0.0
      %3042 = vmatpush1.msra.mxu0 0.0
      %3043 = vmatprep.subr.mxu0 0.0
      %3044 = vmatpush1.msra.mxu0 0.0
      %3045 = vmatprep.subr.mxu0 0.0
      %3046 = vmatpush1.msra.mxu0 0.0
      %3047 = vmatprep.subr.mxu0 0.0
      %3048 = vmatpush1.msra.mxu0 0.0
      %3049 = vmatprep.subr.mxu0 0.0
      %3050 = vmatpush1.msra.mxu0 0.0
      %3051 = vmatprep.subr.mxu0 0.0
      %3052 = vmatpush1.msra.mxu0 0.0
      %3053 = vmatprep.subr.mxu0 0.0
      %3054 = vmatpush1.msra.mxu0 0.0
      %3055 = vmatprep.subr.mxu0 0.0
      %3056 = vmatpush1.msra.mxu0 0.0
      %3057 = vmatprep.subr.mxu0 0.0
      %3058 = vmatpush1.msra.mxu0 0.0
      %3059 = vmatprep.subr.mxu0 0.0
      %3060 = vmatpush1.msra.mxu0 0.0
      %3061 = vmatprep.subr.mxu0 0.0
      %3062 = vmatpush1.msra.mxu0 0.0
      %3063 = vmatprep.subr.mxu0 0.0
      %3064 = vmatpush1.msra.mxu0 0.0
      %3065 = vmatprep.subr.mxu0 0.0
      %3066 = vmatpush1.msra.mxu0 0.0
      %3067 = vmatprep.subr.mxu0 0.0
      %3068 = vmatpush1.msra.mxu0 0.0
      %3069 = vmatprep.subr.mxu0 0.0
      %3070 = vmatpush1.msra.mxu0 0.0
      %3071 = vmatprep.subr.mxu0 0.0
      %3072 = vmatpush1.msra.mxu0 0.0
      %3073 = vmatprep.mubr.f32.mxu0 0.0
      %3074 = vmatmul.mubr.f32.gmra.mrb[0].mxu0 %v2794
      %v3075 = vpop.f32.mrb[0].mxu0
      %v3076 = vadd.f32 0.0, %v3075
      %v3077 = vpop.f32.mrb[0].mxu0
      %v3078 = vadd.f32 0.0, %v3077
      %3079 = vdwg.mxu0
      %3080 = vmatprep.subr.mxu0 %v2786
      %3081 = vmatpush1.msra.mxu0 %v2785
      %3082 = vmatprep.subr.mxu0 0.0
      %3083 = vmatpush1.msra.mxu0 0.0
      %3084 = vmatprep.subr.mxu0 0.0
      %3085 = vmatpush1.msra.mxu0 0.0
      %3086 = vmatprep.subr.mxu0 0.0
      %3087 = vmatpush1.msra.mxu0 0.0
      %3088 = vmatprep.subr.mxu0 0.0
      %3089 = vmatpush1.msra.mxu0 0.0
      %3090 = vmatprep.subr.mxu0 0.0
      %3091 = vmatpush1.msra.mxu0 0.0
      %3092 = vmatprep.subr.mxu0 0.0
      %3093 = vmatpush1.msra.mxu0 0.0
      %3094 = vmatprep.subr.mxu0 0.0
      %3095 = vmatpush1.msra.mxu0 0.0
      %3096 = vmatprep.subr.mxu0 0.0
      %3097 = vmatpush1.msra.mxu0 0.0
      %3098 = vmatprep.subr.mxu0 0.0
      %3099 = vmatpush1.msra.mxu0 0.0
      %3100 = vmatprep.subr.mxu0 0.0
      %3101 = vmatpush1.msra.mxu0 0.0
      %3102 = vmatprep.subr.mxu0 0.0
      %3103 = vmatpush1.msra.mxu0 0.0
      %3104 = vmatprep.subr.mxu0 0.0
      %3105 = vmatpush1.msra.mxu0 0.0
      %3106 = vmatprep.subr.mxu0 0.0
      %3107 = vmatpush1.msra.mxu0 0.0
      %3108 = vmatprep.subr.mxu0 0.0
      %3109 = vmatpush1.msra.mxu0 0.0
      %3110 = vmatprep.subr.mxu0 0.0
      %3111 = vmatpush1.msra.mxu0 0.0
      %3112 = vmatprep.subr.mxu0 0.0
      %3113 = vmatpush1.msra.mxu0 0.0
      %3114 = vmatprep.subr.mxu0 0.0
      %3115 = vmatpush1.msra.mxu0 0.0
      %3116 = vmatprep.subr.mxu0 0.0
      %3117 = vmatpush1.msra.mxu0 0.0
      %3118 = vmatprep.subr.mxu0 0.0
      %3119 = vmatpush1.msra.mxu0 0.0
      %3120 = vmatprep.subr.mxu0 0.0
      %3121 = vmatpush1.msra.mxu0 0.0
      %3122 = vmatprep.subr.mxu0 0.0
      %3123 = vmatpush1.msra.mxu0 0.0
      %3124 = vmatprep.subr.mxu0 0.0
      %3125 = vmatpush1.msra.mxu0 0.0
      %3126 = vmatprep.subr.mxu0 0.0
      %3127 = vmatpush1.msra.mxu0 0.0
      %3128 = vmatprep.subr.mxu0 0.0
      %3129 = vmatpush1.msra.mxu0 0.0
      %3130 = vmatprep.subr.mxu0 0.0
      %3131 = vmatpush1.msra.mxu0 0.0
      %3132 = vmatprep.subr.mxu0 0.0
      %3133 = vmatpush1.msra.mxu0 0.0
      %3134 = vmatprep.subr.mxu0 0.0
      %3135 = vmatpush1.msra.mxu0 0.0
      %3136 = vmatprep.subr.mxu0 0.0
      %3137 = vmatpush1.msra.mxu0 0.0
      %3138 = vmatprep.subr.mxu0 0.0
      %3139 = vmatpush1.msra.mxu0 0.0
      %3140 = vmatprep.subr.mxu0 0.0
      %3141 = vmatpush1.msra.mxu0 0.0
      %3142 = vmatprep.subr.mxu0 0.0
      %3143 = vmatpush1.msra.mxu0 0.0
      %3144 = vmatprep.mubr.f32.mxu0 0.0
      %3145 = vmatmul.mubr.f32.gmra.mrb[0].mxu0 %v2794
      %v3146 = vpop.f32.mrb[0].mxu0
      %v3147 = vadd.f32 0.0, %v3146
      %v3148 = vpop.f32.mrb[0].mxu0
      %v3149 = vadd.f32 0.0, %v3148
      %3150 = vdwg.mxu0
      %3151 = vmatprep.subr.mxu0 %v2788
      %3152 = vmatpush1.msra.mxu0 %v2787
      %3153 = vmatprep.subr.mxu0 0.0
      %3154 = vmatpush1.msra.mxu0 0.0
      %3155 = vmatprep.subr.mxu0 0.0
      %3156 = vmatpush1.msra.mxu0 0.0
      %3157 = vmatprep.subr.mxu0 0.0
      %3158 = vmatpush1.msra.mxu0 0.0
      %3159 = vmatprep.subr.mxu0 0.0
      %3160 = vmatpush1.msra.mxu0 0.0
      %3161 = vmatprep.subr.mxu0 0.0
      %3162 = vmatpush1.msra.mxu0 0.0
      %3163 = vmatprep.subr.mxu0 0.0
      %3164 = vmatpush1.msra.mxu0 0.0
      %3165 = vmatprep.subr.mxu0 0.0
      %3166 = vmatpush1.msra.mxu0 0.0
      %3167 = vmatprep.subr.mxu0 0.0
      %3168 = vmatpush1.msra.mxu0 0.0
      %3169 = vmatprep.subr.mxu0 0.0
      %3170 = vmatpush1.msra.mxu0 0.0
      %3171 = vmatprep.subr.mxu0 0.0
      %3172 = vmatpush1.msra.mxu0 0.0
      %3173 = vmatprep.subr.mxu0 0.0
      %3174 = vmatpush1.msra.mxu0 0.0
      %3175 = vmatprep.subr.mxu0 0.0
      %3176 = vmatpush1.msra.mxu0 0.0
      %3177 = vmatprep.subr.mxu0 0.0
      %3178 = vmatpush1.msra.mxu0 0.0
      %3179 = vmatprep.subr.mxu0 0.0
      %3180 = vmatpush1.msra.mxu0 0.0
      %3181 = vmatprep.subr.mxu0 0.0
      %3182 = vmatpush1.msra.mxu0 0.0
      %3183 = vmatprep.subr.mxu0 0.0
      %3184 = vmatpush1.msra.mxu0 0.0
      %3185 = vmatprep.subr.mxu0 0.0
      %3186 = vmatpush1.msra.mxu0 0.0
      %3187 = vmatprep.subr.mxu0 0.0
      %3188 = vmatpush1.msra.mxu0 0.0
      %3189 = vmatprep.subr.mxu0 0.0
      %3190 = vmatpush1.msra.mxu0 0.0
      %3191 = vmatprep.subr.mxu0 0.0
      %3192 = vmatpush1.msra.mxu0 0.0
      %3193 = vmatprep.subr.mxu0 0.0
      %3194 = vmatpush1.msra.mxu0 0.0
      %3195 = vmatprep.subr.mxu0 0.0
      %3196 = vmatpush1.msra.mxu0 0.0
      %3197 = vmatprep.subr.mxu0 0.0
      %3198 = vmatpush1.msra.mxu0 0.0
      %3199 = vmatprep.subr.mxu0 0.0
      %3200 = vmatpush1.msra.mxu0 0.0
      %3201 = vmatprep.subr.mxu0 0.0
      %3202 = vmatpush1.msra.mxu0 0.0
      %3203 = vmatprep.subr.mxu0 0.0
      %3204 = vmatpush1.msra.mxu0 0.0
      %3205 = vmatprep.subr.mxu0 0.0
      %3206 = vmatpush1.msra.mxu0 0.0
      %3207 = vmatprep.subr.mxu0 0.0
      %3208 = vmatpush1.msra.mxu0 0.0
      %3209 = vmatprep.subr.mxu0 0.0
      %3210 = vmatpush1.msra.mxu0 0.0
      %3211 = vmatprep.subr.mxu0 0.0
      %3212 = vmatpush1.msra.mxu0 0.0
      %3213 = vmatprep.subr.mxu0 0.0
      %3214 = vmatpush1.msra.mxu0 0.0
      %3215 = vmatprep.mubr.f32.mxu0 0.0
      %3216 = vmatmul.mubr.f32.gmra.mrb[0].mxu0 %v2794
      %v3217 = vpop.f32.mrb[0].mxu0
      %v3218 = vadd.f32 0.0, %v3217
      %v3219 = vpop.f32.mrb[0].mxu0
      %v3220 = vadd.f32 0.0, %v3219
      %3221 = vdwg.mxu0
      %3222 = vmatprep.subr.mxu0 %v2790
      %3223 = vmatpush1.msra.mxu0 %v2789
      %3224 = vmatprep.subr.mxu0 0.0
      %3225 = vmatpush1.msra.mxu0 0.0
      %3226 = vmatprep.subr.mxu0 0.0
      %3227 = vmatpush1.msra.mxu0 0.0
      %3228 = vmatprep.subr.mxu0 0.0
      %3229 = vmatpush1.msra.mxu0 0.0
      %3230 = vmatprep.subr.mxu0 0.0
      %3231 = vmatpush1.msra.mxu0 0.0
      %3232 = vmatprep.subr.mxu0 0.0
      %3233 = vmatpush1.msra.mxu0 0.0
      %3234 = vmatprep.subr.mxu0 0.0
      %3235 = vmatpush1.msra.mxu0 0.0
      %3236 = vmatprep.subr.mxu0 0.0
      %3237 = vmatpush1.msra.mxu0 0.0
      %3238 = vmatprep.subr.mxu0 0.0
      %3239 = vmatpush1.msra.mxu0 0.0
      %3240 = vmatprep.subr.mxu0 0.0
      %3241 = vmatpush1.msra.mxu0 0.0
      %3242 = vmatprep.subr.mxu0 0.0
      %3243 = vmatpush1.msra.mxu0 0.0
      %3244 = vmatprep.subr.mxu0 0.0
      %3245 = vmatpush1.msra.mxu0 0.0
      %3246 = vmatprep.subr.mxu0 0.0
      %3247 = vmatpush1.msra.mxu0 0.0
      %3248 = vmatprep.subr.mxu0 0.0
      %3249 = vmatpush1.msra.mxu0 0.0
      %3250 = vmatprep.subr.mxu0 0.0
      %3251 = vmatpush1.msra.mxu0 0.0
      %3252 = vmatprep.subr.mxu0 0.0
      %3253 = vmatpush1.msra.mxu0 0.0
      %3254 = vmatprep.subr.mxu0 0.0
      %3255 = vmatpush1.msra.mxu0 0.0
      %3256 = vmatprep.subr.mxu0 0.0
      %3257 = vmatpush1.msra.mxu0 0.0
      %3258 = vmatprep.subr.mxu0 0.0
      %3259 = vmatpush1.msra.mxu0 0.0
      %3260 = vmatprep.subr.mxu0 0.0
      %3261 = vmatpush1.msra.mxu0 0.0
      %3262 = vmatprep.subr.mxu0 0.0
      %3263 = vmatpush1.msra.mxu0 0.0
      %3264 = vmatprep.subr.mxu0 0.0
      %3265 = vmatpush1.msra.mxu0 0.0
      %3266 = vmatprep.subr.mxu0 0.0
      %3267 = vmatpush1.msra.mxu0 0.0
      %3268 = vmatprep.subr.mxu0 0.0
      %3269 = vmatpush1.msra.mxu0 0.0
      %3270 = vmatprep.subr.mxu0 0.0
      %3271 = vmatpush1.msra.mxu0 0.0
      %3272 = vmatprep.subr.mxu0 0.0
      %3273 = vmatpush1.msra.mxu0 0.0
      %3274 = vmatprep.subr.mxu0 0.0
      %3275 = vmatpush1.msra.mxu0 0.0
      %3276 = vmatprep.subr.mxu0 0.0
      %3277 = vmatpush1.msra.mxu0 0.0
      %3278 = vmatprep.subr.mxu0 0.0
      %3279 = vmatpush1.msra.mxu0 0.0
      %3280 = vmatprep.subr.mxu0 0.0
      %3281 = vmatpush1.msra.mxu0 0.0
      %3282 = vmatprep.subr.mxu0 0.0
      %3283 = vmatpush1.msra.mxu0 0.0
      %3284 = vmatprep.subr.mxu0 0.0
      %3285 = vmatpush1.msra.mxu0 0.0
      %3286 = vmatprep.mubr.f32.mxu0 0.0
      %3287 = vmatmul.mubr.f32.gmra.mrb[0].mxu0 %v2794
      %v3288 = vpop.f32.mrb[0].mxu0
      %v3289 = vadd.f32 0.0, %v3288
      %v3290 = vpop.f32.mrb[0].mxu0
      %v3291 = vadd.f32 0.0, %v3290
      %3292 = vdwg.mxu0
      %3293 = vmatprep.subr.mxu0 %v2792
      %3294 = vmatpush1.msra.mxu0 %v2791
      %3295 = vmatprep.subr.mxu0 0.0
      %3296 = vmatpush1.msra.mxu0 0.0
      %3297 = vmatprep.subr.mxu0 0.0
      %3298 = vmatpush1.msra.mxu0 0.0
      %3299 = vmatprep.subr.mxu0 0.0
      %3300 = vmatpush1.msra.mxu0 0.0
      %3301 = vmatprep.subr.mxu0 0.0
      %3302 = vmatpush1.msra.mxu0 0.0
      %3303 = vmatprep.subr.mxu0 0.0
      %3304 = vmatpush1.msra.mxu0 0.0
      %3305 = vmatprep.subr.mxu0 0.0
      %3306 = vmatpush1.msra.mxu0 0.0
      %3307 = vmatprep.subr.mxu0 0.0
      %3308 = vmatpush1.msra.mxu0 0.0
      %3309 = vmatprep.subr.mxu0 0.0
      %3310 = vmatpush1.msra.mxu0 0.0
      %3311 = vmatprep.subr.mxu0 0.0
      %3312 = vmatpush1.msra.mxu0 0.0
      %3313 = vmatprep.subr.mxu0 0.0
      %3314 = vmatpush1.msra.mxu0 0.0
      %3315 = vmatprep.subr.mxu0 0.0
      %3316 = vmatpush1.msra.mxu0 0.0
      %3317 = vmatprep.subr.mxu0 0.0
      %3318 = vmatpush1.msra.mxu0 0.0
      %3319 = vmatprep.subr.mxu0 0.0
      %3320 = vmatpush1.msra.mxu0 0.0
      %3321 = vmatprep.subr.mxu0 0.0
      %3322 = vmatpush1.msra.mxu0 0.0
      %3323 = vmatprep.subr.mxu0 0.0
      %3324 = vmatpush1.msra.mxu0 0.0
      %3325 = vmatprep.subr.mxu0 0.0
      %3326 = vmatpush1.msra.mxu0 0.0
      %3327 = vmatprep.subr.mxu0 0.0
      %3328 = vmatpush1.msra.mxu0 0.0
      %3329 = vmatprep.subr.mxu0 0.0
      %3330 = vmatpush1.msra.mxu0 0.0
      %3331 = vmatprep.subr.mxu0 0.0
      %3332 = vmatpush1.msra.mxu0 0.0
      %3333 = vmatprep.subr.mxu0 0.0
      %3334 = vmatpush1.msra.mxu0 0.0
      %3335 = vmatprep.subr.mxu0 0.0
      %3336 = vmatpush1.msra.mxu0 0.0
      %3337 = vmatprep.subr.mxu0 0.0
      %3338 = vmatpush1.msra.mxu0 0.0
      %3339 = vmatprep.subr.mxu0 0.0
      %3340 = vmatpush1.msra.mxu0 0.0
      %3341 = vmatprep.subr.mxu0 0.0
      %3342 = vmatpush1.msra.mxu0 0.0
      %3343 = vmatprep.subr.mxu0 0.0
      %3344 = vmatpush1.msra.mxu0 0.0
      %3345 = vmatprep.subr.mxu0 0.0
      %3346 = vmatpush1.msra.mxu0 0.0
      %3347 = vmatprep.subr.mxu0 0.0
      %3348 = vmatpush1.msra.mxu0 0.0
      %3349 = vmatprep.subr.mxu0 0.0
      %3350 = vmatpush1.msra.mxu0 0.0
      %3351 = vmatprep.subr.mxu0 0.0
      %3352 = vmatpush1.msra.mxu0 0.0
      %3353 = vmatprep.subr.mxu0 0.0
      %3354 = vmatpush1.msra.mxu0 0.0
      %3355 = vmatprep.subr.mxu0 0.0
      %3356 = vmatpush1.msra.mxu0 0.0
      %3357 = vmatprep.mubr.f32.mxu0 0.0
      %3358 = vmatmul.mubr.f32.gmra.mrb[0].mxu0 %v2794
      %v3359 = vpop.f32.mrb[0].mxu0
      %v3360 = vadd.f32 0.0, %v3359
      %v3361 = vpop.f32.mrb[0].mxu0
      %v3362 = vadd.f32 0.0, %v3361
      %3363 = vdwg.mxu0
      %v3364 = vadd.f32 %v2759, %v2863
      %v3365 = vadd.f32 %v2760, %v2865
      %v3366 = vadd.f32 %v2761, %v2934
      %v3367 = vadd.f32 %v2762, %v2936
      %v3368 = vadd.f32 %v2763, %v3005
      %v3369 = vadd.f32 %v2764, %v3007
      %v3370 = vadd.f32 %v2765, %v3076
      %v3371 = vadd.f32 %v2766, %v3078
      %v3372 = vadd.f32 %v2767, %v3147
      %v3373 = vadd.f32 %v2768, %v3149
      %v3374 = vadd.f32 %v2769, %v3218
      %v3375 = vadd.f32 %v2770, %v3220
      %v3376 = vadd.f32 %v2771, %v3289
      %v3377 = vadd.f32 %v2772, %v3291
      %v3378 = vadd.f32 %v2773, %v3360
      %v3379 = vadd.f32 %v2774, %v3362
      %s3380 = scalar_lea.vmem %s3, 16
      %v3381 = vld [vmem:[%s3380] sm:$0xf]
      %v3382 = vld [vmem:[#allocation2 + $0x20] sm:$0xff]
      %v3383 = vld [vmem:[#allocation2 + $0x28] sm:$0xff]
      %v3384 = vld [vmem:[#allocation2 + $0x30] sm:$0xff]
      %v3385 = vld [vmem:[#allocation2 + $0x38] sm:$0xff]
      %v3386 = vld [vmem:[#allocation2 + $0x40] sm:$0xff]
      %v3387 = vld [vmem:[#allocation2 + $0x48] sm:$0xff]
      %v3388 = vld [vmem:[#allocation2 + $0x50] sm:$0xff]
      %v3389 = vld [vmem:[#allocation2 + $0x58] sm:$0xff]
      %v3390 = vld [vmem:[#allocation2 + $0x60] sm:$0xff]
      %v3391 = vld [vmem:[#allocation2 + $0x68] sm:$0xff]
      %v3392 = vld [vmem:[#allocation2 + $0x70] sm:$0xff]
      %v3393 = vld [vmem:[#allocation2 + $0x78] sm:$0xff]
      %v3394 = vld [vmem:[#allocation2 + $0x80] sm:$0xff]
      %v3395 = vld [vmem:[#allocation2 + $0x88] sm:$0xff]
      %v3396 = vld [vmem:[#allocation2 + $0x90] sm:$0xff]
      %v3397 = vld [vmem:[#allocation2 + $0x98] sm:$0xff]
      %v3399 = vsel %vm353, %v3381, 0
      %3401 = vmatprep.subr.mxu0 %v3383
      %3402 = vmatpush1.msra.mxu0 %v3382
      %3403 = vmatprep.subr.mxu0 0.0
      %3404 = vmatpush1.msra.mxu0 0.0
      %3405 = vmatprep.subr.mxu0 0.0
      %3406 = vmatpush1.msra.mxu0 0.0
      %3407 = vmatprep.subr.mxu0 0.0
      %3408 = vmatpush1.msra.mxu0 0.0
      %3409 = vmatprep.subr.mxu0 0.0
      %3410 = vmatpush1.msra.mxu0 0.0
      %3411 = vmatprep.subr.mxu0 0.0
      %3412 = vmatpush1.msra.mxu0 0.0
      %3413 = vmatprep.subr.mxu0 0.0
      %3414 = vmatpush1.msra.mxu0 0.0
      %3415 = vmatprep.subr.mxu0 0.0
      %3416 = vmatpush1.msra.mxu0 0.0
      %3417 = vmatprep.subr.mxu0 0.0
      %3418 = vmatpush1.msra.mxu0 0.0
      %3419 = vmatprep.subr.mxu0 0.0
      %3420 = vmatpush1.msra.mxu0 0.0
      %3421 = vmatprep.subr.mxu0 0.0
      %3422 = vmatpush1.msra.mxu0 0.0
      %3423 = vmatprep.subr.mxu0 0.0
      %3424 = vmatpush1.msra.mxu0 0.0
      %3425 = vmatprep.subr.mxu0 0.0
      %3426 = vmatpush1.msra.mxu0 0.0
      %3427 = vmatprep.subr.mxu0 0.0
      %3428 = vmatpush1.msra.mxu0 0.0
      %3429 = vmatprep.subr.mxu0 0.0
      %3430 = vmatpush1.msra.mxu0 0.0
      %3431 = vmatprep.subr.mxu0 0.0
      %3432 = vmatpush1.msra.mxu0 0.0
      %3433 = vmatprep.subr.mxu0 0.0
      %3434 = vmatpush1.msra.mxu0 0.0
      %3435 = vmatprep.subr.mxu0 0.0
      %3436 = vmatpush1.msra.mxu0 0.0
      %3437 = vmatprep.subr.mxu0 0.0
      %3438 = vmatpush1.msra.mxu0 0.0
      %3439 = vmatprep.subr.mxu0 0.0
      %3440 = vmatpush1.msra.mxu0 0.0
      %3441 = vmatprep.subr.mxu0 0.0
      %3442 = vmatpush1.msra.mxu0 0.0
      %3443 = vmatprep.subr.mxu0 0.0
      %3444 = vmatpush1.msra.mxu0 0.0
      %3445 = vmatprep.subr.mxu0 0.0
      %3446 = vmatpush1.msra.mxu0 0.0
      %3447 = vmatprep.subr.mxu0 0.0
      %3448 = vmatpush1.msra.mxu0 0.0
      %3449 = vmatprep.subr.mxu0 0.0
      %3450 = vmatpush1.msra.mxu0 0.0
      %3451 = vmatprep.subr.mxu0 0.0
      %3452 = vmatpush1.msra.mxu0 0.0
      %3453 = vmatprep.subr.mxu0 0.0
      %3454 = vmatpush1.msra.mxu0 0.0
      %3455 = vmatprep.subr.mxu0 0.0
      %3456 = vmatpush1.msra.mxu0 0.0
      %3457 = vmatprep.subr.mxu0 0.0
      %3458 = vmatpush1.msra.mxu0 0.0
      %3459 = vmatprep.subr.mxu0 0.0
      %3460 = vmatpush1.msra.mxu0 0.0
      %3461 = vmatprep.subr.mxu0 0.0
      %3462 = vmatpush1.msra.mxu0 0.0
      %3463 = vmatprep.subr.mxu0 0.0
      %3464 = vmatpush1.msra.mxu0 0.0
      %3465 = vmatprep.mubr.f32.mxu0 0.0
      %3466 = vmatmul.mubr.f32.gmra.mrb[0].mxu0 %v3399
      %v3467 = vpop.f32.mrb[0].mxu0
      %v3468 = vadd.f32 0.0, %v3467
      %v3469 = vpop.f32.mrb[0].mxu0
      %v3470 = vadd.f32 0.0, %v3469
      %3471 = vdwg.mxu0
      %3472 = vmatprep.subr.mxu0 %v3385
      %3473 = vmatpush1.msra.mxu0 %v3384
      %3474 = vmatprep.subr.mxu0 0.0
      %3475 = vmatpush1.msra.mxu0 0.0
      %3476 = vmatprep.subr.mxu0 0.0
      %3477 = vmatpush1.msra.mxu0 0.0
      %3478 = vmatprep.subr.mxu0 0.0
      %3479 = vmatpush1.msra.mxu0 0.0
      %3480 = vmatprep.subr.mxu0 0.0
      %3481 = vmatpush1.msra.mxu0 0.0
      %3482 = vmatprep.subr.mxu0 0.0
      %3483 = vmatpush1.msra.mxu0 0.0
      %3484 = vmatprep.subr.mxu0 0.0
      %3485 = vmatpush1.msra.mxu0 0.0
      %3486 = vmatprep.subr.mxu0 0.0
      %3487 = vmatpush1.msra.mxu0 0.0
      %3488 = vmatprep.subr.mxu0 0.0
      %3489 = vmatpush1.msra.mxu0 0.0
      %3490 = vmatprep.subr.mxu0 0.0
      %3491 = vmatpush1.msra.mxu0 0.0
      %3492 = vmatprep.subr.mxu0 0.0
      %3493 = vmatpush1.msra.mxu0 0.0
      %3494 = vmatprep.subr.mxu0 0.0
      %3495 = vmatpush1.msra.mxu0 0.0
      %3496 = vmatprep.subr.mxu0 0.0
      %3497 = vmatpush1.msra.mxu0 0.0
      %3498 = vmatprep.subr.mxu0 0.0
      %3499 = vmatpush1.msra.mxu0 0.0
      %3500 = vmatprep.subr.mxu0 0.0
      %3501 = vmatpush1.msra.mxu0 0.0
      %3502 = vmatprep.subr.mxu0 0.0
      %3503 = vmatpush1.msra.mxu0 0.0
      %3504 = vmatprep.subr.mxu0 0.0
      %3505 = vmatpush1.msra.mxu0 0.0
      %3506 = vmatprep.subr.mxu0 0.0
      %3507 = vmatpush1.msra.mxu0 0.0
      %3508 = vmatprep.subr.mxu0 0.0
      %3509 = vmatpush1.msra.mxu0 0.0
      %3510 = vmatprep.subr.mxu0 0.0
      %3511 = vmatpush1.msra.mxu0 0.0
      %3512 = vmatprep.subr.mxu0 0.0
      %3513 = vmatpush1.msra.mxu0 0.0
      %3514 = vmatprep.subr.mxu0 0.0
      %3515 = vmatpush1.msra.mxu0 0.0
      %3516 = vmatprep.subr.mxu0 0.0
      %3517 = vmatpush1.msra.mxu0 0.0
      %3518 = vmatprep.subr.mxu0 0.0
      %3519 = vmatpush1.msra.mxu0 0.0
      %3520 = vmatprep.subr.mxu0 0.0
      %3521 = vmatpush1.msra.mxu0 0.0
      %3522 = vmatprep.subr.mxu0 0.0
      %3523 = vmatpush1.msra.mxu0 0.0
      %3524 = vmatprep.subr.mxu0 0.0
      %3525 = vmatpush1.msra.mxu0 0.0
      %3526 = vmatprep.subr.mxu0 0.0
      %3527 = vmatpush1.msra.mxu0 0.0
      %3528 = vmatprep.subr.mxu0 0.0
      %3529 = vmatpush1.msra.mxu0 0.0
      %3530 = vmatprep.subr.mxu0 0.0
      %3531 = vmatpush1.msra.mxu0 0.0
      %3532 = vmatprep.subr.mxu0 0.0
      %3533 = vmatpush1.msra.mxu0 0.0
      %3534 = vmatprep.subr.mxu0 0.0
      %3535 = vmatpush1.msra.mxu0 0.0
      %3536 = vmatprep.mubr.f32.mxu0 0.0
      %3537 = vmatmul.mubr.f32.gmra.mrb[0].mxu0 %v3399
      %v3538 = vpop.f32.mrb[0].mxu0
      %v3539 = vadd.f32 0.0, %v3538
      %v3540 = vpop.f32.mrb[0].mxu0
      %v3541 = vadd.f32 0.0, %v3540
      %3542 = vdwg.mxu0
      %3543 = vmatprep.subr.mxu0 %v3387
      %3544 = vmatpush1.msra.mxu0 %v3386
      %3545 = vmatprep.subr.mxu0 0.0
      %3546 = vmatpush1.msra.mxu0 0.0
      %3547 = vmatprep.subr.mxu0 0.0
      %3548 = vmatpush1.msra.mxu0 0.0
      %3549 = vmatprep.subr.mxu0 0.0
      %3550 = vmatpush1.msra.mxu0 0.0
      %3551 = vmatprep.subr.mxu0 0.0
      %3552 = vmatpush1.msra.mxu0 0.0
      %3553 = vmatprep.subr.mxu0 0.0
      %3554 = vmatpush1.msra.mxu0 0.0
      %3555 = vmatprep.subr.mxu0 0.0
      %3556 = vmatpush1.msra.mxu0 0.0
      %3557 = vmatprep.subr.mxu0 0.0
      %3558 = vmatpush1.msra.mxu0 0.0
      %3559 = vmatprep.subr.mxu0 0.0
      %3560 = vmatpush1.msra.mxu0 0.0
      %3561 = vmatprep.subr.mxu0 0.0
      %3562 = vmatpush1.msra.mxu0 0.0
      %3563 = vmatprep.subr.mxu0 0.0
      %3564 = vmatpush1.msra.mxu0 0.0
      %3565 = vmatprep.subr.mxu0 0.0
      %3566 = vmatpush1.msra.mxu0 0.0
      %3567 = vmatprep.subr.mxu0 0.0
      %3568 = vmatpush1.msra.mxu0 0.0
      %3569 = vmatprep.subr.mxu0 0.0
      %3570 = vmatpush1.msra.mxu0 0.0
      %3571 = vmatprep.subr.mxu0 0.0
      %3572 = vmatpush1.msra.mxu0 0.0
      %3573 = vmatprep.subr.mxu0 0.0
      %3574 = vmatpush1.msra.mxu0 0.0
      %3575 = vmatprep.subr.mxu0 0.0
      %3576 = vmatpush1.msra.mxu0 0.0
      %3577 = vmatprep.subr.mxu0 0.0
      %3578 = vmatpush1.msra.mxu0 0.0
      %3579 = vmatprep.subr.mxu0 0.0
      %3580 = vmatpush1.msra.mxu0 0.0
      %3581 = vmatprep.subr.mxu0 0.0
      %3582 = vmatpush1.msra.mxu0 0.0
      %3583 = vmatprep.subr.mxu0 0.0
      %3584 = vmatpush1.msra.mxu0 0.0
      %3585 = vmatprep.subr.mxu0 0.0
      %3586 = vmatpush1.msra.mxu0 0.0
      %3587 = vmatprep.subr.mxu0 0.0
      %3588 = vmatpush1.msra.mxu0 0.0
      %3589 = vmatprep.subr.mxu0 0.0
      %3590 = vmatpush1.msra.mxu0 0.0
      %3591 = vmatprep.subr.mxu0 0.0
      %3592 = vmatpush1.msra.mxu0 0.0
      %3593 = vmatprep.subr.mxu0 0.0
      %3594 = vmatpush1.msra.mxu0 0.0
      %3595 = vmatprep.subr.mxu0 0.0
      %3596 = vmatpush1.msra.mxu0 0.0
      %3597 = vmatprep.subr.mxu0 0.0
      %3598 = vmatpush1.msra.mxu0 0.0
      %3599 = vmatprep.subr.mxu0 0.0
      %3600 = vmatpush1.msra.mxu0 0.0
      %3601 = vmatprep.subr.mxu0 0.0
      %3602 = vmatpush1.msra.mxu0 0.0
      %3603 = vmatprep.subr.mxu0 0.0
      %3604 = vmatpush1.msra.mxu0 0.0
      %3605 = vmatprep.subr.mxu0 0.0
      %3606 = vmatpush1.msra.mxu0 0.0
      %3607 = vmatprep.mubr.f32.mxu0 0.0
      %3608 = vmatmul.mubr.f32.gmra.mrb[0].mxu0 %v3399
      %v3609 = vpop.f32.mrb[0].mxu0
      %v3610 = vadd.f32 0.0, %v3609
      %v3611 = vpop.f32.mrb[0].mxu0
      %v3612 = vadd.f32 0.0, %v3611
      %3613 = vdwg.mxu0
      %3614 = vmatprep.subr.mxu0 %v3389
      %3615 = vmatpush1.msra.mxu0 %v3388
      %3616 = vmatprep.subr.mxu0 0.0
      %3617 = vmatpush1.msra.mxu0 0.0
      %3618 = vmatprep.subr.mxu0 0.0
      %3619 = vmatpush1.msra.mxu0 0.0
      %3620 = vmatprep.subr.mxu0 0.0
      %3621 = vmatpush1.msra.mxu0 0.0
      %3622 = vmatprep.subr.mxu0 0.0
      %3623 = vmatpush1.msra.mxu0 0.0
      %3624 = vmatprep.subr.mxu0 0.0
      %3625 = vmatpush1.msra.mxu0 0.0
      %3626 = vmatprep.subr.mxu0 0.0
      %3627 = vmatpush1.msra.mxu0 0.0
      %3628 = vmatprep.subr.mxu0 0.0
      %3629 = vmatpush1.msra.mxu0 0.0
      %3630 = vmatprep.subr.mxu0 0.0
      %3631 = vmatpush1.msra.mxu0 0.0
      %3632 = vmatprep.subr.mxu0 0.0
      %3633 = vmatpush1.msra.mxu0 0.0
      %3634 = vmatprep.subr.mxu0 0.0
      %3635 = vmatpush1.msra.mxu0 0.0
      %3636 = vmatprep.subr.mxu0 0.0
      %3637 = vmatpush1.msra.mxu0 0.0
      %3638 = vmatprep.subr.mxu0 0.0
      %3639 = vmatpush1.msra.mxu0 0.0
      %3640 = vmatprep.subr.mxu0 0.0
      %3641 = vmatpush1.msra.mxu0 0.0
      %3642 = vmatprep.subr.mxu0 0.0
      %3643 = vmatpush1.msra.mxu0 0.0
      %3644 = vmatprep.subr.mxu0 0.0
      %3645 = vmatpush1.msra.mxu0 0.0
      %3646 = vmatprep.subr.mxu0 0.0
      %3647 = vmatpush1.msra.mxu0 0.0
      %3648 = vmatprep.subr.mxu0 0.0
      %3649 = vmatpush1.msra.mxu0 0.0
      %3650 = vmatprep.subr.mxu0 0.0
      %3651 = vmatpush1.msra.mxu0 0.0
      %3652 = vmatprep.subr.mxu0 0.0
      %3653 = vmatpush1.msra.mxu0 0.0
      %3654 = vmatprep.subr.mxu0 0.0
      %3655 = vmatpush1.msra.mxu0 0.0
      %3656 = vmatprep.subr.mxu0 0.0
      %3657 = vmatpush1.msra.mxu0 0.0
      %3658 = vmatprep.subr.mxu0 0.0
      %3659 = vmatpush1.msra.mxu0 0.0
      %3660 = vmatprep.subr.mxu0 0.0
      %3661 = vmatpush1.msra.mxu0 0.0
      %3662 = vmatprep.subr.mxu0 0.0
      %3663 = vmatpush1.msra.mxu0 0.0
      %3664 = vmatprep.subr.mxu0 0.0
      %3665 = vmatpush1.msra.mxu0 0.0
      %3666 = vmatprep.subr.mxu0 0.0
      %3667 = vmatpush1.msra.mxu0 0.0
      %3668 = vmatprep.subr.mxu0 0.0
      %3669 = vmatpush1.msra.mxu0 0.0
      %3670 = vmatprep.subr.mxu0 0.0
      %3671 = vmatpush1.msra.mxu0 0.0
      %3672 = vmatprep.subr.mxu0 0.0
      %3673 = vmatpush1.msra.mxu0 0.0
      %3674 = vmatprep.subr.mxu0 0.0
      %3675 = vmatpush1.msra.mxu0 0.0
      %3676 = vmatprep.subr.mxu0 0.0
      %3677 = vmatpush1.msra.mxu0 0.0
      %3678 = vmatprep.mubr.f32.mxu0 0.0
      %3679 = vmatmul.mubr.f32.gmra.mrb[0].mxu0 %v3399
      %v3680 = vpop.f32.mrb[0].mxu0
      %v3681 = vadd.f32 0.0, %v3680
      %v3682 = vpop.f32.mrb[0].mxu0
      %v3683 = vadd.f32 0.0, %v3682
      %3684 = vdwg.mxu0
      %3685 = vmatprep.subr.mxu0 %v3391
      %3686 = vmatpush1.msra.mxu0 %v3390
      %3687 = vmatprep.subr.mxu0 0.0
      %3688 = vmatpush1.msra.mxu0 0.0
      %3689 = vmatprep.subr.mxu0 0.0
      %3690 = vmatpush1.msra.mxu0 0.0
      %3691 = vmatprep.subr.mxu0 0.0
      %3692 = vmatpush1.msra.mxu0 0.0
      %3693 = vmatprep.subr.mxu0 0.0
      %3694 = vmatpush1.msra.mxu0 0.0
      %3695 = vmatprep.subr.mxu0 0.0
      %3696 = vmatpush1.msra.mxu0 0.0
      %3697 = vmatprep.subr.mxu0 0.0
      %3698 = vmatpush1.msra.mxu0 0.0
      %3699 = vmatprep.subr.mxu0 0.0
      %3700 = vmatpush1.msra.mxu0 0.0
      %3701 = vmatprep.subr.mxu0 0.0
      %3702 = vmatpush1.msra.mxu0 0.0
      %3703 = vmatprep.subr.mxu0 0.0
      %3704 = vmatpush1.msra.mxu0 0.0
      %3705 = vmatprep.subr.mxu0 0.0
      %3706 = vmatpush1.msra.mxu0 0.0
      %3707 = vmatprep.subr.mxu0 0.0
      %3708 = vmatpush1.msra.mxu0 0.0
      %3709 = vmatprep.subr.mxu0 0.0
      %3710 = vmatpush1.msra.mxu0 0.0
      %3711 = vmatprep.subr.mxu0 0.0
      %3712 = vmatpush1.msra.mxu0 0.0
      %3713 = vmatprep.subr.mxu0 0.0
      %3714 = vmatpush1.msra.mxu0 0.0
      %3715 = vmatprep.subr.mxu0 0.0
      %3716 = vmatpush1.msra.mxu0 0.0
      %3717 = vmatprep.subr.mxu0 0.0
      %3718 = vmatpush1.msra.mxu0 0.0
      %3719 = vmatprep.subr.mxu0 0.0
      %3720 = vmatpush1.msra.mxu0 0.0
      %3721 = vmatprep.subr.mxu0 0.0
      %3722 = vmatpush1.msra.mxu0 0.0
      %3723 = vmatprep.subr.mxu0 0.0
      %3724 = vmatpush1.msra.mxu0 0.0
      %3725 = vmatprep.subr.mxu0 0.0
      %3726 = vmatpush1.msra.mxu0 0.0
      %3727 = vmatprep.subr.mxu0 0.0
      %3728 = vmatpush1.msra.mxu0 0.0
      %3729 = vmatprep.subr.mxu0 0.0
      %3730 = vmatpush1.msra.mxu0 0.0
      %3731 = vmatprep.subr.mxu0 0.0
      %3732 = vmatpush1.msra.mxu0 0.0
      %3733 = vmatprep.subr.mxu0 0.0
      %3734 = vmatpush1.msra.mxu0 0.0
      %3735 = vmatprep.subr.mxu0 0.0
      %3736 = vmatpush1.msra.mxu0 0.0
      %3737 = vmatprep.subr.mxu0 0.0
      %3738 = vmatpush1.msra.mxu0 0.0
      %3739 = vmatprep.subr.mxu0 0.0
      %3740 = vmatpush1.msra.mxu0 0.0
      %3741 = vmatprep.subr.mxu0 0.0
      %3742 = vmatpush1.msra.mxu0 0.0
      %3743 = vmatprep.subr.mxu0 0.0
      %3744 = vmatpush1.msra.mxu0 0.0
      %3745 = vmatprep.subr.mxu0 0.0
      %3746 = vmatpush1.msra.mxu0 0.0
      %3747 = vmatprep.subr.mxu0 0.0
      %3748 = vmatpush1.msra.mxu0 0.0
      %3749 = vmatprep.mubr.f32.mxu0 0.0
      %3750 = vmatmul.mubr.f32.gmra.mrb[0].mxu0 %v3399
      %v3751 = vpop.f32.mrb[0].mxu0
      %v3752 = vadd.f32 0.0, %v3751
      %v3753 = vpop.f32.mrb[0].mxu0
      %v3754 = vadd.f32 0.0, %v3753
      %3755 = vdwg.mxu0
      %3756 = vmatprep.subr.mxu0 %v3393
      %3757 = vmatpush1.msra.mxu0 %v3392
      %3758 = vmatprep.subr.mxu0 0.0
      %3759 = vmatpush1.msra.mxu0 0.0
      %3760 = vmatprep.subr.mxu0 0.0
      %3761 = vmatpush1.msra.mxu0 0.0
      %3762 = vmatprep.subr.mxu0 0.0
      %3763 = vmatpush1.msra.mxu0 0.0
      %3764 = vmatprep.subr.mxu0 0.0
      %3765 = vmatpush1.msra.mxu0 0.0
      %3766 = vmatprep.subr.mxu0 0.0
      %3767 = vmatpush1.msra.mxu0 0.0
      %3768 = vmatprep.subr.mxu0 0.0
      %3769 = vmatpush1.msra.mxu0 0.0
      %3770 = vmatprep.subr.mxu0 0.0
      %3771 = vmatpush1.msra.mxu0 0.0
      %3772 = vmatprep.subr.mxu0 0.0
      %3773 = vmatpush1.msra.mxu0 0.0
      %3774 = vmatprep.subr.mxu0 0.0
      %3775 = vmatpush1.msra.mxu0 0.0
      %3776 = vmatprep.subr.mxu0 0.0
      %3777 = vmatpush1.msra.mxu0 0.0
      %3778 = vmatprep.subr.mxu0 0.0
      %3779 = vmatpush1.msra.mxu0 0.0
      %3780 = vmatprep.subr.mxu0 0.0
      %3781 = vmatpush1.msra.mxu0 0.0
      %3782 = vmatprep.subr.mxu0 0.0
      %3783 = vmatpush1.msra.mxu0 0.0
      %3784 = vmatprep.subr.mxu0 0.0
      %3785 = vmatpush1.msra.mxu0 0.0
      %3786 = vmatprep.subr.mxu0 0.0
      %3787 = vmatpush1.msra.mxu0 0.0
      %3788 = vmatprep.subr.mxu0 0.0
      %3789 = vmatpush1.msra.mxu0 0.0
      %3790 = vmatprep.subr.mxu0 0.0
      %3791 = vmatpush1.msra.mxu0 0.0
      %3792 = vmatprep.subr.mxu0 0.0
      %3793 = vmatpush1.msra.mxu0 0.0
      %3794 = vmatprep.subr.mxu0 0.0
      %3795 = vmatpush1.msra.mxu0 0.0
      %3796 = vmatprep.subr.mxu0 0.0
      %3797 = vmatpush1.msra.mxu0 0.0
      %3798 = vmatprep.subr.mxu0 0.0
      %3799 = vmatpush1.msra.mxu0 0.0
      %3800 = vmatprep.subr.mxu0 0.0
      %3801 = vmatpush1.msra.mxu0 0.0
      %3802 = vmatprep.subr.mxu0 0.0
      %3803 = vmatpush1.msra.mxu0 0.0
      %3804 = vmatprep.subr.mxu0 0.0
      %3805 = vmatpush1.msra.mxu0 0.0
      %3806 = vmatprep.subr.mxu0 0.0
      %3807 = vmatpush1.msra.mxu0 0.0
      %3808 = vmatprep.subr.mxu0 0.0
      %3809 = vmatpush1.msra.mxu0 0.0
      %3810 = vmatprep.subr.mxu0 0.0
      %3811 = vmatpush1.msra.mxu0 0.0
      %3812 = vmatprep.subr.mxu0 0.0
      %3813 = vmatpush1.msra.mxu0 0.0
      %3814 = vmatprep.subr.mxu0 0.0
      %3815 = vmatpush1.msra.mxu0 0.0
      %3816 = vmatprep.subr.mxu0 0.0
      %3817 = vmatpush1.msra.mxu0 0.0
      %3818 = vmatprep.subr.mxu0 0.0
      %3819 = vmatpush1.msra.mxu0 0.0
      %3820 = vmatprep.mubr.f32.mxu0 0.0
      %3821 = vmatmul.mubr.f32.gmra.mrb[0].mxu0 %v3399
      %v3822 = vpop.f32.mrb[0].mxu0
      %v3823 = vadd.f32 0.0, %v3822
      %v3824 = vpop.f32.mrb[0].mxu0
      %v3825 = vadd.f32 0.0, %v3824
      %3826 = vdwg.mxu0
      %3827 = vmatprep.subr.mxu0 %v3395
      %3828 = vmatpush1.msra.mxu0 %v3394
      %3829 = vmatprep.subr.mxu0 0.0
      %3830 = vmatpush1.msra.mxu0 0.0
      %3831 = vmatprep.subr.mxu0 0.0
      %3832 = vmatpush1.msra.mxu0 0.0
      %3833 = vmatprep.subr.mxu0 0.0
      %3834 = vmatpush1.msra.mxu0 0.0
      %3835 = vmatprep.subr.mxu0 0.0
      %3836 = vmatpush1.msra.mxu0 0.0
      %3837 = vmatprep.subr.mxu0 0.0
      %3838 = vmatpush1.msra.mxu0 0.0
      %3839 = vmatprep.subr.mxu0 0.0
      %3840 = vmatpush1.msra.mxu0 0.0
      %3841 = vmatprep.subr.mxu0 0.0
      %3842 = vmatpush1.msra.mxu0 0.0
      %3843 = vmatprep.subr.mxu0 0.0
      %3844 = vmatpush1.msra.mxu0 0.0
      %3845 = vmatprep.subr.mxu0 0.0
      %3846 = vmatpush1.msra.mxu0 0.0
      %3847 = vmatprep.subr.mxu0 0.0
      %3848 = vmatpush1.msra.mxu0 0.0
      %3849 = vmatprep.subr.mxu0 0.0
      %3850 = vmatpush1.msra.mxu0 0.0
      %3851 = vmatprep.subr.mxu0 0.0
      %3852 = vmatpush1.msra.mxu0 0.0
      %3853 = vmatprep.subr.mxu0 0.0
      %3854 = vmatpush1.msra.mxu0 0.0
      %3855 = vmatprep.subr.mxu0 0.0
      %3856 = vmatpush1.msra.mxu0 0.0
      %3857 = vmatprep.subr.mxu0 0.0
      %3858 = vmatpush1.msra.mxu0 0.0
      %3859 = vmatprep.subr.mxu0 0.0
      %3860 = vmatpush1.msra.mxu0 0.0
      %3861 = vmatprep.subr.mxu0 0.0
      %3862 = vmatpush1.msra.mxu0 0.0
      %3863 = vmatprep.subr.mxu0 0.0
      %3864 = vmatpush1.msra.mxu0 0.0
      %3865 = vmatprep.subr.mxu0 0.0
      %3866 = vmatpush1.msra.mxu0 0.0
      %3867 = vmatprep.subr.mxu0 0.0
      %3868 = vmatpush1.msra.mxu0 0.0
      %3869 = vmatprep.subr.mxu0 0.0
      %3870 = vmatpush1.msra.mxu0 0.0
      %3871 = vmatprep.subr.mxu0 0.0
      %3872 = vmatpush1.msra.mxu0 0.0
      %3873 = vmatprep.subr.mxu0 0.0
      %3874 = vmatpush1.msra.mxu0 0.0
      %3875 = vmatprep.subr.mxu0 0.0
      %3876 = vmatpush1.msra.mxu0 0.0
      %3877 = vmatprep.subr.mxu0 0.0
      %3878 = vmatpush1.msra.mxu0 0.0
      %3879 = vmatprep.subr.mxu0 0.0
      %3880 = vmatpush1.msra.mxu0 0.0
      %3881 = vmatprep.subr.mxu0 0.0
      %3882 = vmatpush1.msra.mxu0 0.0
      %3883 = vmatprep.subr.mxu0 0.0
      %3884 = vmatpush1.msra.mxu0 0.0
      %3885 = vmatprep.subr.mxu0 0.0
      %3886 = vmatpush1.msra.mxu0 0.0
      %3887 = vmatprep.subr.mxu0 0.0
      %3888 = vmatpush1.msra.mxu0 0.0
      %3889 = vmatprep.subr.mxu0 0.0
      %3890 = vmatpush1.msra.mxu0 0.0
      %3891 = vmatprep.mubr.f32.mxu0 0.0
      %3892 = vmatmul.mubr.f32.gmra.mrb[0].mxu0 %v3399
      %v3893 = vpop.f32.mrb[0].mxu0
      %v3894 = vadd.f32 0.0, %v3893
      %v3895 = vpop.f32.mrb[0].mxu0
      %v3896 = vadd.f32 0.0, %v3895
      %3897 = vdwg.mxu0
      %3898 = vmatprep.subr.mxu0 %v3397
      %3899 = vmatpush1.msra.mxu0 %v3396
      %3900 = vmatprep.subr.mxu0 0.0
      %3901 = vmatpush1.msra.mxu0 0.0
      %3902 = vmatprep.subr.mxu0 0.0
      %3903 = vmatpush1.msra.mxu0 0.0
      %3904 = vmatprep.subr.mxu0 0.0
      %3905 = vmatpush1.msra.mxu0 0.0
      %3906 = vmatprep.subr.mxu0 0.0
      %3907 = vmatpush1.msra.mxu0 0.0
      %3908 = vmatprep.subr.mxu0 0.0
      %3909 = vmatpush1.msra.mxu0 0.0
      %3910 = vmatprep.subr.mxu0 0.0
      %3911 = vmatpush1.msra.mxu0 0.0
      %3912 = vmatprep.subr.mxu0 0.0
      %3913 = vmatpush1.msra.mxu0 0.0
      %3914 = vmatprep.subr.mxu0 0.0
      %3915 = vmatpush1.msra.mxu0 0.0
      %3916 = vmatprep.subr.mxu0 0.0
      %3917 = vmatpush1.msra.mxu0 0.0
      %3918 = vmatprep.subr.mxu0 0.0
      %3919 = vmatpush1.msra.mxu0 0.0
      %3920 = vmatprep.subr.mxu0 0.0
      %3921 = vmatpush1.msra.mxu0 0.0
      %3922 = vmatprep.subr.mxu0 0.0
      %3923 = vmatpush1.msra.mxu0 0.0
      %3924 = vmatprep.subr.mxu0 0.0
      %3925 = vmatpush1.msra.mxu0 0.0
      %3926 = vmatprep.subr.mxu0 0.0
      %3927 = vmatpush1.msra.mxu0 0.0
      %3928 = vmatprep.subr.mxu0 0.0
      %3929 = vmatpush1.msra.mxu0 0.0
      %3930 = vmatprep.subr.mxu0 0.0
      %3931 = vmatpush1.msra.mxu0 0.0
      %3932 = vmatprep.subr.mxu0 0.0
      %3933 = vmatpush1.msra.mxu0 0.0
      %3934 = vmatprep.subr.mxu0 0.0
      %3935 = vmatpush1.msra.mxu0 0.0
      %3936 = vmatprep.subr.mxu0 0.0
      %3937 = vmatpush1.msra.mxu0 0.0
      %3938 = vmatprep.subr.mxu0 0.0
      %3939 = vmatpush1.msra.mxu0 0.0
      %3940 = vmatprep.subr.mxu0 0.0
      %3941 = vmatpush1.msra.mxu0 0.0
      %3942 = vmatprep.subr.mxu0 0.0
      %3943 = vmatpush1.msra.mxu0 0.0
      %3944 = vmatprep.subr.mxu0 0.0
      %3945 = vmatpush1.msra.mxu0 0.0
      %3946 = vmatprep.subr.mxu0 0.0
      %3947 = vmatpush1.msra.mxu0 0.0
      %3948 = vmatprep.subr.mxu0 0.0
      %3949 = vmatpush1.msra.mxu0 0.0
      %3950 = vmatprep.subr.mxu0 0.0
      %3951 = vmatpush1.msra.mxu0 0.0
      %3952 = vmatprep.subr.mxu0 0.0
      %3953 = vmatpush1.msra.mxu0 0.0
      %3954 = vmatprep.subr.mxu0 0.0
      %3955 = vmatpush1.msra.mxu0 0.0
      %3956 = vmatprep.subr.mxu0 0.0
      %3957 = vmatpush1.msra.mxu0 0.0
      %3958 = vmatprep.subr.mxu0 0.0
      %3959 = vmatpush1.msra.mxu0 0.0
      %3960 = vmatprep.subr.mxu0 0.0
      %3961 = vmatpush1.msra.mxu0 0.0
      %3962 = vmatprep.mubr.f32.mxu0 0.0
      %3963 = vmatmul.mubr.f32.gmra.mrb[0].mxu0 %v3399
      %v3964 = vpop.f32.mrb[0].mxu0
      %v3965 = vadd.f32 0.0, %v3964
      %v3966 = vpop.f32.mrb[0].mxu0
      %v3967 = vadd.f32 0.0, %v3966
      %3968 = vdwg.mxu0
      %v3969 = vadd.f32 %v3364, %v3468
      %v3970 = vadd.f32 %v3365, %v3470
      %v3971 = vadd.f32 %v3366, %v3539
      %v3972 = vadd.f32 %v3367, %v3541
      %v3973 = vadd.f32 %v3368, %v3610
      %v3974 = vadd.f32 %v3369, %v3612
      %v3975 = vadd.f32 %v3370, %v3681
      %v3976 = vadd.f32 %v3371, %v3683
      %v3977 = vadd.f32 %v3372, %v3752
      %v3978 = vadd.f32 %v3373, %v3754
      %v3979 = vadd.f32 %v3374, %v3823
      %v3980 = vadd.f32 %v3375, %v3825
      %v3981 = vadd.f32 %v3376, %v3894
      %v3982 = vadd.f32 %v3377, %v3896
      %v3983 = vadd.f32 %v3378, %v3965
      %v3984 = vadd.f32 %v3379, %v3967
      %v3985 = vld [vmem:[%s4] sm:$0xf]
      %3987 = vset.pattern.permute.xlu0 0
      %3988 = vperm.xlu0 %3987, %v3985
      %v3989 = vpop.permute.xlu0 %3988
      %v3991 = vadd.f32 %v3969, %v3989
      %v3992 = vadd.f32 %v3970, %v3989
      %v3993 = vadd.f32 %v3971, %v3989
      %v3994 = vadd.f32 %v3972, %v3989
      %v3995 = vadd.f32 %v3973, %v3989
      %v3996 = vadd.f32 %v3974, %v3989
      %v3997 = vadd.f32 %v3975, %v3989
      %v3998 = vadd.f32 %v3976, %v3989
      %v3999 = vadd.f32 %v3977, %v3989
      %v4000 = vadd.f32 %v3978, %v3989
      %v4001 = vadd.f32 %v3979, %v3989
      %v4002 = vadd.f32 %v3980, %v3989
      %v4003 = vadd.f32 %v3981, %v3989
      %v4004 = vadd.f32 %v3982, %v3989
      %v4005 = vadd.f32 %v3983, %v3989
      %v4006 = vadd.f32 %v3984, %v3989
      %4007 = vst [vmem:[%s224 + $0x80] sm:$0xf] %v3991
      %4008 = vst [vmem:[%s224 + $0x88] sm:$0xf] %v3992
      %4009 = vst [vmem:[%s224 + $0x90] sm:$0xf] %v3993
      %4010 = vst [vmem:[%s224 + $0x98] sm:$0xf] %v3994
      %4011 = vst [vmem:[%s224 + $0xa0] sm:$0xf] %v3995
      %4012 = vst [vmem:[%s224 + $0xa8] sm:$0xf] %v3996
      %4013 = vst [vmem:[%s224 + $0xb0] sm:$0xf] %v3997
      %4014 = vst [vmem:[%s224 + $0xb8] sm:$0xf] %v3998
      %4015 = vst [vmem:[%s224 + $0xc0] sm:$0xf] %v3999
      %4016 = vst [vmem:[%s224 + $0xc8] sm:$0xf] %v4000
      %4017 = vst [vmem:[%s224 + $0xd0] sm:$0xf] %v4001
      %4018 = vst [vmem:[%s224 + $0xd8] sm:$0xf] %v4002
      %4019 = vst [vmem:[%s224 + $0xe0] sm:$0xf] %v4003
      %4020 = vst [vmem:[%s224 + $0xe8] sm:$0xf] %v4004
      %4021 = vst [vmem:[%s224 + $0xf0] sm:$0xf] %v4005
      %4022 = vst [vmem:[%s224 + $0xf8] sm:$0xf] %v4006
      %p4023 = scmp.lt.s32.totalorder %s16, 1
      %s4024 = scalar_select %p4023, %s16, 1
      %s4025 = smul.addr %s4024, 32
      %s4026 = smul.addr %s4025, 8
      %s4027 = scalar_lea.vmem %s5, %s4026
      // Predicated region
      $region41: #{dense_filter.1} parent=39 // pred_check
        %p4028 = pneg %p144
      $region42: #{dense_filter.1} parent=39 // pred_check_branch
        %4030 = sbr.rel (%p4028) target = $region44
      $region43: #{dense_filter.1} parent=39 // pred_region
        _
      $region44: #{dense_filter.1} parent=39 // pred_fallthru
        _
    $region40: #{dense_filter.1} parent=5 // pred_fallthru
      _
    %p4031 = scmp.le.s32.totalorder 2, %s11
    // Predicated region
    $region45: #{dense_filter.1} parent=5 // pred_check
      %p4032 = pneg %p4031
    $region46: #{dense_filter.1} parent=5 // pred_check_branch
      %4034 = sbr.rel (%p4032) target = $region48
    $region47: #{dense_filter.1} parent=5 // pred_region
      %s4035 = ssub.s32 %s11, 2
      // Predicated region
      $region49: #{dense_filter.1} parent=47 // pred_check
        %p4036 = pneg %p150
      $region50: #{dense_filter.1} parent=47 // pred_check_branch
        %4038 = sbr.rel (%p4036) target = $region52
      $region51: #{dense_filter.1} parent=47 // pred_region
        %p4039 = scmp.lt.s32.totalorder %s17, 1
        %s4040 = scalar_select %p4039, %s17, 1
        %s4041 = smul.addr %s4040, 32
        %s4042 = smul.addr %s4041, 8
        %s4043 = scalar_lea.vmem %s5, %s4042
      $region52: #{dense_filter.1} parent=47 // pred_fallthru
        _
    $region48: #{dense_filter.1} parent=5 // pred_fallthru
      _
  $region6: #{dense_filter.1} parent=0 // loop_footer
    %s15 = sadd.s32 1, %s11
  $region7: #{dense_filter.1} parent=0 // loop_footer_branch
    %10 = sbr.rel target = $region3
  $region8: #{dense_filter.1} parent=0 // loop_exit
    _

</llo_original>
